<compile_context>
chip_gen: v5e
topology: v5e:2x2
jax: 0.10.0
libtpu: 0.0.40
codegen_flags: <defaults>
</compile_context>

<pallas_src>
import functools

import jax
import jax.numpy as jnp
from jax import lax
from jax.experimental import pallas as pl
from jax.experimental.pallas import tpu as pltpu

# ---- model hyperparameters (TriUnet_fuse22(num_feature=NF)) ----
NF = 4                      # num_feature
C2 = 2 * NF                 # channels after torch.cat([fuse_main, fuse_A], dim=1)
CA_RATIO = 8                # CBAM channel-attention reduction ratio
CA_HID = max(C2 // CA_RATIO, 1)
SA_K = 7                    # CBAM spatial-attention kernel size

TAPS5 = tuple((dy, dx) for dy in range(-2, 3) for dx in range(-2, 3))   # 25 taps, row-major


def _triunet_fuse22_kernel(
    H, W, PAD, Nb,
    x_ref,        # (Nb*C2, H*W)   cat([fuse_main, fuse_A], channel) for Nb images
    wbig_ref,     # (C2, 25*C2)    fused MKBlock weight (1x1 + 3x3 + 5x5 + identity)
    bcomb_ref,    # (C2, 1)        fused MKBlock bias (b1 + b3 + b5)
    wca1_ref,     # (C2, CA_HID)   CBAM channel MLP layer 1   (cin, hidden)
    wca2t_ref,    # (C2, CA_HID)   CBAM channel MLP layer 2^T (cout, hidden)
    wsa16_ref,    # (16, 7)        CBAM spatial 7x7 weights packed [mean(7)|pad|max(7)|pad] x dx
    woutt_ref,    # (NF, C2)       final 1x1 conv weight^T (cout, cin)
    bout_ref,     # (NF, 1)        final 1x1 conv bias
    o_ref,        # (Nb*NF, H*W)
    xwide_ref,    # scratch VMEM (Nb*C2, H*W + 2*PAD): lane-padded copy of x (zero halos)
    sbig_ref,     # scratch VMEM (16, H*W + 2*PAD): dy-shifted [mean|max] planes on sublanes
    patch_ref,    # scratch VMEM (25*C2, Nb*H*W): im2col patch matrix for ALL Nb images
):
    HW = H * W
    f32 = jnp.float32
    NbC2 = Nb * C2

    # ---- stage x into the lane-padded scratch; zero ONLY the halos (once per step) ----
    xwide_ref[:, 0:PAD] = jnp.zeros((NbC2, PAD), f32)
    xwide_ref[:, PAD + HW:PAD + 2 * PAD + HW - PAD + PAD] = jnp.zeros((NbC2, PAD), f32)
    xwide_ref[:, PAD:PAD + HW] = x_ref[...].astype(f32)

    # Zero the spatial-attention scratch once per step; the per-image writes below always
    # overwrite exactly the same lane ranges, so halos / pad rows stay zero for every image.
    sbig_ref[...] = jnp.zeros_like(sbig_ref)

    # ---- precompute the UNIQUE horizontal (dx-only) boundary masks; reuse across taps ----
    w_idx5 = lax.broadcasted_iota(jnp.int32, (NbC2, HW), 1) % W
    mask5 = {dx: ((w_idx5 < W - dx) if dx > 0 else (w_idx5 >= -dx))
             for dx in (-2, -1, 1, 2)}

    # ---------- MKBlock: fused 5x5 conv as ONE im2col MXU matmul over all Nb images ----------
    # Vertical (dy) boundaries are handled for free by the zero halo; only dx needs a mask.
    for t, (dy, dx) in enumerate(TAPS5):
        s = dy * W + dx
        xs = xwide_ref[:, PAD + s:PAD + s + HW]                  # (Nb*C2, HW) shifted window
        if dx != 0:
            xs = jnp.where(mask5[dx], xs, 0.0)
        for i in range(Nb):                                      # per-image column block
            patch_ref[t * C2:(t + 1) * C2, i * HW:(i + 1) * HW] = xs[i * C2:(i + 1) * C2, :]

    mk = jnp.dot(wbig_ref[...], patch_ref[...],
                 preferred_element_type=f32) + bcomb_ref[...]
    mk = jnp.maximum(mk, 0.0)                                    # (C2, Nb*HW)

    # dx-only masks for the 7x7 spatial attention (shared across images)
    w_idx7 = lax.broadcasted_iota(jnp.int32, (16, HW), 1) % W
    mask7 = {dx: ((w_idx7 < W - dx) if dx > 0 else (w_idx7 >= -dx))
             for dx in (-3, -2, -1, 1, 2, 3)}

    wca1 = wca1_ref[...]
    wca2t = wca2t_ref[...]
    wsa16 = wsa16_ref[...]
    woutt = woutt_ref[...]
    bout = bout_ref[...]

    outs = []
    for i in range(Nb):
        mk_i = mk[:, i * HW:(i + 1) * HW]                        # (C2, HW), lane-aligned slice

        # ---------- CBAM channel attention ----------
        avg_c = jnp.mean(mk_i, axis=1, keepdims=True)            # (C2, 1)  lane reduce
        max_c = jnp.max(mk_i, axis=1, keepdims=True)             # (C2, 1)

        def _mlp(v):                                             # v: (C2, 1)
            h = jnp.maximum(jnp.sum(wca1 * v, axis=0, keepdims=True), 0.0)   # (1, CA_HID)
            return jnp.sum(wca2t * h, axis=1, keepdims=True)                 # (C2, 1)

        ca = jax.nn.sigmoid(_mlp(avg_c) + _mlp(max_c))           # (C2, 1)
        x2 = mk_i * ca                                           # (C2, HW)

        # ---------- CBAM spatial attention: 7x7 conv over [mean_c, max_c] ----------
        m_plane = jnp.mean(x2, axis=0, keepdims=True)            # (1, HW) sublane reduce
        x_plane = jnp.max(x2, axis=0, keepdims=True)             # (1, HW)
        # Pack the 7 vertically shifted copies of each plane onto sublanes: row j holds the
        # plane shifted by dy = j-3 (writing at lane offset PAD - dy*W; zero halo = vertical pad).
        for j in range(SA_K):
            dy = j - 3
            off = PAD - dy * W
            sbig_ref[j:j + 1, off:off + HW] = m_plane
            sbig_ref[8 + j:8 + j + 1, off:off + HW] = x_plane

        # 7 full-occupancy FMA iterations (one per dx) + one XLU sublane reduce.
        sacc = jnp.zeros((16, HW), f32)
        for k in range(SA_K):
            dx = k - 3
            vs = sbig_ref[:, PAD + dx:PAD + dx + HW]             # (16, HW) full-sublane vregs
            if dx != 0:
                vs = jnp.where(mask7[dx], vs, 0.0)
            sacc = sacc + vs * wsa16[:, k:k + 1]
        sa = jax.nn.sigmoid(jnp.sum(sacc, axis=0, keepdims=True))   # (1, HW)
        x3 = x2 * sa                                             # (C2, HW)

        # ---------- final 1x1 conv (C2 -> NF) + residual with fuse_main ----------
        out_i = jnp.dot(woutt, x3, preferred_element_type=f32) + bout
        out_i = out_i + x_ref[i * C2:i * C2 + NF, :].astype(f32)   # fuse_main = first NF chans
        outs.append(out_i)

    # Single full-sublane, lane-dense output store (Nb*NF >= 8 -> unmasked vst).
    o_ref[...] = jnp.concatenate(outs, axis=0).astype(o_ref.dtype)


def _prep_params(p):
    """Fold MKBlock's 1x1/3x3/5x5 convs + residual into one 5x5 kernel; pre-pack weights."""
    f32 = jnp.float32
    wc = p['w5'].astype(f32)                                     # (5, 5, C2, C2) HWIO
    wc = wc.at[1:4, 1:4, :, :].add(p['w3'].astype(f32))
    wc = wc.at[2, 2, :, :].add(p['w1'].astype(f32) + jnp.eye(C2, dtype=f32))
    # w_big[cout, t*C2 + cin] with t = (dy+2)*5 + (dx+2)  (matches TAPS5 / patch rows)
    w_big = jnp.transpose(wc, (3, 0, 1, 2)).reshape(C2, len(TAPS5) * C2)
    b_comb = (p['b1'] + p['b3'] + p['b5']).reshape(C2, 1).astype(f32)
    wca1 = p['wca1'].astype(f32)                                 # (C2, CA_HID)
    wca2_t = p['wca2'].T.astype(f32)                             # (C2, CA_HID)
    # Spatial weights packed to match the (16, HW) sublane layout: rows 0..6 = mean-plane
    # weights for dy=-3..3, rows 8..14 = max-plane weights, rows 7/15 = 0; columns = dx.
    wsa = p['wsa'].astype(f32)                                   # (7, 7, 2)
    wsa16 = jnp.zeros((16, SA_K), f32)
    wsa16 = wsa16.at[0:SA_K, :].set(wsa[:, :, 0])
    wsa16 = wsa16.at[8:8 + SA_K, :].set(wsa[:, :, 1])
    wout_t = p['wout'].T.astype(f32)                             # (NF, C2)
    bout_c = p['bout'].reshape(NF, 1).astype(f32)
    return w_big, b_comb, wca1, wca2_t, wsa16, wout_t, bout_c


def _pick_nb(n):
    """Images per grid step: amortize per-step overhead, but keep >=2 grid steps when
    possible so the "parallel" batch axis can still use both TensorCores on v7x."""
    for nb in (8, 4, 2):
        if n % nb == 0 and n // nb >= 2:
            return nb
    for nb in (8, 4, 2):
        if n % nb == 0:
            return nb
    return 1


def triunet_fuse22(fuse_main_nchw, fuse_A_nchw, p, nb=None):
    """NCHW in / NCHW out; the kernel runs on the lane-dense (channels, H*W) layout."""
    N, nf, H, W = fuse_main_nchw.shape
    assert nf == NF
    HW = H * W
    PAD = 128                                                    # lane halo, >= 3*W + 3
    assert PAD >= 3 * W + 3, "lane halo too small for this spatial width"

    Nb = _pick_nb(N) if nb is None else nb
    Npad = ((N + Nb - 1) // Nb) * Nb

    x = jnp.concatenate([fuse_main_nchw, fuse_A_nchw], axis=1).astype(jnp.float32)  # (N,C2,H,W)
    if Npad != N:
        x = jnp.pad(x, ((0, Npad - N), (0, 0), (0, 0), (0, 0)))
    x = x.reshape(Npad * C2, HW)                                 # NCHW -> lane-dense (reshape only)

    w_big, b_comb, wca1, wca2_t, wsa16, wout_t, bout_c = _prep_params(p)

    def _full(arr):
        return pl.BlockSpec(arr.shape, lambda b, _n=arr.ndim: (0,) * _n)

    in_specs = [
        pl.BlockSpec((Nb * C2, HW), lambda b: (b, 0)),           # x, Nb images per step
        _full(w_big), _full(b_comb), _full(wca1), _full(wca2_t),
        _full(wsa16), _full(wout_t), _full(bout_c),
    ]

    weights_bytes = 4 * sum(a.size for a in
                            (w_big, b_comb, wca1, wca2_t, wsa16, wout_t, bout_c))
    flops_per_img = (2 * C2 * (25 * C2) * HW        # fused 5x5 conv (im2col matmul)
                     + 2 * NF * C2 * HW             # final 1x1 conv
                     + 2 * 16 * SA_K * HW)          # spatial-attention FMA
    cost = pl.CostEstimate(
        flops=Npad * flops_per_img,
        transcendentals=Npad * (HW + C2),           # spatial + channel sigmoids
        bytes_accessed=4 * (Npad * C2 * HW + Npad * NF * HW) + weights_bytes,
    )

    out = pl.pallas_call(
        functools.partial(_triunet_fuse22_kernel, H, W, PAD, Nb),
        out_shape=jax.ShapeDtypeStruct((Npad * NF, HW), jnp.float32),
        grid_spec=pltpu.PrefetchScalarGridSpec(
            num_scalar_prefetch=0,
            grid=(Npad // Nb,),
            in_specs=in_specs,
            out_specs=pl.BlockSpec((Nb * NF, HW), lambda b: (b, 0)),
            scratch_shapes=[
                pltpu.VMEM((Nb * C2, HW + 2 * PAD), jnp.float32),
                pltpu.VMEM((16, HW + 2 * PAD), jnp.float32),
                # Kept f32 to hold the 1e-3 accuracy check; bf16 here (+ bf16 w_big) is the
                # next lever if looser tolerance is acceptable (halves the im2col traffic).
                pltpu.VMEM((len(TAPS5) * C2, Nb * HW), jnp.float32),
            ]),
        compiler_params=pltpu.CompilerParams(
            dimension_semantics=("parallel",)),                  # batch axis -> both TCs on v7x
        cost_estimate=cost,
    )(x, w_big, b_comb, wca1, wca2_t, wsa16, wout_t, bout_c)

    return out.reshape(Npad, NF, H, W)[:N]                       # back to NCHW (reshape + slice)


# ---------------- pure-JAX reference (for correctness check) ----------------
def reference(fm_nchw, fa_nchw, p):
    x = jnp.transpose(jnp.concatenate([fm_nchw, fa_nchw], axis=1), (0, 2, 3, 1))
    dn = ('NHWC', 'HWIO', 'NHWC')

    def conv(v, w, pad):
        return lax.conv_general_dilated(v, w, (1, 1), [(pad, pad), (pad, pad)],
                                        dimension_numbers=dn)

    y1 = conv(x, p['w1'].reshape(1, 1, C2, C2), 0) + p['b1'].reshape(1, 1, 1, C2)
    y3 = conv(x, p['w3'], 1) + p['b3'].reshape(1, 1, 1, C2)
    y5 = conv(x, p['w5'], 2) + p['b5'].reshape(1, 1, 1, C2)
    mk = jax.nn.relu(y1 + y3 + y5 + x)

    avg_c = jnp.mean(mk, axis=(1, 2))
    max_c = jnp.max(mk, axis=(1, 2))
    mlp = lambda v: jax.nn.relu(v @ p['wca1']) @ p['wca2']
    ca = jax.nn.sigmoid(mlp(avg_c) + mlp(max_c))
    x2 = mk * ca[:, None, None, :]

    sa_in = jnp.stack([jnp.mean(x2, axis=-1), jnp.max(x2, axis=-1)], axis=-1)
    sa = jax.nn.sigmoid(conv(sa_in, p['wsa'][..., None], (SA_K - 1) // 2))
    x3 = x2 * sa

    out = conv(x3, p['wout'].reshape(1, 1, C2, NF), 0) + p['bout'].reshape(1, 1, 1, NF)
    out = out + jnp.transpose(fm_nchw, (0, 2, 3, 1))
    return jnp.transpose(out, (0, 3, 1, 2))


def init_params(key):
    ks = jax.random.split(key, 11)
    s = 0.1
    return dict(
        w1=jax.random.normal(ks[0], (C2, C2), jnp.float32) * s,
        b1=jax.random.normal(ks[1], (1, C2), jnp.float32) * s,
        w3=jax.random.normal(ks[2], (3, 3, C2, C2), jnp.float32) * s,
        b3=jax.random.normal(ks[3], (1, C2), jnp.float32) * s,
        w5=jax.random.normal(ks[4], (5, 5, C2, C2), jnp.float32) * s,
        b5=jax.random.normal(ks[5], (1, C2), jnp.float32) * s,
        wca1=jax.random.normal(ks[6], (C2, CA_HID), jnp.float32) * s,
        wca2=jax.random.normal(ks[7], (CA_HID, C2), jnp.float32) * s,
        wsa=jax.random.normal(ks[8], (SA_K, SA_K, 2), jnp.float32) * s,
        wout=jax.random.normal(ks[9], (C2, NF), jnp.float32) * s,
        bout=jax.random.normal(ks[10], (1, NF), jnp.float32) * s,
    )


if __name__ == "__main__":
    key = jax.random.PRNGKey(0)
    k1, k2, kp = jax.random.split(key, 3)
    # batch=4 so the kernel runs Nb=2 images per grid step AND keeps 2 grid steps
    # (exercises the batched path while leaving the "parallel" axis usable on v7x).
    N, H, W = 4, 16, 16
    fuse_main = jax.random.normal(k1, (N, NF, H, W), jnp.float32)
    fuse_A = jax.random.normal(k2, (N, NF, H, W), jnp.float32)
    params = init_params(kp)

    out = jax.block_until_ready(triunet_fuse22(fuse_main, fuse_A, params))
    assert out.shape == (N, NF, H, W)

    ref = reference(fuse_main, fuse_A, params)
    err = float(jnp.max(jnp.abs(out - ref)))
    if err > 1e-3:
        raise AssertionError(f"Pallas kernel mismatch vs reference: max abs err {err}")

    print("KERNEL_OK")
</pallas_src>

<mosaic_0001>
module attributes {stable_mosaic.version = 11 : i64} {
  func.func @_triunet_fuse22_kernel(%arg0: i32, %arg1: memref<16x256xf32, #tpu.memory_space<vmem>>, %arg2: memref<8x200xf32, #tpu.memory_space<vmem>>, %arg3: memref<8x1xf32, #tpu.memory_space<vmem>>, %arg4: memref<8x1xf32, #tpu.memory_space<vmem>>, %arg5: memref<8x1xf32, #tpu.memory_space<vmem>>, %arg6: memref<16x7xf32, #tpu.memory_space<vmem>>, %arg7: memref<4x8xf32, #tpu.memory_space<vmem>>, %arg8: memref<4x1xf32, #tpu.memory_space<vmem>>, %arg9: memref<8x256xf32, #tpu.memory_space<vmem>>, %arg10: memref<16x512xf32, #tpu.memory_space<vmem>>, %arg11: memref<16x512xf32, #tpu.memory_space<vmem>>, %arg12: memref<200x512xf32, #tpu.memory_space<vmem>>) attributes {dimension_semantics = [#tpu.dimension_semantics<parallel>], iteration_bounds = array<i64: 2>, scalar_prefetch = 0 : i64, scratch_operands = 3 : i64, tpu.core_type = #tpu.core_type<tc>, window_params = [{transform_indices = @transform_0, window_bounds = array<i64: 16, 256>}, {pipeline_mode = #tpu.pipeline_mode<synchronous>, transform_indices = @transform_1, window_bounds = array<i64: 8, 200>}, {pipeline_mode = #tpu.pipeline_mode<synchronous>, transform_indices = @transform_2, window_bounds = array<i64: 8, 1>}, {pipeline_mode = #tpu.pipeline_mode<synchronous>, transform_indices = @transform_3, window_bounds = array<i64: 8, 1>}, {pipeline_mode = #tpu.pipeline_mode<synchronous>, transform_indices = @transform_4, window_bounds = array<i64: 8, 1>}, {pipeline_mode = #tpu.pipeline_mode<synchronous>, transform_indices = @transform_5, window_bounds = array<i64: 16, 7>}, {pipeline_mode = #tpu.pipeline_mode<synchronous>, transform_indices = @transform_6, window_bounds = array<i64: 4, 8>}, {pipeline_mode = #tpu.pipeline_mode<synchronous>, transform_indices = @transform_7, window_bounds = array<i64: 4, 1>}, {transform_indices = @transform_8, window_bounds = array<i64: 8, 256>}]} {
    %cst = arith.constant 0.000000e+00 : f32
    %0 = vector.broadcast %cst : f32 to vector<16x128xf32>
    %c0 = arith.constant 0 : index
    %c0_0 = arith.constant 0 : index
    %1 = vector.load %arg10[%c0, %c0_0] : memref<16x512xf32, #tpu.memory_space<vmem>>, vector<16x128xf32>
    tpu.vector_store %arg10[%c0, %c0_0], %0 {strides = array<i32>} : memref<16x512xf32, #tpu.memory_space<vmem>>, vector<16x128xf32>,
    %cst_1 = arith.constant 0.000000e+00 : f32
    %2 = vector.broadcast %cst_1 : f32 to vector<16x128xf32>
    %c0_2 = arith.constant 0 : index
    %c384 = arith.constant 384 : index
    %3 = vector.load %arg10[%c0_2, %c384] : memref<16x512xf32, #tpu.memory_space<vmem>>, vector<16x128xf32>
    tpu.vector_store %arg10[%c0_2, %c384], %2 {strides = array<i32>} : memref<16x512xf32, #tpu.memory_space<vmem>>, vector<16x128xf32>,
    %c0_3 = arith.constant 0 : index
    %c0_4 = arith.constant 0 : index
    %4 = vector.load %arg1[%c0_3, %c0_4] : memref<16x256xf32, #tpu.memory_space<vmem>>, vector<16x256xf32>
    %c0_5 = arith.constant 0 : index
    %c128 = arith.constant 128 : index
    %5 = vector.load %arg10[%c0_5, %c128] : memref<16x512xf32, #tpu.memory_space<vmem>>, vector<16x256xf32>
    tpu.vector_store %arg10[%c0_5, %c128], %4 {strides = array<i32>} : memref<16x512xf32, #tpu.memory_space<vmem>>, vector<16x256xf32>,
    %cst_6 = arith.constant 0.000000e+00 : f32
    %6 = vector.broadcast %cst_6 : f32 to vector<16x512xf32>
    %c0_7 = arith.constant 0 : index
    %c0_8 = arith.constant 0 : index
    %7 = vector.load %arg11[%c0_7, %c0_8] : memref<16x512xf32, #tpu.memory_space<vmem>>, vector<16x512xf32>
    tpu.vector_store %arg11[%c0_7, %c0_8], %6 {strides = array<i32>} : memref<16x512xf32, #tpu.memory_space<vmem>>, vector<16x512xf32>,
    %8 = tpu.iota {dimensions = array<i32: 1>} : vector<16x256xi32>
    %c16_i32 = arith.constant 16 : i32
    %c0_i32 = arith.constant 0 : i32
    %9 = arith.cmpi eq, %c16_i32, %c0_i32 : i32
    %c1_i32 = arith.constant 1 : i32
    %10 = arith.select %9, %c1_i32, %c16_i32 : i32
    %11 = vector.broadcast %10 : i32 to vector<16x256xi32>
    %12 = arith.remsi %8, %11 : vector<16x256xi32>
    %c0_i32_9 = arith.constant 0 : i32
    %13 = vector.broadcast %c0_i32_9 : i32 to vector<16x256xi32>
    %14 = arith.cmpi ne, %12, %13 : vector<16x256xi32>
    %c0_i32_10 = arith.constant 0 : i32
    %15 = vector.broadcast %c0_i32_10 : i32 to vector<16x256xi32>
    %16 = arith.cmpi slt, %12, %15 : vector<16x256xi32>
    %c0_i32_11 = arith.constant 0 : i32
    %17 = arith.cmpi slt, %10, %c0_i32_11 : i32
    %18 = vector.broadcast %17 : i1 to vector<16x256xi1>
    %19 = vector.broadcast %18 : vector<16x256xi1> to vector<16x256xi1>
    %20 = arith.xori %16, %19 : vector<16x256xi1>
    %21 = arith.andi %20, %14 : vector<16x256xi1>
    %22 = vector.broadcast %10 : i32 to vector<16x256xi32>
    %23 = arith.addi %12, %22 : vector<16x256xi32>
    %24 = arith.select %21, %23, %12 : vector<16x256xi1>, vector<16x256xi32>
    %c2_i32 = arith.constant 2 : i32
    %25 = vector.broadcast %c2_i32 : i32 to vector<16x256xi32>
    %26 = arith.cmpi sge, %24, %25 : vector<16x256xi32>
    %c1_i32_12 = arith.constant 1 : i32
    %27 = vector.broadcast %c1_i32_12 : i32 to vector<16x256xi32>
    %28 = arith.cmpi sge, %24, %27 : vector<16x256xi32>
    %c15_i32 = arith.constant 15 : i32
    %29 = vector.broadcast %c15_i32 : i32 to vector<16x256xi32>
    %30 = arith.cmpi slt, %24, %29 : vector<16x256xi32>
    %c14_i32 = arith.constant 14 : i32
    %31 = vector.broadcast %c14_i32 : i32 to vector<16x256xi32>
    %32 = arith.cmpi slt, %24, %31 : vector<16x256xi32>
    %c0_13 = arith.constant 0 : index
    %c94 = arith.constant 94 : index
    %33 = vector.load %arg10[%c0_13, %c94] : memref<16x512xf32, #tpu.memory_space<vmem>>, vector<16x256xf32>
    %cst_14 = arith.constant 0.000000e+00 : f32
    %34 = vector.broadcast %cst_14 : f32 to vector<16x256xf32>
    %35 = arith.select %26, %33, %34 : vector<16x256xi1>, vector<16x256xf32>
    %36 = vector.extract_strided_slice %35 {offsets = [0, 0], sizes = [8, 256], strides = [1, 1]} : vector<16x256xf32> to vector<8x256xf32>
    %c0_15 = arith.constant 0 : index
    %c0_16 = arith.constant 0 : index
    %37 = vector.load %arg12[%c0_15, %c0_16] : memref<200x512xf32, #tpu.memory_space<vmem>>, vector<8x256xf32>
    tpu.vector_store %arg12[%c0_15, %c0_16], %36 {strides = array<i32>} : memref<200x512xf32, #tpu.memory_space<vmem>>, vector<8x256xf32>,
    %38 = vector.extract_strided_slice %35 {offsets = [8, 0], sizes = [8, 256], strides = [1, 1]} : vector<16x256xf32> to vector<8x256xf32>
    %c0_17 = arith.constant 0 : index
    %c256 = arith.constant 256 : index
    %39 = vector.load %arg12[%c0_17, %c256] : memref<200x512xf32, #tpu.memory_space<vmem>>, vector<8x256xf32>
    tpu.vector_store %arg12[%c0_17, %c256], %38 {strides = array<i32>} : memref<200x512xf32, #tpu.memory_space<vmem>>, vector<8x256xf32>,
    %c0_18 = arith.constant 0 : index
    %c95 = arith.constant 95 : index
    %40 = vector.load %arg10[%c0_18, %c95] : memref<16x512xf32, #tpu.memory_space<vmem>>, vector<16x256xf32>
    %cst_19 = arith.constant 0.000000e+00 : f32
    %41 = vector.broadcast %cst_19 : f32 to vector<16x256xf32>
    %42 = arith.select %28, %40, %41 : vector<16x256xi1>, vector<16x256xf32>
    %43 = vector.extract_strided_slice %42 {offsets = [0, 0], sizes = [8, 256], strides = [1, 1]} : vector<16x256xf32> to vector<8x256xf32>
    %c8 = arith.constant 8 : index
    %c0_20 = arith.constant 0 : index
    %44 = vector.load %arg12[%c8, %c0_20] : memref<200x512xf32, #tpu.memory_space<vmem>>, vector<8x256xf32>
    tpu.vector_store %arg12[%c8, %c0_20], %43 {strides = array<i32>} : memref<200x512xf32, #tpu.memory_space<vmem>>, vector<8x256xf32>,
    %45 = vector.extract_strided_slice %42 {offsets = [8, 0], sizes = [8, 256], strides = [1, 1]} : vector<16x256xf32> to vector<8x256xf32>
    %c8_21 = arith.constant 8 : index
    %c256_22 = arith.constant 256 : index
    %46 = vector.load %arg12[%c8_21, %c256_22] : memref<200x512xf32, #tpu.memory_space<vmem>>, vector<8x256xf32>
    tpu.vector_store %arg12[%c8_21, %c256_22], %45 {strides = array<i32>} : memref<200x512xf32, #tpu.memory_space<vmem>>, vector<8x256xf32>,
    %c0_23 = arith.constant 0 : index
    %c96 = arith.constant 96 : index
    %47 = vector.load %arg10[%c0_23, %c96] : memref<16x512xf32, #tpu.memory_space<vmem>>, vector<16x256xf32>
    %48 = vector.extract_strided_slice %47 {offsets = [0, 0], sizes = [8, 256], strides = [1, 1]} : vector<16x256xf32> to vector<8x256xf32>
    %c16 = arith.constant 16 : index
    %c0_24 = arith.constant 0 : index
    %49 = vector.load %arg12[%c16, %c0_24] : memref<200x512xf32, #tpu.memory_space<vmem>>, vector<8x256xf32>
    tpu.vector_store %arg12[%c16, %c0_24], %48 {strides = array<i32>} : memref<200x512xf32, #tpu.memory_space<vmem>>, vector<8x256xf32>,
    %50 = vector.extract_strided_slice %47 {offsets = [8, 0], sizes = [8, 256], strides = [1, 1]} : vector<16x256xf32> to vector<8x256xf32>
    %c16_25 = arith.constant 16 : index
    %c256_26 = arith.constant 256 : index
    %51 = vector.load %arg12[%c16_25, %c256_26] : memref<200x512xf32, #tpu.memory_space<vmem>>, vector<8x256xf32>
    tpu.vector_store %arg12[%c16_25, %c256_26], %50 {strides = array<i32>} : memref<200x512xf32, #tpu.memory_space<vmem>>, vector<8x256xf32>,
    %c0_27 = arith.constant 0 : index
    %c97 = arith.constant 97 : index
    %52 = vector.load %arg10[%c0_27, %c97] : memref<16x512xf32, #tpu.memory_space<vmem>>, vector<16x256xf32>
    %cst_28 = arith.constant 0.000000e+00 : f32
    %53 = vector.broadcast %cst_28 : f32 to vector<16x256xf32>
    %54 = arith.select %30, %52, %53 : vector<16x256xi1>, vector<16x256xf32>
    %55 = vector.extract_strided_slice %54 {offsets = [0, 0], sizes = [8, 256], strides = [1, 1]} : vector<16x256xf32> to vector<8x256xf32>
    %c24 = arith.constant 24 : index
    %c0_29 = arith.constant 0 : index
    %56 = vector.load %arg12[%c24, %c0_29] : memref<200x512xf32, #tpu.memory_space<vmem>>, vector<8x256xf32>
    tpu.vector_store %arg12[%c24, %c0_29], %55 {strides = array<i32>} : memref<200x512xf32, #tpu.memory_space<vmem>>, vector<8x256xf32>,
    %57 = vector.extract_strided_slice %54 {offsets = [8, 0], sizes = [8, 256], strides = [1, 1]} : vector<16x256xf32> to vector<8x256xf32>
    %c24_30 = arith.constant 24 : index
    %c256_31 = arith.constant 256 : index
    %58 = vector.load %arg12[%c24_30, %c256_31] : memref<200x512xf32, #tpu.memory_space<vmem>>, vector<8x256xf32>
    tpu.vector_store %arg12[%c24_30, %c256_31], %57 {strides = array<i32>} : memref<200x512xf32, #tpu.memory_space<vmem>>, vector<8x256xf32>,
    %c0_32 = arith.constant 0 : index
    %c98 = arith.constant 98 : index
    %59 = vector.load %arg10[%c0_32, %c98] : memref<16x512xf32, #tpu.memory_space<vmem>>, vector<16x256xf32>
    %cst_33 = arith.constant 0.000000e+00 : f32
    %60 = vector.broadcast %cst_33 : f32 to vector<16x256xf32>
    %61 = arith.select %32, %59, %60 : vector<16x256xi1>, vector<16x256xf32>
    %62 = vector.extract_strided_slice %61 {offsets = [0, 0], sizes = [8, 256], strides = [1, 1]} : vector<16x256xf32> to vector<8x256xf32>
    %c32 = arith.constant 32 : index
    %c0_34 = arith.constant 0 : index
    %63 = vector.load %arg12[%c32, %c0_34] : memref<200x512xf32, #tpu.memory_space<vmem>>, vector<8x256xf32>
    tpu.vector_store %arg12[%c32, %c0_34], %62 {strides = array<i32>} : memref<200x512xf32, #tpu.memory_space<vmem>>, vector<8x256xf32>,
    %64 = vector.extract_strided_slice %61 {offsets = [8, 0], sizes = [8, 256], strides = [1, 1]} : vector<16x256xf32> to vector<8x256xf32>
    %c32_35 = arith.constant 32 : index
    %c256_36 = arith.constant 256 : index
    %65 = vector.load %arg12[%c32_35, %c256_36] : memref<200x512xf32, #tpu.memory_space<vmem>>, vector<8x256xf32>
    tpu.vector_store %arg12[%c32_35, %c256_36], %64 {strides = array<i32>} : memref<200x512xf32, #tpu.memory_space<vmem>>, vector<8x256xf32>,
    %c0_37 = arith.constant 0 : index
    %c110 = arith.constant 110 : index
    %66 = vector.load %arg10[%c0_37, %c110] : memref<16x512xf32, #tpu.memory_space<vmem>>, vector<16x256xf32>
    %cst_38 = arith.constant 0.000000e+00 : f32
    %67 = vector.broadcast %cst_38 : f32 to vector<16x256xf32>
    %68 = arith.select %26, %66, %67 : vector<16x256xi1>, vector<16x256xf32>
    %69 = vector.extract_strided_slice %68 {offsets = [0, 0], sizes = [8, 256], strides = [1, 1]} : vector<16x256xf32> to vector<8x256xf32>
    %c40 = arith.constant 40 : index
    %c0_39 = arith.constant 0 : index
    %70 = vector.load %arg12[%c40, %c0_39] : memref<200x512xf32, #tpu.memory_space<vmem>>, vector<8x256xf32>
    tpu.vector_store %arg12[%c40, %c0_39], %69 {strides = array<i32>} : memref<200x512xf32, #tpu.memory_space<vmem>>, vector<8x256xf32>,
    %71 = vector.extract_strided_slice %68 {offsets = [8, 0], sizes = [8, 256], strides = [1, 1]} : vector<16x256xf32> to vector<8x256xf32>
    %c40_40 = arith.constant 40 : index
    %c256_41 = arith.constant 256 : index
    %72 = vector.load %arg12[%c40_40, %c256_41] : memref<200x512xf32, #tpu.memory_space<vmem>>, vector<8x256xf32>
    tpu.vector_store %arg12[%c40_40, %c256_41], %71 {strides = array<i32>} : memref<200x512xf32, #tpu.memory_space<vmem>>, vector<8x256xf32>,
    %c0_42 = arith.constant 0 : index
    %c111 = arith.constant 111 : index
    %73 = vector.load %arg10[%c0_42, %c111] : memref<16x512xf32, #tpu.memory_space<vmem>>, vector<16x256xf32>
    %cst_43 = arith.constant 0.000000e+00 : f32
    %74 = vector.broadcast %cst_43 : f32 to vector<16x256xf32>
    %75 = arith.select %28, %73, %74 : vector<16x256xi1>, vector<16x256xf32>
    %76 = vector.extract_strided_slice %75 {offsets = [0, 0], sizes = [8, 256], strides = [1, 1]} : vector<16x256xf32> to vector<8x256xf32>
    %c48 = arith.constant 48 : index
    %c0_44 = arith.constant 0 : index
    %77 = vector.load %arg12[%c48, %c0_44] : memref<200x512xf32, #tpu.memory_space<vmem>>, vector<8x256xf32>
    tpu.vector_store %arg12[%c48, %c0_44], %76 {strides = array<i32>} : memref<200x512xf32, #tpu.memory_space<vmem>>, vector<8x256xf32>,
    %78 = vector.extract_strided_slice %75 {offsets = [8, 0], sizes = [8, 256], strides = [1, 1]} : vector<16x256xf32> to vector<8x256xf32>
    %c48_45 = arith.constant 48 : index
    %c256_46 = arith.constant 256 : index
    %79 = vector.load %arg12[%c48_45, %c256_46] : memref<200x512xf32, #tpu.memory_space<vmem>>, vector<8x256xf32>
    tpu.vector_store %arg12[%c48_45, %c256_46], %78 {strides = array<i32>} : memref<200x512xf32, #tpu.memory_space<vmem>>, vector<8x256xf32>,
    %c0_47 = arith.constant 0 : index
    %c112 = arith.constant 112 : index
    %80 = vector.load %arg10[%c0_47, %c112] : memref<16x512xf32, #tpu.memory_space<vmem>>, vector<16x256xf32>
    %81 = vector.extract_strided_slice %80 {offsets = [0, 0], sizes = [8, 256], strides = [1, 1]} : vector<16x256xf32> to vector<8x256xf32>
    %c56 = arith.constant 56 : index
    %c0_48 = arith.constant 0 : index
    %82 = vector.load %arg12[%c56, %c0_48] : memref<200x512xf32, #tpu.memory_space<vmem>>, vector<8x256xf32>
    tpu.vector_store %arg12[%c56, %c0_48], %81 {strides = array<i32>} : memref<200x512xf32, #tpu.memory_space<vmem>>, vector<8x256xf32>,
    %83 = vector.extract_strided_slice %80 {offsets = [8, 0], sizes = [8, 256], strides = [1, 1]} : vector<16x256xf32> to vector<8x256xf32>
    %c56_49 = arith.constant 56 : index
    %c256_50 = arith.constant 256 : index
    %84 = vector.load %arg12[%c56_49, %c256_50] : memref<200x512xf32, #tpu.memory_space<vmem>>, vector<8x256xf32>
    tpu.vector_store %arg12[%c56_49, %c256_50], %83 {strides = array<i32>} : memref<200x512xf32, #tpu.memory_space<vmem>>, vector<8x256xf32>,
    %c0_51 = arith.constant 0 : index
    %c113 = arith.constant 113 : index
    %85 = vector.load %arg10[%c0_51, %c113] : memref<16x512xf32, #tpu.memory_space<vmem>>, vector<16x256xf32>
    %cst_52 = arith.constant 0.000000e+00 : f32
    %86 = vector.broadcast %cst_52 : f32 to vector<16x256xf32>
    %87 = arith.select %30, %85, %86 : vector<16x256xi1>, vector<16x256xf32>
    %88 = vector.extract_strided_slice %87 {offsets = [0, 0], sizes = [8, 256], strides = [1, 1]} : vector<16x256xf32> to vector<8x256xf32>
    %c64 = arith.constant 64 : index
    %c0_53 = arith.constant 0 : index
    %89 = vector.load %arg12[%c64, %c0_53] : memref<200x512xf32, #tpu.memory_space<vmem>>, vector<8x256xf32>
    tpu.vector_store %arg12[%c64, %c0_53], %88 {strides = array<i32>} : memref<200x512xf32, #tpu.memory_space<vmem>>, vector<8x256xf32>,
    %90 = vector.extract_strided_slice %87 {offsets = [8, 0], sizes = [8, 256], strides = [1, 1]} : vector<16x256xf32> to vector<8x256xf32>
    %c64_54 = arith.constant 64 : index
    %c256_55 = arith.constant 256 : index
    %91 = vector.load %arg12[%c64_54, %c256_55] : memref<200x512xf32, #tpu.memory_space<vmem>>, vector<8x256xf32>
    tpu.vector_store %arg12[%c64_54, %c256_55], %90 {strides = array<i32>} : memref<200x512xf32, #tpu.memory_space<vmem>>, vector<8x256xf32>,
    %c0_56 = arith.constant 0 : index
    %c114 = arith.constant 114 : index
    %92 = vector.load %arg10[%c0_56, %c114] : memref<16x512xf32, #tpu.memory_space<vmem>>, vector<16x256xf32>
    %cst_57 = arith.constant 0.000000e+00 : f32
    %93 = vector.broadcast %cst_57 : f32 to vector<16x256xf32>
    %94 = arith.select %32, %92, %93 : vector<16x256xi1>, vector<16x256xf32>
    %95 = vector.extract_strided_slice %94 {offsets = [0, 0], sizes = [8, 256], strides = [1, 1]} : vector<16x256xf32> to vector<8x256xf32>
    %c72 = arith.constant 72 : index
    %c0_58 = arith.constant 0 : index
    %96 = vector.load %arg12[%c72, %c0_58] : memref<200x512xf32, #tpu.memory_space<vmem>>, vector<8x256xf32>
    tpu.vector_store %arg12[%c72, %c0_58], %95 {strides = array<i32>} : memref<200x512xf32, #tpu.memory_space<vmem>>, vector<8x256xf32>,
    %97 = vector.extract_strided_slice %94 {offsets = [8, 0], sizes = [8, 256], strides = [1, 1]} : vector<16x256xf32> to vector<8x256xf32>
    %c72_59 = arith.constant 72 : index
    %c256_60 = arith.constant 256 : index
    %98 = vector.load %arg12[%c72_59, %c256_60] : memref<200x512xf32, #tpu.memory_space<vmem>>, vector<8x256xf32>
    tpu.vector_store %arg12[%c72_59, %c256_60], %97 {strides = array<i32>} : memref<200x512xf32, #tpu.memory_space<vmem>>, vector<8x256xf32>,
    %c0_61 = arith.constant 0 : index
    %c126 = arith.constant 126 : index
    %99 = vector.load %arg10[%c0_61, %c126] : memref<16x512xf32, #tpu.memory_space<vmem>>, vector<16x256xf32>
    %cst_62 = arith.constant 0.000000e+00 : f32
    %100 = vector.broadcast %cst_62 : f32 to vector<16x256xf32>
    %101 = arith.select %26, %99, %100 : vector<16x256xi1>, vector<16x256xf32>
    %102 = vector.extract_strided_slice %101 {offsets = [0, 0], sizes = [8, 256], strides = [1, 1]} : vector<16x256xf32> to vector<8x256xf32>
    %c80 = arith.constant 80 : index
    %c0_63 = arith.constant 0 : index
    %103 = vector.load %arg12[%c80, %c0_63] : memref<200x512xf32, #tpu.memory_space<vmem>>, vector<8x256xf32>
    tpu.vector_store %arg12[%c80, %c0_63], %102 {strides = array<i32>} : memref<200x512xf32, #tpu.memory_space<vmem>>, vector<8x256xf32>,
    %104 = vector.extract_strided_slice %101 {offsets = [8, 0], sizes = [8, 256], strides = [1, 1]} : vector<16x256xf32> to vector<8x256xf32>
    %c80_64 = arith.constant 80 : index
    %c256_65 = arith.constant 256 : index
    %105 = vector.load %arg12[%c80_64, %c256_65] : memref<200x512xf32, #tpu.memory_space<vmem>>, vector<8x256xf32>
    tpu.vector_store %arg12[%c80_64, %c256_65], %104 {strides = array<i32>} : memref<200x512xf32, #tpu.memory_space<vmem>>, vector<8x256xf32>,
    %c0_66 = arith.constant 0 : index
    %c127 = arith.constant 127 : index
    %106 = vector.load %arg10[%c0_66, %c127] : memref<16x512xf32, #tpu.memory_space<vmem>>, vector<16x256xf32>
    %cst_67 = arith.constant 0.000000e+00 : f32
    %107 = vector.broadcast %cst_67 : f32 to vector<16x256xf32>
    %108 = arith.select %28, %106, %107 : vector<16x256xi1>, vector<16x256xf32>
    %109 = vector.extract_strided_slice %108 {offsets = [0, 0], sizes = [8, 256], strides = [1, 1]} : vector<16x256xf32> to vector<8x256xf32>
    %c88 = arith.constant 88 : index
    %c0_68 = arith.constant 0 : index
    %110 = vector.load %arg12[%c88, %c0_68] : memref<200x512xf32, #tpu.memory_space<vmem>>, vector<8x256xf32>
    tpu.vector_store %arg12[%c88, %c0_68], %109 {strides = array<i32>} : memref<200x512xf32, #tpu.memory_space<vmem>>, vector<8x256xf32>,
    %111 = vector.extract_strided_slice %108 {offsets = [8, 0], sizes = [8, 256], strides = [1, 1]} : vector<16x256xf32> to vector<8x256xf32>
    %c88_69 = arith.constant 88 : index
    %c256_70 = arith.constant 256 : index
    %112 = vector.load %arg12[%c88_69, %c256_70] : memref<200x512xf32, #tpu.memory_space<vmem>>, vector<8x256xf32>
    tpu.vector_store %arg12[%c88_69, %c256_70], %111 {strides = array<i32>} : memref<200x512xf32, #tpu.memory_space<vmem>>, vector<8x256xf32>,
    %c0_71 = arith.constant 0 : index
    %c128_72 = arith.constant 128 : index
    %113 = vector.load %arg10[%c0_71, %c128_72] : memref<16x512xf32, #tpu.memory_space<vmem>>, vector<16x256xf32>
    %114 = vector.extract_strided_slice %113 {offsets = [0, 0], sizes = [8, 256], strides = [1, 1]} : vector<16x256xf32> to vector<8x256xf32>
    %c96_73 = arith.constant 96 : index
    %c0_74 = arith.constant 0 : index
    %115 = vector.load %arg12[%c96_73, %c0_74] : memref<200x512xf32, #tpu.memory_space<vmem>>, vector<8x256xf32>
    tpu.vector_store %arg12[%c96_73, %c0_74], %114 {strides = array<i32>} : memref<200x512xf32, #tpu.memory_space<vmem>>, vector<8x256xf32>,
    %116 = vector.extract_strided_slice %113 {offsets = [8, 0], sizes = [8, 256], strides = [1, 1]} : vector<16x256xf32> to vector<8x256xf32>
    %c96_75 = arith.constant 96 : index
    %c256_76 = arith.constant 256 : index
    %117 = vector.load %arg12[%c96_75, %c256_76] : memref<200x512xf32, #tpu.memory_space<vmem>>, vector<8x256xf32>
    tpu.vector_store %arg12[%c96_75, %c256_76], %116 {strides = array<i32>} : memref<200x512xf32, #tpu.memory_space<vmem>>, vector<8x256xf32>,
    %c0_77 = arith.constant 0 : index
    %c129 = arith.constant 129 : index
    %118 = vector.load %arg10[%c0_77, %c129] : memref<16x512xf32, #tpu.memory_space<vmem>>, vector<16x256xf32>
    %cst_78 = arith.constant 0.000000e+00 : f32
    %119 = vector.broadcast %cst_78 : f32 to vector<16x256xf32>
    %120 = arith.select %30, %118, %119 : vector<16x256xi1>, vector<16x256xf32>
    %121 = vector.extract_strided_slice %120 {offsets = [0, 0], sizes = [8, 256], strides = [1, 1]} : vector<16x256xf32> to vector<8x256xf32>
    %c104 = arith.constant 104 : index
    %c0_79 = arith.constant 0 : index
    %122 = vector.load %arg12[%c104, %c0_79] : memref<200x512xf32, #tpu.memory_space<vmem>>, vector<8x256xf32>
    tpu.vector_store %arg12[%c104, %c0_79], %121 {strides = array<i32>} : memref<200x512xf32, #tpu.memory_space<vmem>>, vector<8x256xf32>,
    %123 = vector.extract_strided_slice %120 {offsets = [8, 0], sizes = [8, 256], strides = [1, 1]} : vector<16x256xf32> to vector<8x256xf32>
    %c104_80 = arith.constant 104 : index
    %c256_81 = arith.constant 256 : index
    %124 = vector.load %arg12[%c104_80, %c256_81] : memref<200x512xf32, #tpu.memory_space<vmem>>, vector<8x256xf32>
    tpu.vector_store %arg12[%c104_80, %c256_81], %123 {strides = array<i32>} : memref<200x512xf32, #tpu.memory_space<vmem>>, vector<8x256xf32>,
    %c0_82 = arith.constant 0 : index
    %c130 = arith.constant 130 : index
    %125 = vector.load %arg10[%c0_82, %c130] : memref<16x512xf32, #tpu.memory_space<vmem>>, vector<16x256xf32>
    %cst_83 = arith.constant 0.000000e+00 : f32
    %126 = vector.broadcast %cst_83 : f32 to vector<16x256xf32>
    %127 = arith.select %32, %125, %126 : vector<16x256xi1>, vector<16x256xf32>
    %128 = vector.extract_strided_slice %127 {offsets = [0, 0], sizes = [8, 256], strides = [1, 1]} : vector<16x256xf32> to vector<8x256xf32>
    %c112_84 = arith.constant 112 : index
    %c0_85 = arith.constant 0 : index
    %129 = vector.load %arg12[%c112_84, %c0_85] : memref<200x512xf32, #tpu.memory_space<vmem>>, vector<8x256xf32>
    tpu.vector_store %arg12[%c112_84, %c0_85], %128 {strides = array<i32>} : memref<200x512xf32, #tpu.memory_space<vmem>>, vector<8x256xf32>,
    %130 = vector.extract_strided_slice %127 {offsets = [8, 0], sizes = [8, 256], strides = [1, 1]} : vector<16x256xf32> to vector<8x256xf32>
    %c112_86 = arith.constant 112 : index
    %c256_87 = arith.constant 256 : index
    %131 = vector.load %arg12[%c112_86, %c256_87] : memref<200x512xf32, #tpu.memory_space<vmem>>, vector<8x256xf32>
    tpu.vector_store %arg12[%c112_86, %c256_87], %130 {strides = array<i32>} : memref<200x512xf32, #tpu.memory_space<vmem>>, vector<8x256xf32>,
    %c0_88 = arith.constant 0 : index
    %c142 = arith.constant 142 : index
    %132 = vector.load %arg10[%c0_88, %c142] : memref<16x512xf32, #tpu.memory_space<vmem>>, vector<16x256xf32>
    %cst_89 = arith.constant 0.000000e+00 : f32
    %133 = vector.broadcast %cst_89 : f32 to vector<16x256xf32>
    %134 = arith.select %26, %132, %133 : vector<16x256xi1>, vector<16x256xf32>
    %135 = vector.extract_strided_slice %134 {offsets = [0, 0], sizes = [8, 256], strides = [1, 1]} : vector<16x256xf32> to vector<8x256xf32>
    %c120 = arith.constant 120 : index
    %c0_90 = arith.constant 0 : index
    %136 = vector.load %arg12[%c120, %c0_90] : memref<200x512xf32, #tpu.memory_space<vmem>>, vector<8x256xf32>
    tpu.vector_store %arg12[%c120, %c0_90], %135 {strides = array<i32>} : memref<200x512xf32, #tpu.memory_space<vmem>>, vector<8x256xf32>,
    %137 = vector.extract_strided_slice %134 {offsets = [8, 0], sizes = [8, 256], strides = [1, 1]} : vector<16x256xf32> to vector<8x256xf32>
    %c120_91 = arith.constant 120 : index
    %c256_92 = arith.constant 256 : index
    %138 = vector.load %arg12[%c120_91, %c256_92] : memref<200x512xf32, #tpu.memory_space<vmem>>, vector<8x256xf32>
    tpu.vector_store %arg12[%c120_91, %c256_92], %137 {strides = array<i32>} : memref<200x512xf32, #tpu.memory_space<vmem>>, vector<8x256xf32>,
    %c0_93 = arith.constant 0 : index
    %c143 = arith.constant 143 : index
    %139 = vector.load %arg10[%c0_93, %c143] : memref<16x512xf32, #tpu.memory_space<vmem>>, vector<16x256xf32>
    %cst_94 = arith.constant 0.000000e+00 : f32
    %140 = vector.broadcast %cst_94 : f32 to vector<16x256xf32>
    %141 = arith.select %28, %139, %140 : vector<16x256xi1>, vector<16x256xf32>
    %142 = vector.extract_strided_slice %141 {offsets = [0, 0], sizes = [8, 256], strides = [1, 1]} : vector<16x256xf32> to vector<8x256xf32>
    %c128_95 = arith.constant 128 : index
    %c0_96 = arith.constant 0 : index
    %143 = vector.load %arg12[%c128_95, %c0_96] : memref<200x512xf32, #tpu.memory_space<vmem>>, vector<8x256xf32>
    tpu.vector_store %arg12[%c128_95, %c0_96], %142 {strides = array<i32>} : memref<200x512xf32, #tpu.memory_space<vmem>>, vector<8x256xf32>,
    %144 = vector.extract_strided_slice %141 {offsets = [8, 0], sizes = [8, 256], strides = [1, 1]} : vector<16x256xf32> to vector<8x256xf32>
    %c128_97 = arith.constant 128 : index
    %c256_98 = arith.constant 256 : index
    %145 = vector.load %arg12[%c128_97, %c256_98] : memref<200x512xf32, #tpu.memory_space<vmem>>, vector<8x256xf32>
    tpu.vector_store %arg12[%c128_97, %c256_98], %144 {strides = array<i32>} : memref<200x512xf32, #tpu.memory_space<vmem>>, vector<8x256xf32>,
    %c0_99 = arith.constant 0 : index
    %c144 = arith.constant 144 : index
    %146 = vector.load %arg10[%c0_99, %c144] : memref<16x512xf32, #tpu.memory_space<vmem>>, vector<16x256xf32>
    %147 = vector.extract_strided_slice %146 {offsets = [0, 0], sizes = [8, 256], strides = [1, 1]} : vector<16x256xf32> to vector<8x256xf32>
    %c136 = arith.constant 136 : index
    %c0_100 = arith.constant 0 : index
    %148 = vector.load %arg12[%c136, %c0_100] : memref<200x512xf32, #tpu.memory_space<vmem>>, vector<8x256xf32>
    tpu.vector_store %arg12[%c136, %c0_100], %147 {strides = array<i32>} : memref<200x512xf32, #tpu.memory_space<vmem>>, vector<8x256xf32>,
    %149 = vector.extract_strided_slice %146 {offsets = [8, 0], sizes = [8, 256], strides = [1, 1]} : vector<16x256xf32> to vector<8x256xf32>
    %c136_101 = arith.constant 136 : index
    %c256_102 = arith.constant 256 : index
    %150 = vector.load %arg12[%c136_101, %c256_102] : memref<200x512xf32, #tpu.memory_space<vmem>>, vector<8x256xf32>
    tpu.vector_store %arg12[%c136_101, %c256_102], %149 {strides = array<i32>} : memref<200x512xf32, #tpu.memory_space<vmem>>, vector<8x256xf32>,
    %c0_103 = arith.constant 0 : index
    %c145 = arith.constant 145 : index
    %151 = vector.load %arg10[%c0_103, %c145] : memref<16x512xf32, #tpu.memory_space<vmem>>, vector<16x256xf32>
    %cst_104 = arith.constant 0.000000e+00 : f32
    %152 = vector.broadcast %cst_104 : f32 to vector<16x256xf32>
    %153 = arith.select %30, %151, %152 : vector<16x256xi1>, vector<16x256xf32>
    %154 = vector.extract_strided_slice %153 {offsets = [0, 0], sizes = [8, 256], strides = [1, 1]} : vector<16x256xf32> to vector<8x256xf32>
    %c144_105 = arith.constant 144 : index
    %c0_106 = arith.constant 0 : index
    %155 = vector.load %arg12[%c144_105, %c0_106] : memref<200x512xf32, #tpu.memory_space<vmem>>, vector<8x256xf32>
    tpu.vector_store %arg12[%c144_105, %c0_106], %154 {strides = array<i32>} : memref<200x512xf32, #tpu.memory_space<vmem>>, vector<8x256xf32>,
    %156 = vector.extract_strided_slice %153 {offsets = [8, 0], sizes = [8, 256], strides = [1, 1]} : vector<16x256xf32> to vector<8x256xf32>
    %c144_107 = arith.constant 144 : index
    %c256_108 = arith.constant 256 : index
    %157 = vector.load %arg12[%c144_107, %c256_108] : memref<200x512xf32, #tpu.memory_space<vmem>>, vector<8x256xf32>
    tpu.vector_store %arg12[%c144_107, %c256_108], %156 {strides = array<i32>} : memref<200x512xf32, #tpu.memory_space<vmem>>, vector<8x256xf32>,
    %c0_109 = arith.constant 0 : index
    %c146 = arith.constant 146 : index
    %158 = vector.load %arg10[%c0_109, %c146] : memref<16x512xf32, #tpu.memory_space<vmem>>, vector<16x256xf32>
    %cst_110 = arith.constant 0.000000e+00 : f32
    %159 = vector.broadcast %cst_110 : f32 to vector<16x256xf32>
    %160 = arith.select %32, %158, %159 : vector<16x256xi1>, vector<16x256xf32>
    %161 = vector.extract_strided_slice %160 {offsets = [0, 0], sizes = [8, 256], strides = [1, 1]} : vector<16x256xf32> to vector<8x256xf32>
    %c152 = arith.constant 152 : index
    %c0_111 = arith.constant 0 : index
    %162 = vector.load %arg12[%c152, %c0_111] : memref<200x512xf32, #tpu.memory_space<vmem>>, vector<8x256xf32>
    tpu.vector_store %arg12[%c152, %c0_111], %161 {strides = array<i32>} : memref<200x512xf32, #tpu.memory_space<vmem>>, vector<8x256xf32>,
    %163 = vector.extract_strided_slice %160 {offsets = [8, 0], sizes = [8, 256], strides = [1, 1]} : vector<16x256xf32> to vector<8x256xf32>
    %c152_112 = arith.constant 152 : index
    %c256_113 = arith.constant 256 : index
    %164 = vector.load %arg12[%c152_112, %c256_113] : memref<200x512xf32, #tpu.memory_space<vmem>>, vector<8x256xf32>
    tpu.vector_store %arg12[%c152_112, %c256_113], %163 {strides = array<i32>} : memref<200x512xf32, #tpu.memory_space<vmem>>, vector<8x256xf32>,
    %c0_114 = arith.constant 0 : index
    %c158 = arith.constant 158 : index
    %165 = vector.load %arg10[%c0_114, %c158] : memref<16x512xf32, #tpu.memory_space<vmem>>, vector<16x256xf32>
    %cst_115 = arith.constant 0.000000e+00 : f32
    %166 = vector.broadcast %cst_115 : f32 to vector<16x256xf32>
    %167 = arith.select %26, %165, %166 : vector<16x256xi1>, vector<16x256xf32>
    %168 = vector.extract_strided_slice %167 {offsets = [0, 0], sizes = [8, 256], strides = [1, 1]} : vector<16x256xf32> to vector<8x256xf32>
    %c160 = arith.constant 160 : index
    %c0_116 = arith.constant 0 : index
    %169 = vector.load %arg12[%c160, %c0_116] : memref<200x512xf32, #tpu.memory_space<vmem>>, vector<8x256xf32>
    tpu.vector_store %arg12[%c160, %c0_116], %168 {strides = array<i32>} : memref<200x512xf32, #tpu.memory_space<vmem>>, vector<8x256xf32>,
    %170 = vector.extract_strided_slice %167 {offsets = [8, 0], sizes = [8, 256], strides = [1, 1]} : vector<16x256xf32> to vector<8x256xf32>
    %c160_117 = arith.constant 160 : index
    %c256_118 = arith.constant 256 : index
    %171 = vector.load %arg12[%c160_117, %c256_118] : memref<200x512xf32, #tpu.memory_space<vmem>>, vector<8x256xf32>
    tpu.vector_store %arg12[%c160_117, %c256_118], %170 {strides = array<i32>} : memref<200x512xf32, #tpu.memory_space<vmem>>, vector<8x256xf32>,
    %c0_119 = arith.constant 0 : index
    %c159 = arith.constant 159 : index
    %172 = vector.load %arg10[%c0_119, %c159] : memref<16x512xf32, #tpu.memory_space<vmem>>, vector<16x256xf32>
    %cst_120 = arith.constant 0.000000e+00 : f32
    %173 = vector.broadcast %cst_120 : f32 to vector<16x256xf32>
    %174 = arith.select %28, %172, %173 : vector<16x256xi1>, vector<16x256xf32>
    %175 = vector.extract_strided_slice %174 {offsets = [0, 0], sizes = [8, 256], strides = [1, 1]} : vector<16x256xf32> to vector<8x256xf32>
    %c168 = arith.constant 168 : index
    %c0_121 = arith.constant 0 : index
    %176 = vector.load %arg12[%c168, %c0_121] : memref<200x512xf32, #tpu.memory_space<vmem>>, vector<8x256xf32>
    tpu.vector_store %arg12[%c168, %c0_121], %175 {strides = array<i32>} : memref<200x512xf32, #tpu.memory_space<vmem>>, vector<8x256xf32>,
    %177 = vector.extract_strided_slice %174 {offsets = [8, 0], sizes = [8, 256], strides = [1, 1]} : vector<16x256xf32> to vector<8x256xf32>
    %c168_122 = arith.constant 168 : index
    %c256_123 = arith.constant 256 : index
    %178 = vector.load %arg12[%c168_122, %c256_123] : memref<200x512xf32, #tpu.memory_space<vmem>>, vector<8x256xf32>
    tpu.vector_store %arg12[%c168_122, %c256_123], %177 {strides = array<i32>} : memref<200x512xf32, #tpu.memory_space<vmem>>, vector<8x256xf32>,
    %c0_124 = arith.constant 0 : index
    %c160_125 = arith.constant 160 : index
    %179 = vector.load %arg10[%c0_124, %c160_125] : memref<16x512xf32, #tpu.memory_space<vmem>>, vector<16x256xf32>
    %180 = vector.extract_strided_slice %179 {offsets = [0, 0], sizes = [8, 256], strides = [1, 1]} : vector<16x256xf32> to vector<8x256xf32>
    %c176 = arith.constant 176 : index
    %c0_126 = arith.constant 0 : index
    %181 = vector.load %arg12[%c176, %c0_126] : memref<200x512xf32, #tpu.memory_space<vmem>>, vector<8x256xf32>
    tpu.vector_store %arg12[%c176, %c0_126], %180 {strides = array<i32>} : memref<200x512xf32, #tpu.memory_space<vmem>>, vector<8x256xf32>,
    %182 = vector.extract_strided_slice %179 {offsets = [8, 0], sizes = [8, 256], strides = [1, 1]} : vector<16x256xf32> to vector<8x256xf32>
    %c176_127 = arith.constant 176 : index
    %c256_128 = arith.constant 256 : index
    %183 = vector.load %arg12[%c176_127, %c256_128] : memref<200x512xf32, #tpu.memory_space<vmem>>, vector<8x256xf32>
    tpu.vector_store %arg12[%c176_127, %c256_128], %182 {strides = array<i32>} : memref<200x512xf32, #tpu.memory_space<vmem>>, vector<8x256xf32>,
    %c0_129 = arith.constant 0 : index
    %c161 = arith.constant 161 : index
    %184 = vector.load %arg10[%c0_129, %c161] : memref<16x512xf32, #tpu.memory_space<vmem>>, vector<16x256xf32>
    %cst_130 = arith.constant 0.000000e+00 : f32
    %185 = vector.broadcast %cst_130 : f32 to vector<16x256xf32>
    %186 = arith.select %30, %184, %185 : vector<16x256xi1>, vector<16x256xf32>
    %187 = vector.extract_strided_slice %186 {offsets = [0, 0], sizes = [8, 256], strides = [1, 1]} : vector<16x256xf32> to vector<8x256xf32>
    %c184 = arith.constant 184 : index
    %c0_131 = arith.constant 0 : index
    %188 = vector.load %arg12[%c184, %c0_131] : memref<200x512xf32, #tpu.memory_space<vmem>>, vector<8x256xf32>
    tpu.vector_store %arg12[%c184, %c0_131], %187 {strides = array<i32>} : memref<200x512xf32, #tpu.memory_space<vmem>>, vector<8x256xf32>,
    %189 = vector.extract_strided_slice %186 {offsets = [8, 0], sizes = [8, 256], strides = [1, 1]} : vector<16x256xf32> to vector<8x256xf32>
    %c184_132 = arith.constant 184 : index
    %c256_133 = arith.constant 256 : index
    %190 = vector.load %arg12[%c184_132, %c256_133] : memref<200x512xf32, #tpu.memory_space<vmem>>, vector<8x256xf32>
    tpu.vector_store %arg12[%c184_132, %c256_133], %189 {strides = array<i32>} : memref<200x512xf32, #tpu.memory_space<vmem>>, vector<8x256xf32>,
    %c0_134 = arith.constant 0 : index
    %c162 = arith.constant 162 : index
    %191 = vector.load %arg10[%c0_134, %c162] : memref<16x512xf32, #tpu.memory_space<vmem>>, vector<16x256xf32>
    %cst_135 = arith.constant 0.000000e+00 : f32
    %192 = vector.broadcast %cst_135 : f32 to vector<16x256xf32>
    %193 = arith.select %32, %191, %192 : vector<16x256xi1>, vector<16x256xf32>
    %194 = vector.extract_strided_slice %193 {offsets = [0, 0], sizes = [8, 256], strides = [1, 1]} : vector<16x256xf32> to vector<8x256xf32>
    %c192 = arith.constant 192 : index
    %c0_136 = arith.constant 0 : index
    %195 = vector.load %arg12[%c192, %c0_136] : memref<200x512xf32, #tpu.memory_space<vmem>>, vector<8x256xf32>
    tpu.vector_store %arg12[%c192, %c0_136], %194 {strides = array<i32>} : memref<200x512xf32, #tpu.memory_space<vmem>>, vector<8x256xf32>,
    %196 = vector.extract_strided_slice %193 {offsets = [8, 0], sizes = [8, 256], strides = [1, 1]} : vector<16x256xf32> to vector<8x256xf32>
    %c192_137 = arith.constant 192 : index
    %c256_138 = arith.constant 256 : index
    %197 = vector.load %arg12[%c192_137, %c256_138] : memref<200x512xf32, #tpu.memory_space<vmem>>, vector<8x256xf32>
    tpu.vector_store %arg12[%c192_137, %c256_138], %196 {strides = array<i32>} : memref<200x512xf32, #tpu.memory_space<vmem>>, vector<8x256xf32>,
    %c0_139 = arith.constant 0 : index
    %c0_140 = arith.constant 0 : index
    %198 = vector.load %arg2[%c0_139, %c0_140] : memref<8x200xf32, #tpu.memory_space<vmem>>, vector<8x200xf32>
    %c0_141 = arith.constant 0 : index
    %c0_142 = arith.constant 0 : index
    %199 = vector.load %arg12[%c0_141, %c0_142] : memref<200x512xf32, #tpu.memory_space<vmem>>, vector<200x512xf32>
    %cst_143 = arith.constant dense<0.000000e+00> : vector<8x512xf32>
    %200 = tpu.matmul %198, %199, %cst_143 {dimension_numbers = #tpu.dot_dimension_numbers<[1], [0], [0], [1], [0, 0, 1, 1], [], []>} : vector<8x200xf32>, vector<200x512xf32>, vector<8x512xf32> -> vector<8x512xf32>
    %c0_144 = arith.constant 0 : index
    %c0_145 = arith.constant 0 : index
    %201 = vector.load %arg3[%c0_144, %c0_145] : memref<8x1xf32, #tpu.memory_space<vmem>>, vector<8x1xf32>
    %202 = vector.broadcast %201 : vector<8x1xf32> to vector<8x512xf32>
    %203 = arith.addf %200, %202 : vector<8x512xf32>
    %cst_146 = arith.constant 0.000000e+00 : f32
    %204 = vector.broadcast %cst_146 : f32 to vector<8x512xf32>
    %205 = arith.maximumf %203, %204 : vector<8x512xf32>
    %206 = tpu.iota {dimensions = array<i32: 1>} : vector<16x256xi32>
    %c16_i32_147 = arith.constant 16 : i32
    %c0_i32_148 = arith.constant 0 : i32
    %207 = arith.cmpi eq, %c16_i32_147, %c0_i32_148 : i32
    %c1_i32_149 = arith.constant 1 : i32
    %208 = arith.select %207, %c1_i32_149, %c16_i32_147 : i32
    %209 = vector.broadcast %208 : i32 to vector<16x256xi32>
    %210 = arith.remsi %206, %209 : vector<16x256xi32>
    %c0_i32_150 = arith.constant 0 : i32
    %211 = vector.broadcast %c0_i32_150 : i32 to vector<16x256xi32>
    %212 = arith.cmpi ne, %210, %211 : vector<16x256xi32>
    %c0_i32_151 = arith.constant 0 : i32
    %213 = vector.broadcast %c0_i32_151 : i32 to vector<16x256xi32>
    %214 = arith.cmpi slt, %210, %213 : vector<16x256xi32>
    %c0_i32_152 = arith.constant 0 : i32
    %215 = arith.cmpi slt, %208, %c0_i32_152 : i32
    %216 = vector.broadcast %215 : i1 to vector<16x256xi1>
    %217 = vector.broadcast %216 : vector<16x256xi1> to vector<16x256xi1>
    %218 = arith.xori %214, %217 : vector<16x256xi1>
    %219 = arith.andi %218, %212 : vector<16x256xi1>
    %220 = vector.broadcast %208 : i32 to vector<16x256xi32>
    %221 = arith.addi %210, %220 : vector<16x256xi32>
    %222 = arith.select %219, %221, %210 : vector<16x256xi1>, vector<16x256xi32>
    %c3_i32 = arith.constant 3 : i32
    %223 = vector.broadcast %c3_i32 : i32 to vector<16x256xi32>
    %224 = arith.cmpi sge, %222, %223 : vector<16x256xi32>
    %c2_i32_153 = arith.constant 2 : i32
    %225 = vector.broadcast %c2_i32_153 : i32 to vector<16x256xi32>
    %226 = arith.cmpi sge, %222, %225 : vector<16x256xi32>
    %c1_i32_154 = arith.constant 1 : i32
    %227 = vector.broadcast %c1_i32_154 : i32 to vector<16x256xi32>
    %228 = arith.cmpi sge, %222, %227 : vector<16x256xi32>
    %c15_i32_155 = arith.constant 15 : i32
    %229 = vector.broadcast %c15_i32_155 : i32 to vector<16x256xi32>
    %230 = arith.cmpi slt, %222, %229 : vector<16x256xi32>
    %c14_i32_156 = arith.constant 14 : i32
    %231 = vector.broadcast %c14_i32_156 : i32 to vector<16x256xi32>
    %232 = arith.cmpi slt, %222, %231 : vector<16x256xi32>
    %c13_i32 = arith.constant 13 : i32
    %233 = vector.broadcast %c13_i32 : i32 to vector<16x256xi32>
    %234 = arith.cmpi slt, %222, %233 : vector<16x256xi32>
    %c0_157 = arith.constant 0 : index
    %c0_158 = arith.constant 0 : index
    %235 = vector.load %arg4[%c0_157, %c0_158] : memref<8x1xf32, #tpu.memory_space<vmem>>, vector<8x1xf32>
    %c0_159 = arith.constant 0 : index
    %c0_160 = arith.constant 0 : index
    %236 = vector.load %arg5[%c0_159, %c0_160] : memref<8x1xf32, #tpu.memory_space<vmem>>, vector<8x1xf32>
    %c0_161 = arith.constant 0 : index
    %c0_162 = arith.constant 0 : index
    %237 = vector.load %arg6[%c0_161, %c0_162] : memref<16x7xf32, #tpu.memory_space<vmem>>, vector<16x7xf32>
    %c0_163 = arith.constant 0 : index
    %c0_164 = arith.constant 0 : index
    %238 = vector.load %arg7[%c0_163, %c0_164] : memref<4x8xf32, #tpu.memory_space<vmem>>, vector<4x8xf32>
    %c0_165 = arith.constant 0 : index
    %c0_166 = arith.constant 0 : index
    %239 = vector.load %arg8[%c0_165, %c0_166] : memref<4x1xf32, #tpu.memory_space<vmem>>, vector<4x1xf32>
    %240 = vector.extract_strided_slice %205 {offsets = [0, 0], sizes = [8, 256], strides = [1, 1]} : vector<8x512xf32> to vector<8x256xf32>
    %cst_167 = arith.constant dense<0.000000e+00> : vector<8xf32>
    %241 = vector.multi_reduction <add>, %240, %cst_167 [1] : vector<8x256xf32> to vector<8xf32>
    %242 = vector.shape_cast %241 : vector<8xf32> to vector<8x1xf32>
    %cst_168 = arith.constant 2.560000e+02 : f32
    %243 = vector.broadcast %cst_168 : f32 to vector<8x1xf32>
    %244 = arith.divf %242, %243 : vector<8x1xf32>
    %cst_169 = arith.constant dense<0xFF800000> : vector<8xf32>
    %245 = vector.multi_reduction <maximumf>, %240, %cst_169 [1] : vector<8x256xf32> to vector<8xf32>
    %246 = vector.shape_cast %245 : vector<8xf32> to vector<8x1xf32>
    %247 = arith.mulf %235, %244 : vector<8x1xf32>
    %cst_170 = arith.constant dense<0.000000e+00> : vector<1xf32>
    %248 = vector.multi_reduction <add>, %247, %cst_170 [0] : vector<8x1xf32> to vector<1xf32>
    %249 = vector.shape_cast %248 : vector<1xf32> to vector<1x1xf32>
    %cst_171 = arith.constant 0.000000e+00 : f32
    %250 = vector.broadcast %cst_171 : f32 to vector<1x1xf32>
    %251 = arith.maximumf %249, %250 : vector<1x1xf32>
    %252 = vector.broadcast %251 : vector<1x1xf32> to vector<8x1xf32>
    %253 = arith.mulf %236, %252 : vector<8x1xf32>
    %cst_172 = arith.constant dense<0.000000e+00> : vector<8xf32>
    %254 = vector.multi_reduction <add>, %253, %cst_172 [1] : vector<8x1xf32> to vector<8xf32>
    %255 = vector.shape_cast %254 : vector<8xf32> to vector<8x1xf32>
    %256 = arith.mulf %235, %246 : vector<8x1xf32>
    %cst_173 = arith.constant dense<0.000000e+00> : vector<1xf32>
    %257 = vector.multi_reduction <add>, %256, %cst_173 [0] : vector<8x1xf32> to vector<1xf32>
    %258 = vector.shape_cast %257 : vector<1xf32> to vector<1x1xf32>
    %cst_174 = arith.constant 0.000000e+00 : f32
    %259 = vector.broadcast %cst_174 : f32 to vector<1x1xf32>
    %260 = arith.maximumf %258, %259 : vector<1x1xf32>
    %261 = vector.broadcast %260 : vector<1x1xf32> to vector<8x1xf32>
    %262 = arith.mulf %236, %261 : vector<8x1xf32>
    %cst_175 = arith.constant dense<0.000000e+00> : vector<8xf32>
    %263 = vector.multi_reduction <add>, %262, %cst_175 [1] : vector<8x1xf32> to vector<8xf32>
    %264 = vector.shape_cast %263 : vector<8xf32> to vector<8x1xf32>
    %265 = arith.addf %255, %264 : vector<8x1xf32>
    %266 = arith.negf %265 : vector<8x1xf32>
    %267 = math.exp %266 : vector<8x1xf32>
    %cst_176 = arith.constant 1.000000e+00 : f32
    %268 = vector.broadcast %cst_176 : f32 to vector<8x1xf32>
    %269 = arith.addf %268, %267 : vector<8x1xf32>
    %270 = arith.divf %268, %269 : vector<8x1xf32>
    %271 = vector.broadcast %270 : vector<8x1xf32> to vector<8x256xf32>
    %272 = arith.mulf %240, %271 : vector<8x256xf32>
    %cst_177 = arith.constant dense<0.000000e+00> : vector<256xf32>
    %273 = vector.multi_reduction <add>, %272, %cst_177 [0] : vector<8x256xf32> to vector<256xf32>
    %274 = vector.shape_cast %273 : vector<256xf32> to vector<1x256xf32>
    %cst_178 = arith.constant 8.000000e+00 : f32
    %275 = vector.broadcast %cst_178 : f32 to vector<1x256xf32>
    %276 = arith.divf %274, %275 : vector<1x256xf32>
    %cst_179 = arith.constant dense<0xFF800000> : vector<256xf32>
    %277 = vector.multi_reduction <maximumf>, %272, %cst_179 [0] : vector<8x256xf32> to vector<256xf32>
    %278 = vector.shape_cast %277 : vector<256xf32> to vector<1x256xf32>
    %c0_180 = arith.constant 0 : index
    %c176_181 = arith.constant 176 : index
    %279 = vector.load %arg11[%c0_180, %c176_181] : memref<16x512xf32, #tpu.memory_space<vmem>>, vector<1x256xf32>
    tpu.vector_store %arg11[%c0_180, %c176_181], %276 {strides = array<i32>} : memref<16x512xf32, #tpu.memory_space<vmem>>, vector<1x256xf32>,
    %c8_182 = arith.constant 8 : index
    %c176_183 = arith.constant 176 : index
    %280 = vector.load %arg11[%c8_182, %c176_183] : memref<16x512xf32, #tpu.memory_space<vmem>>, vector<1x256xf32>
    tpu.vector_store %arg11[%c8_182, %c176_183], %278 {strides = array<i32>} : memref<16x512xf32, #tpu.memory_space<vmem>>, vector<1x256xf32>,
    %c1 = arith.constant 1 : index
    %c160_184 = arith.constant 160 : index
    %281 = vector.load %arg11[%c1, %c160_184] : memref<16x512xf32, #tpu.memory_space<vmem>>, vector<1x256xf32>
    tpu.vector_store %arg11[%c1, %c160_184], %276 {strides = array<i32>} : memref<16x512xf32, #tpu.memory_space<vmem>>, vector<1x256xf32>,
    %c9 = arith.constant 9 : index
    %c160_185 = arith.constant 160 : index
    %282 = vector.load %arg11[%c9, %c160_185] : memref<16x512xf32, #tpu.memory_space<vmem>>, vector<1x256xf32>
    tpu.vector_store %arg11[%c9, %c160_185], %278 {strides = array<i32>} : memref<16x512xf32, #tpu.memory_space<vmem>>, vector<1x256xf32>,
    %c2 = arith.constant 2 : index
    %c144_186 = arith.constant 144 : index
    %283 = vector.load %arg11[%c2, %c144_186] : memref<16x512xf32, #tpu.memory_space<vmem>>, vector<1x256xf32>
    tpu.vector_store %arg11[%c2, %c144_186], %276 {strides = array<i32>} : memref<16x512xf32, #tpu.memory_space<vmem>>, vector<1x256xf32>,
    %c10 = arith.constant 10 : index
    %c144_187 = arith.constant 144 : index
    %284 = vector.load %arg11[%c10, %c144_187] : memref<16x512xf32, #tpu.memory_space<vmem>>, vector<1x256xf32>
    tpu.vector_store %arg11[%c10, %c144_187], %278 {strides = array<i32>} : memref<16x512xf32, #tpu.memory_space<vmem>>, vector<1x256xf32>,
    %c3 = arith.constant 3 : index
    %c128_188 = arith.constant 128 : index
    %285 = vector.load %arg11[%c3, %c128_188] : memref<16x512xf32, #tpu.memory_space<vmem>>, vector<1x256xf32>
    tpu.vector_store %arg11[%c3, %c128_188], %276 {strides = array<i32>} : memref<16x512xf32, #tpu.memory_space<vmem>>, vector<1x256xf32>,
    %c11 = arith.constant 11 : index
    %c128_189 = arith.constant 128 : index
    %286 = vector.load %arg11[%c11, %c128_189] : memref<16x512xf32, #tpu.memory_space<vmem>>, vector<1x256xf32>
    tpu.vector_store %arg11[%c11, %c128_189], %278 {strides = array<i32>} : memref<16x512xf32, #tpu.memory_space<vmem>>, vector<1x256xf32>,
    %c4 = arith.constant 4 : index
    %c112_190 = arith.constant 112 : index
    %287 = vector.load %arg11[%c4, %c112_190] : memref<16x512xf32, #tpu.memory_space<vmem>>, vector<1x256xf32>
    tpu.vector_store %arg11[%c4, %c112_190], %276 {strides = array<i32>} : memref<16x512xf32, #tpu.memory_space<vmem>>, vector<1x256xf32>,
    %c12 = arith.constant 12 : index
    %c112_191 = arith.constant 112 : index
    %288 = vector.load %arg11[%c12, %c112_191] : memref<16x512xf32, #tpu.memory_space<vmem>>, vector<1x256xf32>
    tpu.vector_store %arg11[%c12, %c112_191], %278 {strides = array<i32>} : memref<16x512xf32, #tpu.memory_space<vmem>>, vector<1x256xf32>,
    %c5 = arith.constant 5 : index
    %c96_192 = arith.constant 96 : index
    %289 = vector.load %arg11[%c5, %c96_192] : memref<16x512xf32, #tpu.memory_space<vmem>>, vector<1x256xf32>
    tpu.vector_store %arg11[%c5, %c96_192], %276 {strides = array<i32>} : memref<16x512xf32, #tpu.memory_space<vmem>>, vector<1x256xf32>,
    %c13 = arith.constant 13 : index
    %c96_193 = arith.constant 96 : index
    %290 = vector.load %arg11[%c13, %c96_193] : memref<16x512xf32, #tpu.memory_space<vmem>>, vector<1x256xf32>
    tpu.vector_store %arg11[%c13, %c96_193], %278 {strides = array<i32>} : memref<16x512xf32, #tpu.memory_space<vmem>>, vector<1x256xf32>,
    %c6 = arith.constant 6 : index
    %c80_194 = arith.constant 80 : index
    %291 = vector.load %arg11[%c6, %c80_194] : memref<16x512xf32, #tpu.memory_space<vmem>>, vector<1x256xf32>
    tpu.vector_store %arg11[%c6, %c80_194], %276 {strides = array<i32>} : memref<16x512xf32, #tpu.memory_space<vmem>>, vector<1x256xf32>,
    %c14 = arith.constant 14 : index
    %c80_195 = arith.constant 80 : index
    %292 = vector.load %arg11[%c14, %c80_195] : memref<16x512xf32, #tpu.memory_space<vmem>>, vector<1x256xf32>
    tpu.vector_store %arg11[%c14, %c80_195], %278 {strides = array<i32>} : memref<16x512xf32, #tpu.memory_space<vmem>>, vector<1x256xf32>,
    %cst_196 = arith.constant 0.000000e+00 : f32
    %293 = vector.broadcast %cst_196 : f32 to vector<16x256xf32>
    %c0_197 = arith.constant 0 : index
    %c125 = arith.constant 125 : index
    %294 = vector.load %arg11[%c0_197, %c125] : memref<16x512xf32, #tpu.memory_space<vmem>>, vector<16x256xf32>
    %cst_198 = arith.constant 0.000000e+00 : f32
    %295 = vector.broadcast %cst_198 : f32 to vector<16x256xf32>
    %296 = arith.select %224, %294, %295 : vector<16x256xi1>, vector<16x256xf32>
    %297 = vector.extract_strided_slice %237 {offsets = [0, 0], sizes = [16, 1], strides = [1, 1]} : vector<16x7xf32> to vector<16x1xf32>
    %298 = vector.broadcast %297 : vector<16x1xf32> to vector<16x256xf32>
    %299 = arith.mulf %296, %298 : vector<16x256xf32>
    %300 = arith.addf %293, %299 : vector<16x256xf32>
    %c0_199 = arith.constant 0 : index
    %c126_200 = arith.constant 126 : index
    %301 = vector.load %arg11[%c0_199, %c126_200] : memref<16x512xf32, #tpu.memory_space<vmem>>, vector<16x256xf32>
    %cst_201 = arith.constant 0.000000e+00 : f32
    %302 = vector.broadcast %cst_201 : f32 to vector<16x256xf32>
    %303 = arith.select %226, %301, %302 : vector<16x256xi1>, vector<16x256xf32>
    %304 = vector.extract_strided_slice %237 {offsets = [0, 1], sizes = [16, 1], strides = [1, 1]} : vector<16x7xf32> to vector<16x1xf32>
    %305 = vector.broadcast %304 : vector<16x1xf32> to vector<16x256xf32>
    %306 = arith.mulf %303, %305 : vector<16x256xf32>
    %307 = arith.addf %300, %306 : vector<16x256xf32>
    %c0_202 = arith.constant 0 : index
    %c127_203 = arith.constant 127 : index
    %308 = vector.load %arg11[%c0_202, %c127_203] : memref<16x512xf32, #tpu.memory_space<vmem>>, vector<16x256xf32>
    %cst_204 = arith.constant 0.000000e+00 : f32
    %309 = vector.broadcast %cst_204 : f32 to vector<16x256xf32>
    %310 = arith.select %228, %308, %309 : vector<16x256xi1>, vector<16x256xf32>
    %311 = vector.extract_strided_slice %237 {offsets = [0, 2], sizes = [16, 1], strides = [1, 1]} : vector<16x7xf32> to vector<16x1xf32>
    %312 = vector.broadcast %311 : vector<16x1xf32> to vector<16x256xf32>
    %313 = arith.mulf %310, %312 : vector<16x256xf32>
    %314 = arith.addf %307, %313 : vector<16x256xf32>
    %c0_205 = arith.constant 0 : index
    %c128_206 = arith.constant 128 : index
    %315 = vector.load %arg11[%c0_205, %c128_206] : memref<16x512xf32, #tpu.memory_space<vmem>>, vector<16x256xf32>
    %316 = vector.extract_strided_slice %237 {offsets = [0, 3], sizes = [16, 1], strides = [1, 1]} : vector<16x7xf32> to vector<16x1xf32>
    %317 = vector.broadcast %316 : vector<16x1xf32> to vector<16x256xf32>
    %318 = arith.mulf %315, %317 : vector<16x256xf32>
    %319 = arith.addf %314, %318 : vector<16x256xf32>
    %c0_207 = arith.constant 0 : index
    %c129_208 = arith.constant 129 : index
    %320 = vector.load %arg11[%c0_207, %c129_208] : memref<16x512xf32, #tpu.memory_space<vmem>>, vector<16x256xf32>
    %cst_209 = arith.constant 0.000000e+00 : f32
    %321 = vector.broadcast %cst_209 : f32 to vector<16x256xf32>
    %322 = arith.select %230, %320, %321 : vector<16x256xi1>, vector<16x256xf32>
    %323 = vector.extract_strided_slice %237 {offsets = [0, 4], sizes = [16, 1], strides = [1, 1]} : vector<16x7xf32> to vector<16x1xf32>
    %324 = vector.broadcast %323 : vector<16x1xf32> to vector<16x256xf32>
    %325 = arith.mulf %322, %324 : vector<16x256xf32>
    %326 = arith.addf %319, %325 : vector<16x256xf32>
    %c0_210 = arith.constant 0 : index
    %c130_211 = arith.constant 130 : index
    %327 = vector.load %arg11[%c0_210, %c130_211] : memref<16x512xf32, #tpu.memory_space<vmem>>, vector<16x256xf32>
    %cst_212 = arith.constant 0.000000e+00 : f32
    %328 = vector.broadcast %cst_212 : f32 to vector<16x256xf32>
    %329 = arith.select %232, %327, %328 : vector<16x256xi1>, vector<16x256xf32>
    %330 = vector.extract_strided_slice %237 {offsets = [0, 5], sizes = [16, 1], strides = [1, 1]} : vector<16x7xf32> to vector<16x1xf32>
    %331 = vector.broadcast %330 : vector<16x1xf32> to vector<16x256xf32>
    %332 = arith.mulf %329, %331 : vector<16x256xf32>
    %333 = arith.addf %326, %332 : vector<16x256xf32>
    %c0_213 = arith.constant 0 : index
    %c131 = arith.constant 131 : index
    %334 = vector.load %arg11[%c0_213, %c131] : memref<16x512xf32, #tpu.memory_space<vmem>>, vector<16x256xf32>
    %cst_214 = arith.constant 0.000000e+00 : f32
    %335 = vector.broadcast %cst_214 : f32 to vector<16x256xf32>
    %336 = arith.select %234, %334, %335 : vector<16x256xi1>, vector<16x256xf32>
    %337 = vector.extract_strided_slice %237 {offsets = [0, 6], sizes = [16, 1], strides = [1, 1]} : vector<16x7xf32> to vector<16x1xf32>
    %338 = vector.broadcast %337 : vector<16x1xf32> to vector<16x256xf32>
    %339 = arith.mulf %336, %338 : vector<16x256xf32>
    %340 = arith.addf %333, %339 : vector<16x256xf32>
    %cst_215 = arith.constant dense<0.000000e+00> : vector<256xf32>
    %341 = vector.multi_reduction <add>, %340, %cst_215 [0] : vector<16x256xf32> to vector<256xf32>
    %342 = vector.shape_cast %341 : vector<256xf32> to vector<1x256xf32>
    %343 = arith.negf %342 : vector<1x256xf32>
    %344 = math.exp %343 : vector<1x256xf32>
    %cst_216 = arith.constant 1.000000e+00 : f32
    %345 = vector.broadcast %cst_216 : f32 to vector<1x256xf32>
    %346 = arith.addf %345, %344 : vector<1x256xf32>
    %347 = arith.divf %345, %346 : vector<1x256xf32>
    %348 = vector.broadcast %347 : vector<1x256xf32> to vector<8x256xf32>
    %349 = arith.mulf %272, %348 : vector<8x256xf32>
    %cst_217 = arith.constant dense<0.000000e+00> : vector<4x256xf32>
    %350 = tpu.matmul %238, %349, %cst_217 {dimension_numbers = #tpu.dot_dimension_numbers<[1], [0], [0], [1], [0, 0, 1, 1], [], []>} : vector<4x8xf32>, vector<8x256xf32>, vector<4x256xf32> -> vector<4x256xf32>
    %351 = vector.broadcast %239 : vector<4x1xf32> to vector<4x256xf32>
    %352 = arith.addf %350, %351 : vector<4x256xf32>
    %c0_218 = arith.constant 0 : index
    %c0_219 = arith.constant 0 : index
    %353 = vector.load %arg1[%c0_218, %c0_219] : memref<16x256xf32, #tpu.memory_space<vmem>>, vector<4x256xf32>
    %354 = arith.addf %352, %353 : vector<4x256xf32>
    %355 = vector.extract_strided_slice %205 {offsets = [0, 256], sizes = [8, 256], strides = [1, 1]} : vector<8x512xf32> to vector<8x256xf32>
    %cst_220 = arith.constant dense<0.000000e+00> : vector<8xf32>
    %356 = vector.multi_reduction <add>, %355, %cst_220 [1] : vector<8x256xf32> to vector<8xf32>
    %357 = vector.shape_cast %356 : vector<8xf32> to vector<8x1xf32>
    %cst_221 = arith.constant 2.560000e+02 : f32
    %358 = vector.broadcast %cst_221 : f32 to vector<8x1xf32>
    %359 = arith.divf %357, %358 : vector<8x1xf32>
    %cst_222 = arith.constant dense<0xFF800000> : vector<8xf32>
    %360 = vector.multi_reduction <maximumf>, %355, %cst_222 [1] : vector<8x256xf32> to vector<8xf32>
    %361 = vector.shape_cast %360 : vector<8xf32> to vector<8x1xf32>
    %362 = arith.mulf %235, %359 : vector<8x1xf32>
    %cst_223 = arith.constant dense<0.000000e+00> : vector<1xf32>
    %363 = vector.multi_reduction <add>, %362, %cst_223 [0] : vector<8x1xf32> to vector<1xf32>
    %364 = vector.shape_cast %363 : vector<1xf32> to vector<1x1xf32>
    %cst_224 = arith.constant 0.000000e+00 : f32
    %365 = vector.broadcast %cst_224 : f32 to vector<1x1xf32>
    %366 = arith.maximumf %364, %365 : vector<1x1xf32>
    %367 = vector.broadcast %366 : vector<1x1xf32> to vector<8x1xf32>
    %368 = arith.mulf %236, %367 : vector<8x1xf32>
    %cst_225 = arith.constant dense<0.000000e+00> : vector<8xf32>
    %369 = vector.multi_reduction <add>, %368, %cst_225 [1] : vector<8x1xf32> to vector<8xf32>
    %370 = vector.shape_cast %369 : vector<8xf32> to vector<8x1xf32>
    %371 = arith.mulf %235, %361 : vector<8x1xf32>
    %cst_226 = arith.constant dense<0.000000e+00> : vector<1xf32>
    %372 = vector.multi_reduction <add>, %371, %cst_226 [0] : vector<8x1xf32> to vector<1xf32>
    %373 = vector.shape_cast %372 : vector<1xf32> to vector<1x1xf32>
    %cst_227 = arith.constant 0.000000e+00 : f32
    %374 = vector.broadcast %cst_227 : f32 to vector<1x1xf32>
    %375 = arith.maximumf %373, %374 : vector<1x1xf32>
    %376 = vector.broadcast %375 : vector<1x1xf32> to vector<8x1xf32>
    %377 = arith.mulf %236, %376 : vector<8x1xf32>
    %cst_228 = arith.constant dense<0.000000e+00> : vector<8xf32>
    %378 = vector.multi_reduction <add>, %377, %cst_228 [1] : vector<8x1xf32> to vector<8xf32>
    %379 = vector.shape_cast %378 : vector<8xf32> to vector<8x1xf32>
    %380 = arith.addf %370, %379 : vector<8x1xf32>
    %381 = arith.negf %380 : vector<8x1xf32>
    %382 = math.exp %381 : vector<8x1xf32>
    %cst_229 = arith.constant 1.000000e+00 : f32
    %383 = vector.broadcast %cst_229 : f32 to vector<8x1xf32>
    %384 = arith.addf %383, %382 : vector<8x1xf32>
    %385 = arith.divf %383, %384 : vector<8x1xf32>
    %386 = vector.broadcast %385 : vector<8x1xf32> to vector<8x256xf32>
    %387 = arith.mulf %355, %386 : vector<8x256xf32>
    %cst_230 = arith.constant dense<0.000000e+00> : vector<256xf32>
    %388 = vector.multi_reduction <add>, %387, %cst_230 [0] : vector<8x256xf32> to vector<256xf32>
    %389 = vector.shape_cast %388 : vector<256xf32> to vector<1x256xf32>
    %cst_231 = arith.constant 8.000000e+00 : f32
    %390 = vector.broadcast %cst_231 : f32 to vector<1x256xf32>
    %391 = arith.divf %389, %390 : vector<1x256xf32>
    %cst_232 = arith.constant dense<0xFF800000> : vector<256xf32>
    %392 = vector.multi_reduction <maximumf>, %387, %cst_232 [0] : vector<8x256xf32> to vector<256xf32>
    %393 = vector.shape_cast %392 : vector<256xf32> to vector<1x256xf32>
    %c0_233 = arith.constant 0 : index
    %c176_234 = arith.constant 176 : index
    %394 = vector.load %arg11[%c0_233, %c176_234] : memref<16x512xf32, #tpu.memory_space<vmem>>, vector<1x256xf32>
    tpu.vector_store %arg11[%c0_233, %c176_234], %391 {strides = array<i32>} : memref<16x512xf32, #tpu.memory_space<vmem>>, vector<1x256xf32>,
    %c8_235 = arith.constant 8 : index
    %c176_236 = arith.constant 176 : index
    %395 = vector.load %arg11[%c8_235, %c176_236] : memref<16x512xf32, #tpu.memory_space<vmem>>, vector<1x256xf32>
    tpu.vector_store %arg11[%c8_235, %c176_236], %393 {strides = array<i32>} : memref<16x512xf32, #tpu.memory_space<vmem>>, vector<1x256xf32>,
    %c1_237 = arith.constant 1 : index
    %c160_238 = arith.constant 160 : index
    %396 = vector.load %arg11[%c1_237, %c160_238] : memref<16x512xf32, #tpu.memory_space<vmem>>, vector<1x256xf32>
    tpu.vector_store %arg11[%c1_237, %c160_238], %391 {strides = array<i32>} : memref<16x512xf32, #tpu.memory_space<vmem>>, vector<1x256xf32>,
    %c9_239 = arith.constant 9 : index
    %c160_240 = arith.constant 160 : index
    %397 = vector.load %arg11[%c9_239, %c160_240] : memref<16x512xf32, #tpu.memory_space<vmem>>, vector<1x256xf32>
    tpu.vector_store %arg11[%c9_239, %c160_240], %393 {strides = array<i32>} : memref<16x512xf32, #tpu.memory_space<vmem>>, vector<1x256xf32>,
    %c2_241 = arith.constant 2 : index
    %c144_242 = arith.constant 144 : index
    %398 = vector.load %arg11[%c2_241, %c144_242] : memref<16x512xf32, #tpu.memory_space<vmem>>, vector<1x256xf32>
    tpu.vector_store %arg11[%c2_241, %c144_242], %391 {strides = array<i32>} : memref<16x512xf32, #tpu.memory_space<vmem>>, vector<1x256xf32>,
    %c10_243 = arith.constant 10 : index
    %c144_244 = arith.constant 144 : index
    %399 = vector.load %arg11[%c10_243, %c144_244] : memref<16x512xf32, #tpu.memory_space<vmem>>, vector<1x256xf32>
    tpu.vector_store %arg11[%c10_243, %c144_244], %393 {strides = array<i32>} : memref<16x512xf32, #tpu.memory_space<vmem>>, vector<1x256xf32>,
    %c3_245 = arith.constant 3 : index
    %c128_246 = arith.constant 128 : index
    %400 = vector.load %arg11[%c3_245, %c128_246] : memref<16x512xf32, #tpu.memory_space<vmem>>, vector<1x256xf32>
    tpu.vector_store %arg11[%c3_245, %c128_246], %391 {strides = array<i32>} : memref<16x512xf32, #tpu.memory_space<vmem>>, vector<1x256xf32>,
    %c11_247 = arith.constant 11 : index
    %c128_248 = arith.constant 128 : index
    %401 = vector.load %arg11[%c11_247, %c128_248] : memref<16x512xf32, #tpu.memory_space<vmem>>, vector<1x256xf32>
    tpu.vector_store %arg11[%c11_247, %c128_248], %393 {strides = array<i32>} : memref<16x512xf32, #tpu.memory_space<vmem>>, vector<1x256xf32>,
    %c4_249 = arith.constant 4 : index
    %c112_250 = arith.constant 112 : index
    %402 = vector.load %arg11[%c4_249, %c112_250] : memref<16x512xf32, #tpu.memory_space<vmem>>, vector<1x256xf32>
    tpu.vector_store %arg11[%c4_249, %c112_250], %391 {strides = array<i32>} : memref<16x512xf32, #tpu.memory_space<vmem>>, vector<1x256xf32>,
    %c12_251 = arith.constant 12 : index
    %c112_252 = arith.constant 112 : index
    %403 = vector.load %arg11[%c12_251, %c112_252] : memref<16x512xf32, #tpu.memory_space<vmem>>, vector<1x256xf32>
    tpu.vector_store %arg11[%c12_251, %c112_252], %393 {strides = array<i32>} : memref<16x512xf32, #tpu.memory_space<vmem>>, vector<1x256xf32>,
    %c5_253 = arith.constant 5 : index
    %c96_254 = arith.constant 96 : index
    %404 = vector.load %arg11[%c5_253, %c96_254] : memref<16x512xf32, #tpu.memory_space<vmem>>, vector<1x256xf32>
    tpu.vector_store %arg11[%c5_253, %c96_254], %391 {strides = array<i32>} : memref<16x512xf32, #tpu.memory_space<vmem>>, vector<1x256xf32>,
    %c13_255 = arith.constant 13 : index
    %c96_256 = arith.constant 96 : index
    %405 = vector.load %arg11[%c13_255, %c96_256] : memref<16x512xf32, #tpu.memory_space<vmem>>, vector<1x256xf32>
    tpu.vector_store %arg11[%c13_255, %c96_256], %393 {strides = array<i32>} : memref<16x512xf32, #tpu.memory_space<vmem>>, vector<1x256xf32>,
    %c6_257 = arith.constant 6 : index
    %c80_258 = arith.constant 80 : index
    %406 = vector.load %arg11[%c6_257, %c80_258] : memref<16x512xf32, #tpu.memory_space<vmem>>, vector<1x256xf32>
    tpu.vector_store %arg11[%c6_257, %c80_258], %391 {strides = array<i32>} : memref<16x512xf32, #tpu.memory_space<vmem>>, vector<1x256xf32>,
    %c14_259 = arith.constant 14 : index
    %c80_260 = arith.constant 80 : index
    %407 = vector.load %arg11[%c14_259, %c80_260] : memref<16x512xf32, #tpu.memory_space<vmem>>, vector<1x256xf32>
    tpu.vector_store %arg11[%c14_259, %c80_260], %393 {strides = array<i32>} : memref<16x512xf32, #tpu.memory_space<vmem>>, vector<1x256xf32>,
    %cst_261 = arith.constant 0.000000e+00 : f32
    %408 = vector.broadcast %cst_261 : f32 to vector<16x256xf32>
    %c0_262 = arith.constant 0 : index
    %c125_263 = arith.constant 125 : index
    %409 = vector.load %arg11[%c0_262, %c125_263] : memref<16x512xf32, #tpu.memory_space<vmem>>, vector<16x256xf32>
    %cst_264 = arith.constant 0.000000e+00 : f32
    %410 = vector.broadcast %cst_264 : f32 to vector<16x256xf32>
    %411 = arith.select %224, %409, %410 : vector<16x256xi1>, vector<16x256xf32>
    %412 = vector.extract_strided_slice %237 {offsets = [0, 0], sizes = [16, 1], strides = [1, 1]} : vector<16x7xf32> to vector<16x1xf32>
    %413 = vector.broadcast %412 : vector<16x1xf32> to vector<16x256xf32>
    %414 = arith.mulf %411, %413 : vector<16x256xf32>
    %415 = arith.addf %408, %414 : vector<16x256xf32>
    %c0_265 = arith.constant 0 : index
    %c126_266 = arith.constant 126 : index
    %416 = vector.load %arg11[%c0_265, %c126_266] : memref<16x512xf32, #tpu.memory_space<vmem>>, vector<16x256xf32>
    %cst_267 = arith.constant 0.000000e+00 : f32
    %417 = vector.broadcast %cst_267 : f32 to vector<16x256xf32>
    %418 = arith.select %226, %416, %417 : vector<16x256xi1>, vector<16x256xf32>
    %419 = vector.extract_strided_slice %237 {offsets = [0, 1], sizes = [16, 1], strides = [1, 1]} : vector<16x7xf32> to vector<16x1xf32>
    %420 = vector.broadcast %419 : vector<16x1xf32> to vector<16x256xf32>
    %421 = arith.mulf %418, %420 : vector<16x256xf32>
    %422 = arith.addf %415, %421 : vector<16x256xf32>
    %c0_268 = arith.constant 0 : index
    %c127_269 = arith.constant 127 : index
    %423 = vector.load %arg11[%c0_268, %c127_269] : memref<16x512xf32, #tpu.memory_space<vmem>>, vector<16x256xf32>
    %cst_270 = arith.constant 0.000000e+00 : f32
    %424 = vector.broadcast %cst_270 : f32 to vector<16x256xf32>
    %425 = arith.select %228, %423, %424 : vector<16x256xi1>, vector<16x256xf32>
    %426 = vector.extract_strided_slice %237 {offsets = [0, 2], sizes = [16, 1], strides = [1, 1]} : vector<16x7xf32> to vector<16x1xf32>
    %427 = vector.broadcast %426 : vector<16x1xf32> to vector<16x256xf32>
    %428 = arith.mulf %425, %427 : vector<16x256xf32>
    %429 = arith.addf %422, %428 : vector<16x256xf32>
    %c0_271 = arith.constant 0 : index
    %c128_272 = arith.constant 128 : index
    %430 = vector.load %arg11[%c0_271, %c128_272] : memref<16x512xf32, #tpu.memory_space<vmem>>, vector<16x256xf32>
    %431 = vector.extract_strided_slice %237 {offsets = [0, 3], sizes = [16, 1], strides = [1, 1]} : vector<16x7xf32> to vector<16x1xf32>
    %432 = vector.broadcast %431 : vector<16x1xf32> to vector<16x256xf32>
    %433 = arith.mulf %430, %432 : vector<16x256xf32>
    %434 = arith.addf %429, %433 : vector<16x256xf32>
    %c0_273 = arith.constant 0 : index
    %c129_274 = arith.constant 129 : index
    %435 = vector.load %arg11[%c0_273, %c129_274] : memref<16x512xf32, #tpu.memory_space<vmem>>, vector<16x256xf32>
    %cst_275 = arith.constant 0.000000e+00 : f32
    %436 = vector.broadcast %cst_275 : f32 to vector<16x256xf32>
    %437 = arith.select %230, %435, %436 : vector<16x256xi1>, vector<16x256xf32>
    %438 = vector.extract_strided_slice %237 {offsets = [0, 4], sizes = [16, 1], strides = [1, 1]} : vector<16x7xf32> to vector<16x1xf32>
    %439 = vector.broadcast %438 : vector<16x1xf32> to vector<16x256xf32>
    %440 = arith.mulf %437, %439 : vector<16x256xf32>
    %441 = arith.addf %434, %440 : vector<16x256xf32>
    %c0_276 = arith.constant 0 : index
    %c130_277 = arith.constant 130 : index
    %442 = vector.load %arg11[%c0_276, %c130_277] : memref<16x512xf32, #tpu.memory_space<vmem>>, vector<16x256xf32>
    %cst_278 = arith.constant 0.000000e+00 : f32
    %443 = vector.broadcast %cst_278 : f32 to vector<16x256xf32>
    %444 = arith.select %232, %442, %443 : vector<16x256xi1>, vector<16x256xf32>
    %445 = vector.extract_strided_slice %237 {offsets = [0, 5], sizes = [16, 1], strides = [1, 1]} : vector<16x7xf32> to vector<16x1xf32>
    %446 = vector.broadcast %445 : vector<16x1xf32> to vector<16x256xf32>
    %447 = arith.mulf %444, %446 : vector<16x256xf32>
    %448 = arith.addf %441, %447 : vector<16x256xf32>
    %c0_279 = arith.constant 0 : index
    %c131_280 = arith.constant 131 : index
    %449 = vector.load %arg11[%c0_279, %c131_280] : memref<16x512xf32, #tpu.memory_space<vmem>>, vector<16x256xf32>
    %cst_281 = arith.constant 0.000000e+00 : f32
    %450 = vector.broadcast %cst_281 : f32 to vector<16x256xf32>
    %451 = arith.select %234, %449, %450 : vector<16x256xi1>, vector<16x256xf32>
    %452 = vector.extract_strided_slice %237 {offsets = [0, 6], sizes = [16, 1], strides = [1, 1]} : vector<16x7xf32> to vector<16x1xf32>
    %453 = vector.broadcast %452 : vector<16x1xf32> to vector<16x256xf32>
    %454 = arith.mulf %451, %453 : vector<16x256xf32>
    %455 = arith.addf %448, %454 : vector<16x256xf32>
    %cst_282 = arith.constant dense<0.000000e+00> : vector<256xf32>
    %456 = vector.multi_reduction <add>, %455, %cst_282 [0] : vector<16x256xf32> to vector<256xf32>
    %457 = vector.shape_cast %456 : vector<256xf32> to vector<1x256xf32>
    %458 = arith.negf %457 : vector<1x256xf32>
    %459 = math.exp %458 : vector<1x256xf32>
    %cst_283 = arith.constant 1.000000e+00 : f32
    %460 = vector.broadcast %cst_283 : f32 to vector<1x256xf32>
    %461 = arith.addf %460, %459 : vector<1x256xf32>
    %462 = arith.divf %460, %461 : vector<1x256xf32>
    %463 = vector.broadcast %462 : vector<1x256xf32> to vector<8x256xf32>
    %464 = arith.mulf %387, %463 : vector<8x256xf32>
    %cst_284 = arith.constant dense<0.000000e+00> : vector<4x256xf32>
    %465 = tpu.matmul %238, %464, %cst_284 {dimension_numbers = #tpu.dot_dimension_numbers<[1], [0], [0], [1], [0, 0, 1, 1], [], []>} : vector<4x8xf32>, vector<8x256xf32>, vector<4x256xf32> -> vector<4x256xf32>
    %466 = vector.broadcast %239 : vector<4x1xf32> to vector<4x256xf32>
    %467 = arith.addf %465, %466 : vector<4x256xf32>
    %c8_285 = arith.constant 8 : index
    %c0_286 = arith.constant 0 : index
    %468 = vector.load %arg1[%c8_285, %c0_286] : memref<16x256xf32, #tpu.memory_space<vmem>>, vector<4x256xf32>
    %469 = arith.addf %467, %468 : vector<4x256xf32>
    %470 = tpu.concatenate %354, %469 in 0 : vector<4x256xf32>, vector<4x256xf32> -> vector<8x256xf32>
    %c0_287 = arith.constant 0 : index
    %c0_288 = arith.constant 0 : index
    %471 = vector.load %arg9[%c0_287, %c0_288] : memref<8x256xf32, #tpu.memory_space<vmem>>, vector<8x256xf32>
    tpu.vector_store %arg9[%c0_287, %c0_288], %470 {strides = array<i32>} : memref<8x256xf32, #tpu.memory_space<vmem>>, vector<8x256xf32>,
    return
  }
  func.func @transform_0(%arg0: i32) -> (i32, i32) {
    %c0_i32 = arith.constant 0 : i32
    %c0_i32_0 = arith.constant 0 : i32
    return %arg0, %c0_i32 : i32, i32
  }
  func.func @transform_1(%arg0: i32) -> (i32, i32) {
    %c0_i32 = arith.constant 0 : i32
    %c0_i32_0 = arith.constant 0 : i32
    %c0_i32_1 = arith.constant 0 : i32
    return %c0_i32, %c0_i32_0 : i32, i32
  }
  func.func @transform_2(%arg0: i32) -> (i32, i32) {
    %c0_i32 = arith.constant 0 : i32
    %c0_i32_0 = arith.constant 0 : i32
    %c0_i32_1 = arith.constant 0 : i32
    return %c0_i32, %c0_i32_0 : i32, i32
  }
  func.func @transform_3(%arg0: i32) -> (i32, i32) {
    %c0_i32 = arith.constant 0 : i32
    %c0_i32_0 = arith.constant 0 : i32
    %c0_i32_1 = arith.constant 0 : i32
    return %c0_i32, %c0_i32_0 : i32, i32
  }
  func.func @transform_4(%arg0: i32) -> (i32, i32) {
    %c0_i32 = arith.constant 0 : i32
    %c0_i32_0 = arith.constant 0 : i32
    %c0_i32_1 = arith.constant 0 : i32
    return %c0_i32, %c0_i32_0 : i32, i32
  }
  func.func @transform_5(%arg0: i32) -> (i32, i32) {
    %c0_i32 = arith.constant 0 : i32
    %c0_i32_0 = arith.constant 0 : i32
    %c0_i32_1 = arith.constant 0 : i32
    return %c0_i32, %c0_i32_0 : i32, i32
  }
  func.func @transform_6(%arg0: i32) -> (i32, i32) {
    %c0_i32 = arith.constant 0 : i32
    %c0_i32_0 = arith.constant 0 : i32
    %c0_i32_1 = arith.constant 0 : i32
    return %c0_i32, %c0_i32_0 : i32, i32
  }
  func.func @transform_7(%arg0: i32) -> (i32, i32) {
    %c0_i32 = arith.constant 0 : i32
    %c0_i32_0 = arith.constant 0 : i32
    %c0_i32_1 = arith.constant 0 : i32
    return %c0_i32, %c0_i32_0 : i32, i32
  }
  func.func @transform_8(%arg0: i32) -> (i32, i32) {
    %c0_i32 = arith.constant 0 : i32
    %c0_i32_0 = arith.constant 0 : i32
    return %arg0, %c0_i32 : i32, i32
  }
}

</mosaic_0001>

<llo_original>
// kernel: tpu_custom_call.1
$region0: #{tpu_custom_call.1}
  #allocation0 [shape = 'u32[]', space=smem, size = 0x4, offset = 0x4, fixed_abs, tag = 'smem constant byte address 0x4 - core index']
  #allocation1 [shape = 'u32[72,128]{1,0:T(1,128)}', space=vmem, size = 0x9000, scoped, tag = 'internal scratch']
  #allocation2 [shape = 'f32[16,512]{1,0:T(8,128)}', space=vmem, size = 0x8000, scoped, tag = 'scratch operand']
  #allocation3 [shape = 'f32[16,512]{1,0:T(8,128)}', space=vmem, size = 0x8000, scoped, tag = 'scratch operand']
  #allocation4 [shape = 'f32[200,512]{1,0:T(8,128)}', space=vmem, size = 0x64000, scoped, tag = 'scratch operand']
  %s0 = inlined_call_operand.hbm [shape: f32[32,256], index: 0, kind: input, shape index: {}]
  %s1 = inlined_call_operand.vmem [shape: f32[8,200], index: 1, kind: input, shape index: {}]
  %s2 = inlined_call_operand.vmem [shape: f32[8,1], index: 2, kind: input, shape index: {}]
  %s3 = inlined_call_operand.vmem [shape: f32[8,1], index: 3, kind: input, shape index: {}]
  %s4 = inlined_call_operand.vmem [shape: f32[8,1], index: 4, kind: input, shape index: {}]
  %s5 = inlined_call_operand.vmem [shape: f32[16,7], index: 5, kind: input, shape index: {}]
  %s6 = inlined_call_operand.vmem [shape: f32[4,8], index: 6, kind: input, shape index: {}]
  %s7 = inlined_call_operand.vmem [shape: f32[4,1], index: 7, kind: input, shape index: {}]
  %s8 = inlined_call_operand.hbm [shape: f32[16,256], index: 8, kind: output, shape index: {}]
  %s9 = sld [smem:[#allocation0]]
  $region69: #{tpu_custom_call.1} parent=0
    _
  %s11 = ssub.s32 1, %s9
  %s12 = scalar_select 0, %s11, %s9
  $region1: #{tpu_custom_call.1} parent=0
    #allocation5 [shape = 'u8[32768]{0}', space=vmem, size = 0x8000, scoped, tag = 'input window, operand 0']
    #allocation6 [shape = 's32[2]{0}', space=sflag, size = 0x8, scoped, tag = 'scoped memory for tpu_custom_call.1']
    #allocation7 [shape = 's32[2]{0}', space=sflag, size = 0x8, scoped, tag = 'scoped memory for tpu_custom_call.1']
    #allocation8 [shape = 'u8[16384]{0}', space=vmem, size = 0x4000, scoped, tag = 'output window, operand 0']
    %13 = vsyncpa [#allocation6], 0
    %s14 = scalar_lea.sflag [#allocation6], 1
    %15 = vsyncpa %s14, 0
    %16 = vsyncpa [#allocation7], 0
    %s17 = scalar_lea.sflag [#allocation7], 1
    %18 = vsyncpa %s17, 0
    loop: start=0, step=1, limit=4
    $region2: #{tpu_custom_call.1} parent=1 // loop_pre_header
      _
    $region3: #{tpu_custom_call.1} parent=1 // loop_header
      %s20 = sphi 0, %s24
      %p21 = scmp.ge.s32.totalorder %s20, 4
      %s30 = sphi 0, %s32
      %s33 = sphi 0, %s30
      %s34 = sphi 0, %s33
      %s50 = sphi 0, %s34
      %s54 = sphi 0, %s54
      %s56 = sphi 0, %s54
      %s57 = sphi 0, %s56
      %s71 = sphi 0, %s57
      %s75 = sphi 0, %s75
      %s77 = sphi 0, %s75
      %s78 = sphi 0, %s77
      %s92 = sphi 0, %s78
      %s96 = sphi 0, %s96
      %s98 = sphi 0, %s96
      %s99 = sphi 0, %s98
      %s113 = sphi 0, %s99
      %s117 = sphi 0, %s117
      %s119 = sphi 0, %s117
      %s120 = sphi 0, %s119
      %s134 = sphi 0, %s120
      %s138 = sphi 0, %s138
      %s140 = sphi 0, %s138
      %s141 = sphi 0, %s140
      %s155 = sphi 0, %s141
      %s159 = sphi 0, %s159
      %s161 = sphi 0, %s159
      %s162 = sphi 0, %s161
      %s176 = sphi 0, %s162
      %s180 = sphi 0, %s180
      %s182 = sphi 0, %s180
      %s183 = sphi 0, %s182
      %s197 = sphi 0, %s183
      %s203 = sphi 0, %s205
      %s206 = sphi 0, %s203
      %s207 = sphi 0, %s206
      %s223 = sphi 0, %s207
    $region4: #{tpu_custom_call.1} parent=1 // loop_header_branch
      %23 = sbr.rel (%p21) target = $region8
    $region5: #{tpu_custom_call.1} parent=1 // loop_body
      %s25 = ssub.s32 %s20, 1
      %s26 = ssub.s32 %s20, 2
      %s27 = sadd.s32 %s20, 1
      %s28 = ssub.s32 %s20, %s27
      %p29 = scmp.eq.s32.totalorder %s28, 0
      %s31 = sadd.s32 %s30, 1
      %s32 = scalar_select %p29, %s30, %s31
      %p35 = pneg %p29
      %p36 = scmp.eq.s32.totalorder %s20, 1
      %p37 = por %p35, %p36
      %p38 = scmp.ne.s32.totalorder %s30, %s33
      %p39 = scmp.eq.s32.totalorder %s20, 0
      %p40 = por %p38, %p39
      %p41 = scmp.ne.s32.totalorder %s30, %s33
      %p42 = scmp.eq.s32.totalorder %s25, 1
      %p43 = por %p41, %p42
      %p44 = scmp.ne.s32.totalorder %s33, %s34
      %p45 = scmp.eq.s32.totalorder %s25, 0
      %p46 = por %p44, %p45
      %p47 = scmp.ne.s32.totalorder %s33, %s34
      %p48 = scmp.eq.s32.totalorder %s26, 1
      %p49 = por %p47, %p48
      %p51 = scmp.ne.s32.totalorder %s34, %s50
      %p52 = scmp.eq.s32.totalorder %s26, 0
      %p53 = por %p51, %p52
      %s55 = sadd.s32 %s54, 1
      %p58 = scmp.eq.s32.totalorder %s20, 1
      %p59 = scmp.ne.s32.totalorder %s54, %s56
      %p60 = scmp.eq.s32.totalorder %s20, 0
      %p61 = por %p59, %p60
      %p62 = scmp.ne.s32.totalorder %s54, %s56
      %p63 = scmp.eq.s32.totalorder %s25, 1
      %p64 = por %p62, %p63
      %p65 = scmp.ne.s32.totalorder %s56, %s57
      %p66 = scmp.eq.s32.totalorder %s25, 0
      %p67 = por %p65, %p66
      %p68 = scmp.ne.s32.totalorder %s56, %s57
      %p69 = scmp.eq.s32.totalorder %s26, 1
      %p70 = por %p68, %p69
      %p72 = scmp.ne.s32.totalorder %s57, %s71
      %p73 = scmp.eq.s32.totalorder %s26, 0
      %p74 = por %p72, %p73
      %s76 = sadd.s32 %s75, 1
      %p79 = scmp.eq.s32.totalorder %s20, 1
      %p80 = scmp.ne.s32.totalorder %s75, %s77
      %p81 = scmp.eq.s32.totalorder %s20, 0
      %p82 = por %p80, %p81
      %p83 = scmp.ne.s32.totalorder %s75, %s77
      %p84 = scmp.eq.s32.totalorder %s25, 1
      %p85 = por %p83, %p84
      %p86 = scmp.ne.s32.totalorder %s77, %s78
      %p87 = scmp.eq.s32.totalorder %s25, 0
      %p88 = por %p86, %p87
      %p89 = scmp.ne.s32.totalorder %s77, %s78
      %p90 = scmp.eq.s32.totalorder %s26, 1
      %p91 = por %p89, %p90
      %p93 = scmp.ne.s32.totalorder %s78, %s92
      %p94 = scmp.eq.s32.totalorder %s26, 0
      %p95 = por %p93, %p94
      %s97 = sadd.s32 %s96, 1
      %p100 = scmp.eq.s32.totalorder %s20, 1
      %p101 = scmp.ne.s32.totalorder %s96, %s98
      %p102 = scmp.eq.s32.totalorder %s20, 0
      %p103 = por %p101, %p102
      %p104 = scmp.ne.s32.totalorder %s96, %s98
      %p105 = scmp.eq.s32.totalorder %s25, 1
      %p106 = por %p104, %p105
      %p107 = scmp.ne.s32.totalorder %s98, %s99
      %p108 = scmp.eq.s32.totalorder %s25, 0
      %p109 = por %p107, %p108
      %p110 = scmp.ne.s32.totalorder %s98, %s99
      %p111 = scmp.eq.s32.totalorder %s26, 1
      %p112 = por %p110, %p111
      %p114 = scmp.ne.s32.totalorder %s99, %s113
      %p115 = scmp.eq.s32.totalorder %s26, 0
      %p116 = por %p114, %p115
      %s118 = sadd.s32 %s117, 1
      %p121 = scmp.eq.s32.totalorder %s20, 1
      %p122 = scmp.ne.s32.totalorder %s117, %s119
      %p123 = scmp.eq.s32.totalorder %s20, 0
      %p124 = por %p122, %p123
      %p125 = scmp.ne.s32.totalorder %s117, %s119
      %p126 = scmp.eq.s32.totalorder %s25, 1
      %p127 = por %p125, %p126
      %p128 = scmp.ne.s32.totalorder %s119, %s120
      %p129 = scmp.eq.s32.totalorder %s25, 0
      %p130 = por %p128, %p129
      %p131 = scmp.ne.s32.totalorder %s119, %s120
      %p132 = scmp.eq.s32.totalorder %s26, 1
      %p133 = por %p131, %p132
      %p135 = scmp.ne.s32.totalorder %s120, %s134
      %p136 = scmp.eq.s32.totalorder %s26, 0
      %p137 = por %p135, %p136
      %s139 = sadd.s32 %s138, 1
      %p142 = scmp.eq.s32.totalorder %s20, 1
      %p143 = scmp.ne.s32.totalorder %s138, %s140
      %p144 = scmp.eq.s32.totalorder %s20, 0
      %p145 = por %p143, %p144
      %p146 = scmp.ne.s32.totalorder %s138, %s140
      %p147 = scmp.eq.s32.totalorder %s25, 1
      %p148 = por %p146, %p147
      %p149 = scmp.ne.s32.totalorder %s140, %s141
      %p150 = scmp.eq.s32.totalorder %s25, 0
      %p151 = por %p149, %p150
      %p152 = scmp.ne.s32.totalorder %s140, %s141
      %p153 = scmp.eq.s32.totalorder %s26, 1
      %p154 = por %p152, %p153
      %p156 = scmp.ne.s32.totalorder %s141, %s155
      %p157 = scmp.eq.s32.totalorder %s26, 0
      %p158 = por %p156, %p157
      %s160 = sadd.s32 %s159, 1
      %p163 = scmp.eq.s32.totalorder %s20, 1
      %p164 = scmp.ne.s32.totalorder %s159, %s161
      %p165 = scmp.eq.s32.totalorder %s20, 0
      %p166 = por %p164, %p165
      %p167 = scmp.ne.s32.totalorder %s159, %s161
      %p168 = scmp.eq.s32.totalorder %s25, 1
      %p169 = por %p167, %p168
      %p170 = scmp.ne.s32.totalorder %s161, %s162
      %p171 = scmp.eq.s32.totalorder %s25, 0
      %p172 = por %p170, %p171
      %p173 = scmp.ne.s32.totalorder %s161, %s162
      %p174 = scmp.eq.s32.totalorder %s26, 1
      %p175 = por %p173, %p174
      %p177 = scmp.ne.s32.totalorder %s162, %s176
      %p178 = scmp.eq.s32.totalorder %s26, 0
      %p179 = por %p177, %p178
      %s181 = sadd.s32 %s180, 1
      %p184 = scmp.eq.s32.totalorder %s20, 1
      %p185 = scmp.ne.s32.totalorder %s180, %s182
      %p186 = scmp.eq.s32.totalorder %s20, 0
      %p187 = por %p185, %p186
      %p188 = scmp.ne.s32.totalorder %s180, %s182
      %p189 = scmp.eq.s32.totalorder %s25, 1
      %p190 = por %p188, %p189
      %p191 = scmp.ne.s32.totalorder %s182, %s183
      %p192 = scmp.eq.s32.totalorder %s25, 0
      %p193 = por %p191, %p192
      %p194 = scmp.ne.s32.totalorder %s182, %s183
      %p195 = scmp.eq.s32.totalorder %s26, 1
      %p196 = por %p194, %p195
      %p198 = scmp.ne.s32.totalorder %s183, %s197
      %p199 = scmp.eq.s32.totalorder %s26, 0
      %p200 = por %p198, %p199
      %s201 = ssub.s32 %s20, %s27
      %p202 = scmp.eq.s32.totalorder %s201, 0
      %s204 = sadd.s32 %s203, 1
      %s205 = scalar_select %p202, %s203, %s204
      %p208 = pneg %p202
      %p209 = scmp.eq.s32.totalorder %s20, 1
      %p210 = por %p208, %p209
      %p211 = scmp.ne.s32.totalorder %s203, %s206
      %p212 = scmp.eq.s32.totalorder %s20, 0
      %p213 = por %p211, %p212
      %p214 = scmp.ne.s32.totalorder %s203, %s206
      %p215 = scmp.eq.s32.totalorder %s25, 1
      %p216 = por %p214, %p215
      %p217 = scmp.ne.s32.totalorder %s206, %s207
      %p218 = scmp.eq.s32.totalorder %s25, 0
      %p219 = por %p217, %p218
      %p220 = scmp.ne.s32.totalorder %s206, %s207
      %p221 = scmp.eq.s32.totalorder %s26, 1
      %p222 = por %p220, %p221
      %p224 = scmp.ne.s32.totalorder %s207, %s223
      %p225 = scmp.eq.s32.totalorder %s26, 0
      %p226 = por %p224, %p225
      %p227 = scmp.le.s32.totalorder 1, %s20
      %p228 = scmp.lt.s32.totalorder %s20, 3
      %p229 = pnand %p227, %p228
      %p230 = pneg %p229
      // Predicated region
      $region9: #{tpu_custom_call.1} parent=5 // pred_check
        _
      $region10: #{tpu_custom_call.1} parent=5 // pred_check_branch
        %232 = sbr.rel (%p229) target = $region12
      $region11: #{tpu_custom_call.1} parent=5 // pred_region
        %s233 = ssub.s32 %s20, 1
        // Predicated region
        $region13: #{tpu_custom_call.1} parent=11 // pred_check
          %p234 = pneg %p67
        $region14: #{tpu_custom_call.1} parent=11 // pred_check_branch
          %236 = sbr.rel (%p234) target = $region16
        $region15: #{tpu_custom_call.1} parent=11 // pred_region
          _
        $region16: #{tpu_custom_call.1} parent=11 // pred_fallthru
          _
        // Predicated region
        $region17: #{tpu_custom_call.1} parent=11 // pred_check
          %p237 = pneg %p88
        $region18: #{tpu_custom_call.1} parent=11 // pred_check_branch
          %239 = sbr.rel (%p237) target = $region20
        $region19: #{tpu_custom_call.1} parent=11 // pred_region
          _
        $region20: #{tpu_custom_call.1} parent=11 // pred_fallthru
          _
        // Predicated region
        $region21: #{tpu_custom_call.1} parent=11 // pred_check
          %p240 = pneg %p109
        $region22: #{tpu_custom_call.1} parent=11 // pred_check_branch
          %242 = sbr.rel (%p240) target = $region24
        $region23: #{tpu_custom_call.1} parent=11 // pred_region
          _
        $region24: #{tpu_custom_call.1} parent=11 // pred_fallthru
          _
        // Predicated region
        $region25: #{tpu_custom_call.1} parent=11 // pred_check
          %p243 = pneg %p130
        $region26: #{tpu_custom_call.1} parent=11 // pred_check_branch
          %245 = sbr.rel (%p243) target = $region28
        $region27: #{tpu_custom_call.1} parent=11 // pred_region
          _
        $region28: #{tpu_custom_call.1} parent=11 // pred_fallthru
          _
        // Predicated region
        $region29: #{tpu_custom_call.1} parent=11 // pred_check
          %p246 = pneg %p151
        $region30: #{tpu_custom_call.1} parent=11 // pred_check_branch
          %248 = sbr.rel (%p246) target = $region32
        $region31: #{tpu_custom_call.1} parent=11 // pred_region
          _
        $region32: #{tpu_custom_call.1} parent=11 // pred_fallthru
          _
        // Predicated region
        $region33: #{tpu_custom_call.1} parent=11 // pred_check
          %p249 = pneg %p172
        $region34: #{tpu_custom_call.1} parent=11 // pred_check_branch
          %251 = sbr.rel (%p249) target = $region36
        $region35: #{tpu_custom_call.1} parent=11 // pred_region
          _
        $region36: #{tpu_custom_call.1} parent=11 // pred_fallthru
          _
        // Predicated region
        $region37: #{tpu_custom_call.1} parent=11 // pred_check
          %p252 = pneg %p193
        $region38: #{tpu_custom_call.1} parent=11 // pred_check_branch
          %254 = sbr.rel (%p252) target = $region40
        $region39: #{tpu_custom_call.1} parent=11 // pred_region
          _
        $region40: #{tpu_custom_call.1} parent=11 // pred_fallthru
          _
      $region12: #{tpu_custom_call.1} parent=5 // pred_fallthru
        _
      %p255 = scmp.lt.s32.totalorder %s20, 2
      // Predicated region
      $region41: #{tpu_custom_call.1} parent=5 // pred_check
        %p256 = pneg %p255
      $region42: #{tpu_custom_call.1} parent=5 // pred_check_branch
        %258 = sbr.rel (%p256) target = $region44
      $region43: #{tpu_custom_call.1} parent=5 // pred_region
        // Predicated region
        $region45: #{tpu_custom_call.1} parent=43 // pred_check
          %p259 = pneg %p40
        $region46: #{tpu_custom_call.1} parent=43 // pred_check_branch
          %261 = sbr.rel (%p259) target = $region48
        $region47: #{tpu_custom_call.1} parent=43 // pred_region
          %s262 = sand.u32 %s30, 1
          %s263 = scalar_lea.sflag [#allocation6], %s262
          %s264 = sand.u32 %s30, 1
          %s265 = smul.addr %s264, 32
          %s266 = scalar_lea.vmem [#allocation5], %s265
          %s267 = smul.u32 2, %s20
          %269 = vsyncadd %s263, 0
          %s270 = smul.addr %s267, 2
          %s271 = smul.addr %s270, 8
          %s272 = scalar_lea.hbm %s0, %s271
          %s273 = sshll.u32 %s272, 4
          %s274 = int_to_ptr.hbm [resolvable:$true] %s273
          %s275 = sshll.u32 %s266, 4
          %s276 = int_to_ptr.vmem [resolvable:$true] %s275
          %281 = dma.hbm_to_vmem [thread:$0]  %s274, 512, %s276, %s263, 256, 256, 16
        $region48: #{tpu_custom_call.1} parent=43 // pred_fallthru
          _
      $region44: #{tpu_custom_call.1} parent=5 // pred_fallthru
        _
      %p282 = scmp.le.s32.totalorder 1, %s20
      %p283 = scmp.lt.s32.totalorder %s20, 3
      %p284 = pnand %p282, %p283
      %p285 = pneg %p284
      // Predicated region
      $region49: #{tpu_custom_call.1} parent=5 // pred_check
        _
      $region50: #{tpu_custom_call.1} parent=5 // pred_check_branch
        %287 = sbr.rel (%p284) target = $region52
      $region51: #{tpu_custom_call.1} parent=5 // pred_region
        %s288 = ssub.s32 %s20, 1
        %s289 = sand.u32 %s33, 1
        %s290 = scalar_lea.sflag [#allocation6], %s289
        %s291 = sand.u32 %s33, 1
        %s292 = smul.addr %s291, 32
        %s293 = scalar_lea.vmem [#allocation5], %s292
        // Predicated region
        $region53: #{tpu_custom_call.1} parent=51 // pred_check
          %p294 = pneg %p46
        $region54: #{tpu_custom_call.1} parent=51 // pred_check_branch
          %296 = sbr.rel (%p294) target = $region56
        $region55: #{tpu_custom_call.1} parent=51 // pred_region
          %298 = dma.done %s290, 512
        $region56: #{tpu_custom_call.1} parent=51 // pred_fallthru
          _
        %s299 = sand.u32 %s33, 1
        %s300 = scalar_lea.sflag [#allocation6], %s299
        %s301 = sand.u32 %s33, 1
        %s302 = smul.addr %s301, 32
        %s303 = scalar_lea.vmem [#allocation5], %s302
        %p304 = pneg %p46
        %p305 = pneg %p43
        %p306 = pneg %p67
        %p307 = pneg %p64
        %p308 = pneg %p88
        %p309 = pneg %p85
        %p310 = pneg %p109
        %p311 = pneg %p106
        %p312 = pneg %p130
        %p313 = pneg %p127
        %p314 = pneg %p151
        %p315 = pneg %p148
        %p316 = pneg %p172
        %p317 = pneg %p169
        %p318 = pneg %p193
        %p319 = pneg %p190
        %p320 = pneg %p219
        %p321 = pneg %p216
        %s322 = sand.u32 %s206, 1
        %s323 = scalar_lea.sflag [#allocation7], %s322
        %s324 = sand.u32 %s206, 1
        %s325 = smul.addr %s324, 16
        %s326 = scalar_lea.vmem [#allocation8], %s325
        %s327 = smul.u32 2, %s25
        %328 = vst [vmem:[#allocation2] sm:$0xff] 0.0
        %329 = vst [vmem:[#allocation2 + $0x20] sm:$0xff] 0.0
        %330 = vst [vmem:[#allocation2 + $0x18] sm:$0xff] 0.0
        %331 = vst [vmem:[#allocation2 + $0x38] sm:$0xff] 0.0
        %v332 = vld [vmem:[%s293] sm:$0xff]
        %v333 = vld [vmem:[%s293 + $0x8] sm:$0xff]
        %v334 = vld [vmem:[%s293 + $0x10] sm:$0xff]
        %v335 = vld [vmem:[%s293 + $0x18] sm:$0xff]
        %336 = vst [vmem:[#allocation2 + $0x8] sm:$0xff] %v332
        %337 = vst [vmem:[#allocation2 + $0x10] sm:$0xff] %v333
        %338 = vst [vmem:[#allocation2 + $0x28] sm:$0xff] %v334
        %339 = vst [vmem:[#allocation2 + $0x30] sm:$0xff] %v335
        %340 = vst [vmem:[#allocation3] sm:$0xff] 0.0
        %341 = vst [vmem:[#allocation3 + $0x8] sm:$0xff] 0.0
        %342 = vst [vmem:[#allocation3 + $0x10] sm:$0xff] 0.0
        %343 = vst [vmem:[#allocation3 + $0x18] sm:$0xff] 0.0
        %344 = vst [vmem:[#allocation3 + $0x20] sm:$0xff] 0.0
        %345 = vst [vmem:[#allocation3 + $0x28] sm:$0xff] 0.0
        %346 = vst [vmem:[#allocation3 + $0x30] sm:$0xff] 0.0
        %347 = vst [vmem:[#allocation3 + $0x38] sm:$0xff] 0.0
        %v348 = vlaneseq
        %v349 = vand.u32 %v348, 127
        %v350 = vadd.s32 %v349, 128
        %vm351 = vcmp.lt.s32.totalorder %v349, 0
        %v352 = vsub.s32 0, %v349
        %v353 = vsel %vm351, %v352, %v349
        %v354 = vshrl.u32 %v353, 4
        %v355 = vand.u32 %v353, 15
        %v356 = vsub.s32 0, %v355
        %v357 = vsel %vm351, %v356, %v355
        %vm358 = vcmp.lt.s32.totalorder %v350, 0
        %v359 = vsub.s32 0, %v350
        %v360 = vsel %vm358, %v359, %v350
        %v361 = vshrl.u32 %v360, 4
        %v362 = vand.u32 %v360, 15
        %v363 = vsub.s32 0, %v362
        %v364 = vsel %vm358, %v363, %v362
        %vm365 = vcmp.ne.s32.totalorder %v357, 0
        %vm366 = vcmp.ne.s32.totalorder %v364, 0
        %vm367 = vcmp.lt.s32.totalorder %v357, 0
        %vm368 = vcmp.lt.s32.totalorder %v364, 0
        %vm369 = vmand %vm367, %vm365
        %vm370 = vmand %vm368, %vm366
        %v371 = vadd.s32 %v357, 16
        %v372 = vadd.s32 %v364, 16
        %v373 = vsel %vm369, %v371, %v357
        %v374 = vsel %vm370, %v372, %v364
        %vm375 = vcmp.ge.s32.totalorder %v373, 2
        %vm376 = vcmp.ge.s32.totalorder %v374, 2
        %vm377 = vcmp.ge.s32.totalorder %v373, 1
        %vm378 = vcmp.ge.s32.totalorder %v374, 1
        %vm379 = vcmp.lt.s32.totalorder %v373, 15
        %vm380 = vcmp.lt.s32.totalorder %v374, 15
        %vm381 = vcmp.lt.s32.totalorder %v373, 14
        %vm382 = vcmp.lt.s32.totalorder %v374, 14
        %v383 = vld [vmem:[#allocation2] sm:$0xff]
        %v384 = vld [vmem:[#allocation2 + $0x8] sm:$0xff]
        %v385 = vld [vmem:[#allocation2 + $0x10] sm:$0xff]
        %v386 = vld [vmem:[#allocation2 + $0x20] sm:$0xff]
        %v387 = vld [vmem:[#allocation2 + $0x28] sm:$0xff]
        %v388 = vld [vmem:[#allocation2 + $0x30] sm:$0xff]
        %395 = vrot.lane.b32.xlu0 %v383, 34
        %v396 = vpop.permute.xlu0 %395
        %397 = vrot.lane.b32.xlu0 %v384, 34
        %v398 = vpop.permute.xlu0 %397
        %399 = vrot.lane.b32.xlu0 %v385, 34
        %v400 = vpop.permute.xlu0 %399
        %401 = vrot.lane.b32.xlu0 %v386, 34
        %v402 = vpop.permute.xlu0 %401
        %403 = vrot.lane.b32.xlu0 %v387, 34
        %v404 = vpop.permute.xlu0 %403
        %405 = vrot.lane.b32.xlu0 %v388, 34
        %v406 = vpop.permute.xlu0 %405
        %vm407 = vcmask 277504
        %v408 = vsel %vm407, %v396, %v398
        %v409 = vsel %vm407, %v398, %v400
        %v410 = vsel %vm407, %v402, %v404
        %v411 = vsel %vm407, %v404, %v406
        %v416 = vsel %vm375, %v408, 0.0
        %v417 = vsel %vm376, %v409, 0.0
        %v418 = vsel %vm375, %v410, 0.0
        %v419 = vsel %vm376, %v411, 0.0
        %420 = vst [vmem:[#allocation4] sm:$0xff] %v416
        %421 = vst [vmem:[#allocation4 + $0x8] sm:$0xff] %v417
        %422 = vst [vmem:[#allocation4 + $0x10] sm:$0xff] %v418
        %423 = vst [vmem:[#allocation4 + $0x18] sm:$0xff] %v419
        %v424 = vld [vmem:[#allocation2] sm:$0xff]
        %v425 = vld [vmem:[#allocation2 + $0x8] sm:$0xff]
        %v426 = vld [vmem:[#allocation2 + $0x10] sm:$0xff]
        %v427 = vld [vmem:[#allocation2 + $0x20] sm:$0xff]
        %v428 = vld [vmem:[#allocation2 + $0x28] sm:$0xff]
        %v429 = vld [vmem:[#allocation2 + $0x30] sm:$0xff]
        %436 = vrot.lane.b32.xlu0 %v424, 33
        %v437 = vpop.permute.xlu0 %436
        %438 = vrot.lane.b32.xlu0 %v425, 33
        %v439 = vpop.permute.xlu0 %438
        %440 = vrot.lane.b32.xlu0 %v426, 33
        %v441 = vpop.permute.xlu0 %440
        %442 = vrot.lane.b32.xlu0 %v427, 33
        %v443 = vpop.permute.xlu0 %442
        %444 = vrot.lane.b32.xlu0 %v428, 33
        %v445 = vpop.permute.xlu0 %444
        %446 = vrot.lane.b32.xlu0 %v429, 33
        %v447 = vpop.permute.xlu0 %446
        %vm448 = vcmask 269312
        %v449 = vsel %vm448, %v437, %v439
        %v450 = vsel %vm448, %v439, %v441
        %v451 = vsel %vm448, %v443, %v445
        %v452 = vsel %vm448, %v445, %v447
        %v457 = vsel %vm377, %v449, 0.0
        %v458 = vsel %vm378, %v450, 0.0
        %v459 = vsel %vm377, %v451, 0.0
        %v460 = vsel %vm378, %v452, 0.0
        %461 = vst [vmem:[#allocation4 + $0x20] sm:$0xff] %v457
        %462 = vst [vmem:[#allocation4 + $0x28] sm:$0xff] %v458
        %463 = vst [vmem:[#allocation4 + $0x30] sm:$0xff] %v459
        %464 = vst [vmem:[#allocation4 + $0x38] sm:$0xff] %v460
        %v465 = vld [vmem:[#allocation2] sm:$0xff]
        %v466 = vld [vmem:[#allocation2 + $0x8] sm:$0xff]
        %v467 = vld [vmem:[#allocation2 + $0x10] sm:$0xff]
        %v468 = vld [vmem:[#allocation2 + $0x20] sm:$0xff]
        %v469 = vld [vmem:[#allocation2 + $0x28] sm:$0xff]
        %v470 = vld [vmem:[#allocation2 + $0x30] sm:$0xff]
        %474 = vrot.lane.b32.xlu0 %v465, 32
        %v475 = vpop.permute.xlu0 %474
        %476 = vrot.lane.b32.xlu0 %v466, 32
        %v477 = vpop.permute.xlu0 %476
        %478 = vrot.lane.b32.xlu0 %v467, 32
        %v479 = vpop.permute.xlu0 %478
        %vm480 = vcmask 261120
        %v481 = vsel %vm480, %v475, %v477
        %v482 = vsel %vm480, %v477, %v479
        %485 = vst [vmem:[#allocation4 + $0x40] sm:$0xff] %v481
        %486 = vst [vmem:[#allocation4 + $0x48] sm:$0xff] %v482
        %490 = vrot.lane.b32.xlu0 %v468, 32
        %v491 = vpop.permute.xlu0 %490
        %492 = vrot.lane.b32.xlu0 %v469, 32
        %v493 = vpop.permute.xlu0 %492
        %494 = vrot.lane.b32.xlu0 %v470, 32
        %v495 = vpop.permute.xlu0 %494
        %v496 = vsel %vm480, %v491, %v493
        %v497 = vsel %vm480, %v493, %v495
        %500 = vst [vmem:[#allocation4 + $0x50] sm:$0xff] %v496
        %501 = vst [vmem:[#allocation4 + $0x58] sm:$0xff] %v497
        %v502 = vld [vmem:[#allocation2] sm:$0xff]
        %v503 = vld [vmem:[#allocation2 + $0x8] sm:$0xff]
        %v504 = vld [vmem:[#allocation2 + $0x10] sm:$0xff]
        %v505 = vld [vmem:[#allocation2 + $0x20] sm:$0xff]
        %v506 = vld [vmem:[#allocation2 + $0x28] sm:$0xff]
        %v507 = vld [vmem:[#allocation2 + $0x30] sm:$0xff]
        %514 = vrot.lane.b32.xlu0 %v502, 31
        %v515 = vpop.permute.xlu0 %514
        %516 = vrot.lane.b32.xlu0 %v503, 31
        %v517 = vpop.permute.xlu0 %516
        %518 = vrot.lane.b32.xlu0 %v504, 31
        %v519 = vpop.permute.xlu0 %518
        %520 = vrot.lane.b32.xlu0 %v505, 31
        %v521 = vpop.permute.xlu0 %520
        %522 = vrot.lane.b32.xlu0 %v506, 31
        %v523 = vpop.permute.xlu0 %522
        %524 = vrot.lane.b32.xlu0 %v507, 31
        %v525 = vpop.permute.xlu0 %524
        %vm526 = vcmask 252928
        %v527 = vsel %vm526, %v515, %v517
        %v528 = vsel %vm526, %v517, %v519
        %v529 = vsel %vm526, %v521, %v523
        %v530 = vsel %vm526, %v523, %v525
        %v535 = vsel %vm379, %v527, 0.0
        %v536 = vsel %vm380, %v528, 0.0
        %v537 = vsel %vm379, %v529, 0.0
        %v538 = vsel %vm380, %v530, 0.0
        %539 = vst [vmem:[#allocation4 + $0x60] sm:$0xff] %v535
        %540 = vst [vmem:[#allocation4 + $0x68] sm:$0xff] %v536
        %541 = vst [vmem:[#allocation4 + $0x70] sm:$0xff] %v537
        %542 = vst [vmem:[#allocation4 + $0x78] sm:$0xff] %v538
        %v543 = vld [vmem:[#allocation2] sm:$0xff]
        %v544 = vld [vmem:[#allocation2 + $0x8] sm:$0xff]
        %v545 = vld [vmem:[#allocation2 + $0x10] sm:$0xff]
        %v546 = vld [vmem:[#allocation2 + $0x20] sm:$0xff]
        %v547 = vld [vmem:[#allocation2 + $0x28] sm:$0xff]
        %v548 = vld [vmem:[#allocation2 + $0x30] sm:$0xff]
        %555 = vrot.lane.b32.xlu0 %v543, 30
        %v556 = vpop.permute.xlu0 %555
        %557 = vrot.lane.b32.xlu0 %v544, 30
        %v558 = vpop.permute.xlu0 %557
        %559 = vrot.lane.b32.xlu0 %v545, 30
        %v560 = vpop.permute.xlu0 %559
        %561 = vrot.lane.b32.xlu0 %v546, 30
        %v562 = vpop.permute.xlu0 %561
        %563 = vrot.lane.b32.xlu0 %v547, 30
        %v564 = vpop.permute.xlu0 %563
        %565 = vrot.lane.b32.xlu0 %v548, 30
        %v566 = vpop.permute.xlu0 %565
        %vm567 = vcmask 244736
        %v568 = vsel %vm567, %v556, %v558
        %v569 = vsel %vm567, %v558, %v560
        %v570 = vsel %vm567, %v562, %v564
        %v571 = vsel %vm567, %v564, %v566
        %v576 = vsel %vm381, %v568, 0.0
        %v577 = vsel %vm382, %v569, 0.0
        %v578 = vsel %vm381, %v570, 0.0
        %v579 = vsel %vm382, %v571, 0.0
        %580 = vst [vmem:[#allocation4 + $0x80] sm:$0xff] %v576
        %581 = vst [vmem:[#allocation4 + $0x88] sm:$0xff] %v577
        %582 = vst [vmem:[#allocation4 + $0x90] sm:$0xff] %v578
        %583 = vst [vmem:[#allocation4 + $0x98] sm:$0xff] %v579
        %v584 = vld [vmem:[#allocation2] sm:$0xff]
        %v585 = vld [vmem:[#allocation2 + $0x8] sm:$0xff]
        %v586 = vld [vmem:[#allocation2 + $0x10] sm:$0xff]
        %v587 = vld [vmem:[#allocation2 + $0x20] sm:$0xff]
        %v588 = vld [vmem:[#allocation2 + $0x28] sm:$0xff]
        %v589 = vld [vmem:[#allocation2 + $0x30] sm:$0xff]
        %596 = vrot.lane.b32.xlu0 %v584, 18
        %v597 = vpop.permute.xlu0 %596
        %598 = vrot.lane.b32.xlu0 %v585, 18
        %v599 = vpop.permute.xlu0 %598
        %600 = vrot.lane.b32.xlu0 %v586, 18
        %v601 = vpop.permute.xlu0 %600
        %602 = vrot.lane.b32.xlu0 %v587, 18
        %v603 = vpop.permute.xlu0 %602
        %604 = vrot.lane.b32.xlu0 %v588, 18
        %v605 = vpop.permute.xlu0 %604
        %606 = vrot.lane.b32.xlu0 %v589, 18
        %v607 = vpop.permute.xlu0 %606
        %vm608 = vcmask 146432
        %v609 = vsel %vm608, %v597, %v599
        %v610 = vsel %vm608, %v599, %v601
        %v611 = vsel %vm608, %v603, %v605
        %v612 = vsel %vm608, %v605, %v607
        %v617 = vsel %vm375, %v609, 0.0
        %v618 = vsel %vm376, %v610, 0.0
        %v619 = vsel %vm375, %v611, 0.0
        %v620 = vsel %vm376, %v612, 0.0
        %621 = vst [vmem:[#allocation4 + $0xa0] sm:$0xff] %v617
        %622 = vst [vmem:[#allocation4 + $0xa8] sm:$0xff] %v618
        %623 = vst [vmem:[#allocation4 + $0xb0] sm:$0xff] %v619
        %624 = vst [vmem:[#allocation4 + $0xb8] sm:$0xff] %v620
        %v625 = vld [vmem:[#allocation2] sm:$0xff]
        %v626 = vld [vmem:[#allocation2 + $0x8] sm:$0xff]
        %v627 = vld [vmem:[#allocation2 + $0x10] sm:$0xff]
        %v628 = vld [vmem:[#allocation2 + $0x20] sm:$0xff]
        %v629 = vld [vmem:[#allocation2 + $0x28] sm:$0xff]
        %v630 = vld [vmem:[#allocation2 + $0x30] sm:$0xff]
        %637 = vrot.lane.b32.xlu0 %v625, 17
        %v638 = vpop.permute.xlu0 %637
        %639 = vrot.lane.b32.xlu0 %v626, 17
        %v640 = vpop.permute.xlu0 %639
        %641 = vrot.lane.b32.xlu0 %v627, 17
        %v642 = vpop.permute.xlu0 %641
        %643 = vrot.lane.b32.xlu0 %v628, 17
        %v644 = vpop.permute.xlu0 %643
        %645 = vrot.lane.b32.xlu0 %v629, 17
        %v646 = vpop.permute.xlu0 %645
        %647 = vrot.lane.b32.xlu0 %v630, 17
        %v648 = vpop.permute.xlu0 %647
        %vm649 = vcmask 138240
        %v650 = vsel %vm649, %v638, %v640
        %v651 = vsel %vm649, %v640, %v642
        %v652 = vsel %vm649, %v644, %v646
        %v653 = vsel %vm649, %v646, %v648
        %v658 = vsel %vm377, %v650, 0.0
        %v659 = vsel %vm378, %v651, 0.0
        %v660 = vsel %vm377, %v652, 0.0
        %v661 = vsel %vm378, %v653, 0.0
        %662 = vst [vmem:[#allocation4 + $0xc0] sm:$0xff] %v658
        %663 = vst [vmem:[#allocation4 + $0xc8] sm:$0xff] %v659
        %664 = vst [vmem:[#allocation4 + $0xd0] sm:$0xff] %v660
        %665 = vst [vmem:[#allocation4 + $0xd8] sm:$0xff] %v661
        %v666 = vld [vmem:[#allocation2] sm:$0xff]
        %v667 = vld [vmem:[#allocation2 + $0x8] sm:$0xff]
        %v668 = vld [vmem:[#allocation2 + $0x10] sm:$0xff]
        %v669 = vld [vmem:[#allocation2 + $0x20] sm:$0xff]
        %v670 = vld [vmem:[#allocation2 + $0x28] sm:$0xff]
        %v671 = vld [vmem:[#allocation2 + $0x30] sm:$0xff]
        %675 = vrot.lane.b32.xlu0 %v666, 16
        %v676 = vpop.permute.xlu0 %675
        %677 = vrot.lane.b32.xlu0 %v667, 16
        %v678 = vpop.permute.xlu0 %677
        %679 = vrot.lane.b32.xlu0 %v668, 16
        %v680 = vpop.permute.xlu0 %679
        %vm681 = vcmask 130048
        %v682 = vsel %vm681, %v676, %v678
        %v683 = vsel %vm681, %v678, %v680
        %686 = vst [vmem:[#allocation4 + $0xe0] sm:$0xff] %v682
        %687 = vst [vmem:[#allocation4 + $0xe8] sm:$0xff] %v683
        %691 = vrot.lane.b32.xlu0 %v669, 16
        %v692 = vpop.permute.xlu0 %691
        %693 = vrot.lane.b32.xlu0 %v670, 16
        %v694 = vpop.permute.xlu0 %693
        %695 = vrot.lane.b32.xlu0 %v671, 16
        %v696 = vpop.permute.xlu0 %695
        %v697 = vsel %vm681, %v692, %v694
        %v698 = vsel %vm681, %v694, %v696
        %701 = vst [vmem:[#allocation4 + $0xf0] sm:$0xff] %v697
        %702 = vst [vmem:[#allocation4 + $0xf8] sm:$0xff] %v698
        %v703 = vld [vmem:[#allocation2] sm:$0xff]
        %v704 = vld [vmem:[#allocation2 + $0x8] sm:$0xff]
        %v705 = vld [vmem:[#allocation2 + $0x10] sm:$0xff]
        %v706 = vld [vmem:[#allocation2 + $0x20] sm:$0xff]
        %v707 = vld [vmem:[#allocation2 + $0x28] sm:$0xff]
        %v708 = vld [vmem:[#allocation2 + $0x30] sm:$0xff]
        %715 = vrot.lane.b32.xlu0 %v703, 15
        %v716 = vpop.permute.xlu0 %715
        %717 = vrot.lane.b32.xlu0 %v704, 15
        %v718 = vpop.permute.xlu0 %717
        %719 = vrot.lane.b32.xlu0 %v705, 15
        %v720 = vpop.permute.xlu0 %719
        %721 = vrot.lane.b32.xlu0 %v706, 15
        %v722 = vpop.permute.xlu0 %721
        %723 = vrot.lane.b32.xlu0 %v707, 15
        %v724 = vpop.permute.xlu0 %723
        %725 = vrot.lane.b32.xlu0 %v708, 15
        %v726 = vpop.permute.xlu0 %725
        %vm727 = vcmask 121856
        %v728 = vsel %vm727, %v716, %v718
        %v729 = vsel %vm727, %v718, %v720
        %v730 = vsel %vm727, %v722, %v724
        %v731 = vsel %vm727, %v724, %v726
        %v736 = vsel %vm379, %v728, 0.0
        %v737 = vsel %vm380, %v729, 0.0
        %v738 = vsel %vm379, %v730, 0.0
        %v739 = vsel %vm380, %v731, 0.0
        %740 = vst [vmem:[#allocation4 + $0x100] sm:$0xff] %v736
        %741 = vst [vmem:[#allocation4 + $0x108] sm:$0xff] %v737
        %742 = vst [vmem:[#allocation4 + $0x110] sm:$0xff] %v738
        %743 = vst [vmem:[#allocation4 + $0x118] sm:$0xff] %v739
        %v744 = vld [vmem:[#allocation2] sm:$0xff]
        %v745 = vld [vmem:[#allocation2 + $0x8] sm:$0xff]
        %v746 = vld [vmem:[#allocation2 + $0x10] sm:$0xff]
        %v747 = vld [vmem:[#allocation2 + $0x20] sm:$0xff]
        %v748 = vld [vmem:[#allocation2 + $0x28] sm:$0xff]
        %v749 = vld [vmem:[#allocation2 + $0x30] sm:$0xff]
        %756 = vrot.lane.b32.xlu0 %v744, 14
        %v757 = vpop.permute.xlu0 %756
        %758 = vrot.lane.b32.xlu0 %v745, 14
        %v759 = vpop.permute.xlu0 %758
        %760 = vrot.lane.b32.xlu0 %v746, 14
        %v761 = vpop.permute.xlu0 %760
        %762 = vrot.lane.b32.xlu0 %v747, 14
        %v763 = vpop.permute.xlu0 %762
        %764 = vrot.lane.b32.xlu0 %v748, 14
        %v765 = vpop.permute.xlu0 %764
        %766 = vrot.lane.b32.xlu0 %v749, 14
        %v767 = vpop.permute.xlu0 %766
        %vm768 = vcmask 113664
        %v769 = vsel %vm768, %v757, %v759
        %v770 = vsel %vm768, %v759, %v761
        %v771 = vsel %vm768, %v763, %v765
        %v772 = vsel %vm768, %v765, %v767
        %v777 = vsel %vm381, %v769, 0.0
        %v778 = vsel %vm382, %v770, 0.0
        %v779 = vsel %vm381, %v771, 0.0
        %v780 = vsel %vm382, %v772, 0.0
        %781 = vst [vmem:[#allocation4 + $0x120] sm:$0xff] %v777
        %782 = vst [vmem:[#allocation4 + $0x128] sm:$0xff] %v778
        %783 = vst [vmem:[#allocation4 + $0x130] sm:$0xff] %v779
        %784 = vst [vmem:[#allocation4 + $0x138] sm:$0xff] %v780
        %v785 = vld [vmem:[#allocation2] sm:$0xff]
        %v786 = vld [vmem:[#allocation2 + $0x8] sm:$0xff]
        %v787 = vld [vmem:[#allocation2 + $0x10] sm:$0xff]
        %v788 = vld [vmem:[#allocation2 + $0x20] sm:$0xff]
        %v789 = vld [vmem:[#allocation2 + $0x28] sm:$0xff]
        %v790 = vld [vmem:[#allocation2 + $0x30] sm:$0xff]
        %797 = vrot.lane.b32.xlu0 %v785, 2
        %v798 = vpop.permute.xlu0 %797
        %799 = vrot.lane.b32.xlu0 %v786, 2
        %v800 = vpop.permute.xlu0 %799
        %801 = vrot.lane.b32.xlu0 %v787, 2
        %v802 = vpop.permute.xlu0 %801
        %803 = vrot.lane.b32.xlu0 %v788, 2
        %v804 = vpop.permute.xlu0 %803
        %805 = vrot.lane.b32.xlu0 %v789, 2
        %v806 = vpop.permute.xlu0 %805
        %807 = vrot.lane.b32.xlu0 %v790, 2
        %v808 = vpop.permute.xlu0 %807
        %vm809 = vcmask 15360
        %v810 = vsel %vm809, %v798, %v800
        %v811 = vsel %vm809, %v800, %v802
        %v812 = vsel %vm809, %v804, %v806
        %v813 = vsel %vm809, %v806, %v808
        %v818 = vsel %vm375, %v810, 0.0
        %v819 = vsel %vm376, %v811, 0.0
        %v820 = vsel %vm375, %v812, 0.0
        %v821 = vsel %vm376, %v813, 0.0
        %822 = vst [vmem:[#allocation4 + $0x140] sm:$0xff] %v818
        %823 = vst [vmem:[#allocation4 + $0x148] sm:$0xff] %v819
        %824 = vst [vmem:[#allocation4 + $0x150] sm:$0xff] %v820
        %825 = vst [vmem:[#allocation4 + $0x158] sm:$0xff] %v821
        %v826 = vld [vmem:[#allocation2] sm:$0xff]
        %v827 = vld [vmem:[#allocation2 + $0x8] sm:$0xff]
        %v828 = vld [vmem:[#allocation2 + $0x10] sm:$0xff]
        %v829 = vld [vmem:[#allocation2 + $0x20] sm:$0xff]
        %v830 = vld [vmem:[#allocation2 + $0x28] sm:$0xff]
        %v831 = vld [vmem:[#allocation2 + $0x30] sm:$0xff]
        %838 = vrot.lane.b32.xlu0 %v826, 1
        %v839 = vpop.permute.xlu0 %838
        %840 = vrot.lane.b32.xlu0 %v827, 1
        %v841 = vpop.permute.xlu0 %840
        %842 = vrot.lane.b32.xlu0 %v828, 1
        %v843 = vpop.permute.xlu0 %842
        %844 = vrot.lane.b32.xlu0 %v829, 1
        %v845 = vpop.permute.xlu0 %844
        %846 = vrot.lane.b32.xlu0 %v830, 1
        %v847 = vpop.permute.xlu0 %846
        %848 = vrot.lane.b32.xlu0 %v831, 1
        %v849 = vpop.permute.xlu0 %848
        %vm850 = vcmask 7168
        %v851 = vsel %vm850, %v839, %v841
        %v852 = vsel %vm850, %v841, %v843
        %v853 = vsel %vm850, %v845, %v847
        %v854 = vsel %vm850, %v847, %v849
        %v859 = vsel %vm377, %v851, 0.0
        %v860 = vsel %vm378, %v852, 0.0
        %v861 = vsel %vm377, %v853, 0.0
        %v862 = vsel %vm378, %v854, 0.0
        %863 = vst [vmem:[#allocation4 + $0x160] sm:$0xff] %v859
        %864 = vst [vmem:[#allocation4 + $0x168] sm:$0xff] %v860
        %865 = vst [vmem:[#allocation4 + $0x170] sm:$0xff] %v861
        %866 = vst [vmem:[#allocation4 + $0x178] sm:$0xff] %v862
        %v867 = vld [vmem:[#allocation2 + $0x8] sm:$0xff]
        %v868 = vld [vmem:[#allocation2 + $0x10] sm:$0xff]
        %v869 = vld [vmem:[#allocation2 + $0x28] sm:$0xff]
        %v870 = vld [vmem:[#allocation2 + $0x30] sm:$0xff]
        %871 = vst [vmem:[#allocation4 + $0x180] sm:$0xff] %v867
        %872 = vst [vmem:[#allocation4 + $0x188] sm:$0xff] %v868
        %873 = vst [vmem:[#allocation4 + $0x190] sm:$0xff] %v869
        %874 = vst [vmem:[#allocation4 + $0x198] sm:$0xff] %v870
        %v875 = vld [vmem:[#allocation2 + $0x8] sm:$0xff]
        %v876 = vld [vmem:[#allocation2 + $0x10] sm:$0xff]
        %v877 = vld [vmem:[#allocation2 + $0x18] sm:$0xff]
        %v878 = vld [vmem:[#allocation2 + $0x28] sm:$0xff]
        %v879 = vld [vmem:[#allocation2 + $0x30] sm:$0xff]
        %v880 = vld [vmem:[#allocation2 + $0x38] sm:$0xff]
        %887 = vrot.lane.b32.xlu0 %v875, 127
        %v888 = vpop.permute.xlu0 %887
        %889 = vrot.lane.b32.xlu0 %v876, 127
        %v890 = vpop.permute.xlu0 %889
        %891 = vrot.lane.b32.xlu0 %v877, 127
        %v892 = vpop.permute.xlu0 %891
        %893 = vrot.lane.b32.xlu0 %v878, 127
        %v894 = vpop.permute.xlu0 %893
        %895 = vrot.lane.b32.xlu0 %v879, 127
        %v896 = vpop.permute.xlu0 %895
        %897 = vrot.lane.b32.xlu0 %v880, 127
        %v898 = vpop.permute.xlu0 %897
        %vm899 = vcmask 1039360
        %v900 = vsel %vm899, %v888, %v890
        %v901 = vsel %vm899, %v890, %v892
        %v902 = vsel %vm899, %v894, %v896
        %v903 = vsel %vm899, %v896, %v898
        %v908 = vsel %vm379, %v900, 0.0
        %v909 = vsel %vm380, %v901, 0.0
        %v910 = vsel %vm379, %v902, 0.0
        %v911 = vsel %vm380, %v903, 0.0
        %912 = vst [vmem:[#allocation4 + $0x1a0] sm:$0xff] %v908
        %913 = vst [vmem:[#allocation4 + $0x1a8] sm:$0xff] %v909
        %914 = vst [vmem:[#allocation4 + $0x1b0] sm:$0xff] %v910
        %915 = vst [vmem:[#allocation4 + $0x1b8] sm:$0xff] %v911
        %v916 = vld [vmem:[#allocation2 + $0x8] sm:$0xff]
        %v917 = vld [vmem:[#allocation2 + $0x10] sm:$0xff]
        %v918 = vld [vmem:[#allocation2 + $0x18] sm:$0xff]
        %v919 = vld [vmem:[#allocation2 + $0x28] sm:$0xff]
        %v920 = vld [vmem:[#allocation2 + $0x30] sm:$0xff]
        %v921 = vld [vmem:[#allocation2 + $0x38] sm:$0xff]
        %928 = vrot.lane.b32.xlu0 %v916, 126
        %v929 = vpop.permute.xlu0 %928
        %930 = vrot.lane.b32.xlu0 %v917, 126
        %v931 = vpop.permute.xlu0 %930
        %932 = vrot.lane.b32.xlu0 %v918, 126
        %v933 = vpop.permute.xlu0 %932
        %934 = vrot.lane.b32.xlu0 %v919, 126
        %v935 = vpop.permute.xlu0 %934
        %936 = vrot.lane.b32.xlu0 %v920, 126
        %v937 = vpop.permute.xlu0 %936
        %938 = vrot.lane.b32.xlu0 %v921, 126
        %v939 = vpop.permute.xlu0 %938
        %vm940 = vcmask 1031168
        %v941 = vsel %vm940, %v929, %v931
        %v942 = vsel %vm940, %v931, %v933
        %v943 = vsel %vm940, %v935, %v937
        %v944 = vsel %vm940, %v937, %v939
        %v949 = vsel %vm381, %v941, 0.0
        %v950 = vsel %vm382, %v942, 0.0
        %v951 = vsel %vm381, %v943, 0.0
        %v952 = vsel %vm382, %v944, 0.0
        %953 = vst [vmem:[#allocation4 + $0x1c0] sm:$0xff] %v949
        %954 = vst [vmem:[#allocation4 + $0x1c8] sm:$0xff] %v950
        %955 = vst [vmem:[#allocation4 + $0x1d0] sm:$0xff] %v951
        %956 = vst [vmem:[#allocation4 + $0x1d8] sm:$0xff] %v952
        %v957 = vld [vmem:[#allocation2 + $0x8] sm:$0xff]
        %v958 = vld [vmem:[#allocation2 + $0x10] sm:$0xff]
        %v959 = vld [vmem:[#allocation2 + $0x18] sm:$0xff]
        %v960 = vld [vmem:[#allocation2 + $0x28] sm:$0xff]
        %v961 = vld [vmem:[#allocation2 + $0x30] sm:$0xff]
        %v962 = vld [vmem:[#allocation2 + $0x38] sm:$0xff]
        %969 = vrot.lane.b32.xlu0 %v957, 114
        %v970 = vpop.permute.xlu0 %969
        %971 = vrot.lane.b32.xlu0 %v958, 114
        %v972 = vpop.permute.xlu0 %971
        %973 = vrot.lane.b32.xlu0 %v959, 114
        %v974 = vpop.permute.xlu0 %973
        %975 = vrot.lane.b32.xlu0 %v960, 114
        %v976 = vpop.permute.xlu0 %975
        %977 = vrot.lane.b32.xlu0 %v961, 114
        %v978 = vpop.permute.xlu0 %977
        %979 = vrot.lane.b32.xlu0 %v962, 114
        %v980 = vpop.permute.xlu0 %979
        %vm981 = vcmask 932864
        %v982 = vsel %vm981, %v970, %v972
        %v983 = vsel %vm981, %v972, %v974
        %v984 = vsel %vm981, %v976, %v978
        %v985 = vsel %vm981, %v978, %v980
        %v990 = vsel %vm375, %v982, 0.0
        %v991 = vsel %vm376, %v983, 0.0
        %v992 = vsel %vm375, %v984, 0.0
        %v993 = vsel %vm376, %v985, 0.0
        %994 = vst [vmem:[#allocation4 + $0x1e0] sm:$0xff] %v990
        %995 = vst [vmem:[#allocation4 + $0x1e8] sm:$0xff] %v991
        %996 = vst [vmem:[#allocation4 + $0x1f0] sm:$0xff] %v992
        %997 = vst [vmem:[#allocation4 + $0x1f8] sm:$0xff] %v993
        %v998 = vld [vmem:[#allocation2 + $0x8] sm:$0xff]
        %v999 = vld [vmem:[#allocation2 + $0x10] sm:$0xff]
        %v1000 = vld [vmem:[#allocation2 + $0x18] sm:$0xff]
        %v1001 = vld [vmem:[#allocation2 + $0x28] sm:$0xff]
        %v1002 = vld [vmem:[#allocation2 + $0x30] sm:$0xff]
        %v1003 = vld [vmem:[#allocation2 + $0x38] sm:$0xff]
        %1010 = vrot.lane.b32.xlu0 %v998, 113
        %v1011 = vpop.permute.xlu0 %1010
        %1012 = vrot.lane.b32.xlu0 %v999, 113
        %v1013 = vpop.permute.xlu0 %1012
        %1014 = vrot.lane.b32.xlu0 %v1000, 113
        %v1015 = vpop.permute.xlu0 %1014
        %1016 = vrot.lane.b32.xlu0 %v1001, 113
        %v1017 = vpop.permute.xlu0 %1016
        %1018 = vrot.lane.b32.xlu0 %v1002, 113
        %v1019 = vpop.permute.xlu0 %1018
        %1020 = vrot.lane.b32.xlu0 %v1003, 113
        %v1021 = vpop.permute.xlu0 %1020
        %vm1022 = vcmask 924672
        %v1023 = vsel %vm1022, %v1011, %v1013
        %v1024 = vsel %vm1022, %v1013, %v1015
        %v1025 = vsel %vm1022, %v1017, %v1019
        %v1026 = vsel %vm1022, %v1019, %v1021
        %v1031 = vsel %vm377, %v1023, 0.0
        %v1032 = vsel %vm378, %v1024, 0.0
        %v1033 = vsel %vm377, %v1025, 0.0
        %v1034 = vsel %vm378, %v1026, 0.0
        %1035 = vst [vmem:[#allocation4 + $0x200] sm:$0xff] %v1031
        %1036 = vst [vmem:[#allocation4 + $0x208] sm:$0xff] %v1032
        %1037 = vst [vmem:[#allocation4 + $0x210] sm:$0xff] %v1033
        %1038 = vst [vmem:[#allocation4 + $0x218] sm:$0xff] %v1034
        %v1039 = vld [vmem:[#allocation2 + $0x8] sm:$0xff]
        %v1040 = vld [vmem:[#allocation2 + $0x10] sm:$0xff]
        %v1041 = vld [vmem:[#allocation2 + $0x18] sm:$0xff]
        %v1042 = vld [vmem:[#allocation2 + $0x28] sm:$0xff]
        %v1043 = vld [vmem:[#allocation2 + $0x30] sm:$0xff]
        %v1044 = vld [vmem:[#allocation2 + $0x38] sm:$0xff]
        %1048 = vrot.lane.b32.xlu0 %v1039, 112
        %v1049 = vpop.permute.xlu0 %1048
        %1050 = vrot.lane.b32.xlu0 %v1040, 112
        %v1051 = vpop.permute.xlu0 %1050
        %1052 = vrot.lane.b32.xlu0 %v1041, 112
        %v1053 = vpop.permute.xlu0 %1052
        %vm1054 = vcmask 916480
        %v1055 = vsel %vm1054, %v1049, %v1051
        %v1056 = vsel %vm1054, %v1051, %v1053
        %1059 = vst [vmem:[#allocation4 + $0x220] sm:$0xff] %v1055
        %1060 = vst [vmem:[#allocation4 + $0x228] sm:$0xff] %v1056
        %1064 = vrot.lane.b32.xlu0 %v1042, 112
        %v1065 = vpop.permute.xlu0 %1064
        %1066 = vrot.lane.b32.xlu0 %v1043, 112
        %v1067 = vpop.permute.xlu0 %1066
        %1068 = vrot.lane.b32.xlu0 %v1044, 112
        %v1069 = vpop.permute.xlu0 %1068
        %v1070 = vsel %vm1054, %v1065, %v1067
        %v1071 = vsel %vm1054, %v1067, %v1069
        %1074 = vst [vmem:[#allocation4 + $0x230] sm:$0xff] %v1070
        %1075 = vst [vmem:[#allocation4 + $0x238] sm:$0xff] %v1071
        %v1076 = vld [vmem:[#allocation2 + $0x8] sm:$0xff]
        %v1077 = vld [vmem:[#allocation2 + $0x10] sm:$0xff]
        %v1078 = vld [vmem:[#allocation2 + $0x18] sm:$0xff]
        %v1079 = vld [vmem:[#allocation2 + $0x28] sm:$0xff]
        %v1080 = vld [vmem:[#allocation2 + $0x30] sm:$0xff]
        %v1081 = vld [vmem:[#allocation2 + $0x38] sm:$0xff]
        %1088 = vrot.lane.b32.xlu0 %v1076, 111
        %v1089 = vpop.permute.xlu0 %1088
        %1090 = vrot.lane.b32.xlu0 %v1077, 111
        %v1091 = vpop.permute.xlu0 %1090
        %1092 = vrot.lane.b32.xlu0 %v1078, 111
        %v1093 = vpop.permute.xlu0 %1092
        %1094 = vrot.lane.b32.xlu0 %v1079, 111
        %v1095 = vpop.permute.xlu0 %1094
        %1096 = vrot.lane.b32.xlu0 %v1080, 111
        %v1097 = vpop.permute.xlu0 %1096
        %1098 = vrot.lane.b32.xlu0 %v1081, 111
        %v1099 = vpop.permute.xlu0 %1098
        %vm1100 = vcmask 908288
        %v1101 = vsel %vm1100, %v1089, %v1091
        %v1102 = vsel %vm1100, %v1091, %v1093
        %v1103 = vsel %vm1100, %v1095, %v1097
        %v1104 = vsel %vm1100, %v1097, %v1099
        %v1109 = vsel %vm379, %v1101, 0.0
        %v1110 = vsel %vm380, %v1102, 0.0
        %v1111 = vsel %vm379, %v1103, 0.0
        %v1112 = vsel %vm380, %v1104, 0.0
        %1113 = vst [vmem:[#allocation4 + $0x240] sm:$0xff] %v1109
        %1114 = vst [vmem:[#allocation4 + $0x248] sm:$0xff] %v1110
        %1115 = vst [vmem:[#allocation4 + $0x250] sm:$0xff] %v1111
        %1116 = vst [vmem:[#allocation4 + $0x258] sm:$0xff] %v1112
        %v1117 = vld [vmem:[#allocation2 + $0x8] sm:$0xff]
        %v1118 = vld [vmem:[#allocation2 + $0x10] sm:$0xff]
        %v1119 = vld [vmem:[#allocation2 + $0x18] sm:$0xff]
        %v1120 = vld [vmem:[#allocation2 + $0x28] sm:$0xff]
        %v1121 = vld [vmem:[#allocation2 + $0x30] sm:$0xff]
        %v1122 = vld [vmem:[#allocation2 + $0x38] sm:$0xff]
        %1129 = vrot.lane.b32.xlu0 %v1117, 110
        %v1130 = vpop.permute.xlu0 %1129
        %1131 = vrot.lane.b32.xlu0 %v1118, 110
        %v1132 = vpop.permute.xlu0 %1131
        %1133 = vrot.lane.b32.xlu0 %v1119, 110
        %v1134 = vpop.permute.xlu0 %1133
        %1135 = vrot.lane.b32.xlu0 %v1120, 110
        %v1136 = vpop.permute.xlu0 %1135
        %1137 = vrot.lane.b32.xlu0 %v1121, 110
        %v1138 = vpop.permute.xlu0 %1137
        %1139 = vrot.lane.b32.xlu0 %v1122, 110
        %v1140 = vpop.permute.xlu0 %1139
        %vm1141 = vcmask 900096
        %v1142 = vsel %vm1141, %v1130, %v1132
        %v1143 = vsel %vm1141, %v1132, %v1134
        %v1144 = vsel %vm1141, %v1136, %v1138
        %v1145 = vsel %vm1141, %v1138, %v1140
        %v1150 = vsel %vm381, %v1142, 0.0
        %v1151 = vsel %vm382, %v1143, 0.0
        %v1152 = vsel %vm381, %v1144, 0.0
        %v1153 = vsel %vm382, %v1145, 0.0
        %1154 = vst [vmem:[#allocation4 + $0x260] sm:$0xff] %v1150
        %1155 = vst [vmem:[#allocation4 + $0x268] sm:$0xff] %v1151
        %1156 = vst [vmem:[#allocation4 + $0x270] sm:$0xff] %v1152
        %1157 = vst [vmem:[#allocation4 + $0x278] sm:$0xff] %v1153
        %v1158 = vld [vmem:[#allocation2 + $0x8] sm:$0xff]
        %v1159 = vld [vmem:[#allocation2 + $0x10] sm:$0xff]
        %v1160 = vld [vmem:[#allocation2 + $0x18] sm:$0xff]
        %v1161 = vld [vmem:[#allocation2 + $0x28] sm:$0xff]
        %v1162 = vld [vmem:[#allocation2 + $0x30] sm:$0xff]
        %v1163 = vld [vmem:[#allocation2 + $0x38] sm:$0xff]
        %1170 = vrot.lane.b32.xlu0 %v1158, 98
        %v1171 = vpop.permute.xlu0 %1170
        %1172 = vrot.lane.b32.xlu0 %v1159, 98
        %v1173 = vpop.permute.xlu0 %1172
        %1174 = vrot.lane.b32.xlu0 %v1160, 98
        %v1175 = vpop.permute.xlu0 %1174
        %1176 = vrot.lane.b32.xlu0 %v1161, 98
        %v1177 = vpop.permute.xlu0 %1176
        %1178 = vrot.lane.b32.xlu0 %v1162, 98
        %v1179 = vpop.permute.xlu0 %1178
        %1180 = vrot.lane.b32.xlu0 %v1163, 98
        %v1181 = vpop.permute.xlu0 %1180
        %vm1182 = vcmask 801792
        %v1183 = vsel %vm1182, %v1171, %v1173
        %v1184 = vsel %vm1182, %v1173, %v1175
        %v1185 = vsel %vm1182, %v1177, %v1179
        %v1186 = vsel %vm1182, %v1179, %v1181
        %v1191 = vsel %vm375, %v1183, 0.0
        %v1192 = vsel %vm376, %v1184, 0.0
        %v1193 = vsel %vm375, %v1185, 0.0
        %v1194 = vsel %vm376, %v1186, 0.0
        %1195 = vst [vmem:[#allocation4 + $0x280] sm:$0xff] %v1191
        %1196 = vst [vmem:[#allocation4 + $0x288] sm:$0xff] %v1192
        %1197 = vst [vmem:[#allocation4 + $0x290] sm:$0xff] %v1193
        %1198 = vst [vmem:[#allocation4 + $0x298] sm:$0xff] %v1194
        %v1199 = vld [vmem:[#allocation2 + $0x8] sm:$0xff]
        %v1200 = vld [vmem:[#allocation2 + $0x10] sm:$0xff]
        %v1201 = vld [vmem:[#allocation2 + $0x18] sm:$0xff]
        %v1202 = vld [vmem:[#allocation2 + $0x28] sm:$0xff]
        %v1203 = vld [vmem:[#allocation2 + $0x30] sm:$0xff]
        %v1204 = vld [vmem:[#allocation2 + $0x38] sm:$0xff]
        %1211 = vrot.lane.b32.xlu0 %v1199, 97
        %v1212 = vpop.permute.xlu0 %1211
        %1213 = vrot.lane.b32.xlu0 %v1200, 97
        %v1214 = vpop.permute.xlu0 %1213
        %1215 = vrot.lane.b32.xlu0 %v1201, 97
        %v1216 = vpop.permute.xlu0 %1215
        %1217 = vrot.lane.b32.xlu0 %v1202, 97
        %v1218 = vpop.permute.xlu0 %1217
        %1219 = vrot.lane.b32.xlu0 %v1203, 97
        %v1220 = vpop.permute.xlu0 %1219
        %1221 = vrot.lane.b32.xlu0 %v1204, 97
        %v1222 = vpop.permute.xlu0 %1221
        %vm1223 = vcmask 793600
        %v1224 = vsel %vm1223, %v1212, %v1214
        %v1225 = vsel %vm1223, %v1214, %v1216
        %v1226 = vsel %vm1223, %v1218, %v1220
        %v1227 = vsel %vm1223, %v1220, %v1222
        %v1232 = vsel %vm377, %v1224, 0.0
        %v1233 = vsel %vm378, %v1225, 0.0
        %v1234 = vsel %vm377, %v1226, 0.0
        %v1235 = vsel %vm378, %v1227, 0.0
        %1236 = vst [vmem:[#allocation4 + $0x2a0] sm:$0xff] %v1232
        %1237 = vst [vmem:[#allocation4 + $0x2a8] sm:$0xff] %v1233
        %1238 = vst [vmem:[#allocation4 + $0x2b0] sm:$0xff] %v1234
        %1239 = vst [vmem:[#allocation4 + $0x2b8] sm:$0xff] %v1235
        %v1240 = vld [vmem:[#allocation2 + $0x8] sm:$0xff]
        %v1241 = vld [vmem:[#allocation2 + $0x10] sm:$0xff]
        %v1242 = vld [vmem:[#allocation2 + $0x18] sm:$0xff]
        %v1243 = vld [vmem:[#allocation2 + $0x28] sm:$0xff]
        %v1244 = vld [vmem:[#allocation2 + $0x30] sm:$0xff]
        %v1245 = vld [vmem:[#allocation2 + $0x38] sm:$0xff]
        %1249 = vrot.lane.b32.xlu0 %v1240, 96
        %v1250 = vpop.permute.xlu0 %1249
        %1251 = vrot.lane.b32.xlu0 %v1241, 96
        %v1252 = vpop.permute.xlu0 %1251
        %1253 = vrot.lane.b32.xlu0 %v1242, 96
        %v1254 = vpop.permute.xlu0 %1253
        %vm1255 = vcmask 785408
        %v1256 = vsel %vm1255, %v1250, %v1252
        %v1257 = vsel %vm1255, %v1252, %v1254
        %1260 = vst [vmem:[#allocation4 + $0x2c0] sm:$0xff] %v1256
        %1261 = vst [vmem:[#allocation4 + $0x2c8] sm:$0xff] %v1257
        %1265 = vrot.lane.b32.xlu0 %v1243, 96
        %v1266 = vpop.permute.xlu0 %1265
        %1267 = vrot.lane.b32.xlu0 %v1244, 96
        %v1268 = vpop.permute.xlu0 %1267
        %1269 = vrot.lane.b32.xlu0 %v1245, 96
        %v1270 = vpop.permute.xlu0 %1269
        %v1271 = vsel %vm1255, %v1266, %v1268
        %v1272 = vsel %vm1255, %v1268, %v1270
        %1275 = vst [vmem:[#allocation4 + $0x2d0] sm:$0xff] %v1271
        %1276 = vst [vmem:[#allocation4 + $0x2d8] sm:$0xff] %v1272
        %v1277 = vld [vmem:[#allocation2 + $0x8] sm:$0xff]
        %v1278 = vld [vmem:[#allocation2 + $0x10] sm:$0xff]
        %v1279 = vld [vmem:[#allocation2 + $0x18] sm:$0xff]
        %v1280 = vld [vmem:[#allocation2 + $0x28] sm:$0xff]
        %v1281 = vld [vmem:[#allocation2 + $0x30] sm:$0xff]
        %v1282 = vld [vmem:[#allocation2 + $0x38] sm:$0xff]
        %1289 = vrot.lane.b32.xlu0 %v1277, 95
        %v1290 = vpop.permute.xlu0 %1289
        %1291 = vrot.lane.b32.xlu0 %v1278, 95
        %v1292 = vpop.permute.xlu0 %1291
        %1293 = vrot.lane.b32.xlu0 %v1279, 95
        %v1294 = vpop.permute.xlu0 %1293
        %1295 = vrot.lane.b32.xlu0 %v1280, 95
        %v1296 = vpop.permute.xlu0 %1295
        %1297 = vrot.lane.b32.xlu0 %v1281, 95
        %v1298 = vpop.permute.xlu0 %1297
        %1299 = vrot.lane.b32.xlu0 %v1282, 95
        %v1300 = vpop.permute.xlu0 %1299
        %vm1301 = vcmask 777216
        %v1302 = vsel %vm1301, %v1290, %v1292
        %v1303 = vsel %vm1301, %v1292, %v1294
        %v1304 = vsel %vm1301, %v1296, %v1298
        %v1305 = vsel %vm1301, %v1298, %v1300
        %v1310 = vsel %vm379, %v1302, 0.0
        %v1311 = vsel %vm380, %v1303, 0.0
        %v1312 = vsel %vm379, %v1304, 0.0
        %v1313 = vsel %vm380, %v1305, 0.0
        %1314 = vst [vmem:[#allocation4 + $0x2e0] sm:$0xff] %v1310
        %1315 = vst [vmem:[#allocation4 + $0x2e8] sm:$0xff] %v1311
        %1316 = vst [vmem:[#allocation4 + $0x2f0] sm:$0xff] %v1312
        %1317 = vst [vmem:[#allocation4 + $0x2f8] sm:$0xff] %v1313
        %v1318 = vld [vmem:[#allocation2 + $0x8] sm:$0xff]
        %v1319 = vld [vmem:[#allocation2 + $0x10] sm:$0xff]
        %v1320 = vld [vmem:[#allocation2 + $0x18] sm:$0xff]
        %v1321 = vld [vmem:[#allocation2 + $0x28] sm:$0xff]
        %v1322 = vld [vmem:[#allocation2 + $0x30] sm:$0xff]
        %v1323 = vld [vmem:[#allocation2 + $0x38] sm:$0xff]
        %1330 = vrot.lane.b32.xlu0 %v1318, 94
        %v1331 = vpop.permute.xlu0 %1330
        %1332 = vrot.lane.b32.xlu0 %v1319, 94
        %v1333 = vpop.permute.xlu0 %1332
        %1334 = vrot.lane.b32.xlu0 %v1320, 94
        %v1335 = vpop.permute.xlu0 %1334
        %1336 = vrot.lane.b32.xlu0 %v1321, 94
        %v1337 = vpop.permute.xlu0 %1336
        %1338 = vrot.lane.b32.xlu0 %v1322, 94
        %v1339 = vpop.permute.xlu0 %1338
        %1340 = vrot.lane.b32.xlu0 %v1323, 94
        %v1341 = vpop.permute.xlu0 %1340
        %vm1342 = vcmask 769024
        %v1343 = vsel %vm1342, %v1331, %v1333
        %v1344 = vsel %vm1342, %v1333, %v1335
        %v1345 = vsel %vm1342, %v1337, %v1339
        %v1346 = vsel %vm1342, %v1339, %v1341
        %v1351 = vsel %vm381, %v1343, 0.0
        %v1352 = vsel %vm382, %v1344, 0.0
        %v1353 = vsel %vm381, %v1345, 0.0
        %v1354 = vsel %vm382, %v1346, 0.0
        %1355 = vst [vmem:[#allocation4 + $0x300] sm:$0xff] %v1351
        %1356 = vst [vmem:[#allocation4 + $0x308] sm:$0xff] %v1352
        %1357 = vst [vmem:[#allocation4 + $0x310] sm:$0xff] %v1353
        %1358 = vst [vmem:[#allocation4 + $0x318] sm:$0xff] %v1354
        %v1359 = vld [vmem:[%s1] sm:$0xff]
        %v1360 = vld [vmem:[%s1 + $0x8] sm:$0xff]
        %v1361 = vld [vmem:[#allocation4] sm:$0xff]
        %v1362 = vld [vmem:[#allocation4 + $0x8] sm:$0xff]
        %v1363 = vld [vmem:[#allocation4 + $0x10] sm:$0xff]
        %v1364 = vld [vmem:[#allocation4 + $0x18] sm:$0xff]
        %v1365 = vld [vmem:[#allocation4 + $0x20] sm:$0xff]
        %v1366 = vld [vmem:[#allocation4 + $0x28] sm:$0xff]
        %v1367 = vld [vmem:[#allocation4 + $0x30] sm:$0xff]
        %v1368 = vld [vmem:[#allocation4 + $0x38] sm:$0xff]
        %v1369 = vld [vmem:[#allocation4 + $0x40] sm:$0xff]
        %v1370 = vld [vmem:[#allocation4 + $0x48] sm:$0xff]
        %v1371 = vld [vmem:[#allocation4 + $0x50] sm:$0xff]
        %v1372 = vld [vmem:[#allocation4 + $0x58] sm:$0xff]
        %v1373 = vld [vmem:[#allocation4 + $0x60] sm:$0xff]
        %v1374 = vld [vmem:[#allocation4 + $0x68] sm:$0xff]
        %v1375 = vld [vmem:[#allocation4 + $0x70] sm:$0xff]
        %v1376 = vld [vmem:[#allocation4 + $0x78] sm:$0xff]
        %v1377 = vld [vmem:[#allocation4 + $0x80] sm:$0xff]
        %v1378 = vld [vmem:[#allocation4 + $0x88] sm:$0xff]
        %v1379 = vld [vmem:[#allocation4 + $0x90] sm:$0xff]
        %v1380 = vld [vmem:[#allocation4 + $0x98] sm:$0xff]
        %v1381 = vld [vmem:[#allocation4 + $0xa0] sm:$0xff]
        %v1382 = vld [vmem:[#allocation4 + $0xa8] sm:$0xff]
        %v1383 = vld [vmem:[#allocation4 + $0xb0] sm:$0xff]
        %v1384 = vld [vmem:[#allocation4 + $0xb8] sm:$0xff]
        %v1385 = vld [vmem:[#allocation4 + $0xc0] sm:$0xff]
        %v1386 = vld [vmem:[#allocation4 + $0xc8] sm:$0xff]
        %v1387 = vld [vmem:[#allocation4 + $0xd0] sm:$0xff]
        %v1388 = vld [vmem:[#allocation4 + $0xd8] sm:$0xff]
        %v1389 = vld [vmem:[#allocation4 + $0xe0] sm:$0xff]
        %v1390 = vld [vmem:[#allocation4 + $0xe8] sm:$0xff]
        %v1391 = vld [vmem:[#allocation4 + $0xf0] sm:$0xff]
        %v1392 = vld [vmem:[#allocation4 + $0xf8] sm:$0xff]
        %v1393 = vld [vmem:[#allocation4 + $0x100] sm:$0xff]
        %v1394 = vld [vmem:[#allocation4 + $0x108] sm:$0xff]
        %v1395 = vld [vmem:[#allocation4 + $0x110] sm:$0xff]
        %v1396 = vld [vmem:[#allocation4 + $0x118] sm:$0xff]
        %v1397 = vld [vmem:[#allocation4 + $0x120] sm:$0xff]
        %v1398 = vld [vmem:[#allocation4 + $0x128] sm:$0xff]
        %v1399 = vld [vmem:[#allocation4 + $0x130] sm:$0xff]
        %v1400 = vld [vmem:[#allocation4 + $0x138] sm:$0xff]
        %v1401 = vld [vmem:[#allocation4 + $0x140] sm:$0xff]
        %v1402 = vld [vmem:[#allocation4 + $0x148] sm:$0xff]
        %v1403 = vld [vmem:[#allocation4 + $0x150] sm:$0xff]
        %v1404 = vld [vmem:[#allocation4 + $0x158] sm:$0xff]
        %v1405 = vld [vmem:[#allocation4 + $0x160] sm:$0xff]
        %v1406 = vld [vmem:[#allocation4 + $0x168] sm:$0xff]
        %v1407 = vld [vmem:[#allocation4 + $0x170] sm:$0xff]
        %v1408 = vld [vmem:[#allocation4 + $0x178] sm:$0xff]
        %v1409 = vld [vmem:[#allocation4 + $0x180] sm:$0xff]
        %v1410 = vld [vmem:[#allocation4 + $0x188] sm:$0xff]
        %v1411 = vld [vmem:[#allocation4 + $0x190] sm:$0xff]
        %v1412 = vld [vmem:[#allocation4 + $0x198] sm:$0xff]
        %v1413 = vld [vmem:[#allocation4 + $0x1a0] sm:$0xff]
        %v1414 = vld [vmem:[#allocation4 + $0x1a8] sm:$0xff]
        %v1415 = vld [vmem:[#allocation4 + $0x1b0] sm:$0xff]
        %v1416 = vld [vmem:[#allocation4 + $0x1b8] sm:$0xff]
        %v1417 = vld [vmem:[#allocation4 + $0x1c0] sm:$0xff]
        %v1418 = vld [vmem:[#allocation4 + $0x1c8] sm:$0xff]
        %v1419 = vld [vmem:[#allocation4 + $0x1d0] sm:$0xff]
        %v1420 = vld [vmem:[#allocation4 + $0x1d8] sm:$0xff]
        %v1421 = vld [vmem:[#allocation4 + $0x1e0] sm:$0xff]
        %v1422 = vld [vmem:[#allocation4 + $0x1e8] sm:$0xff]
        %v1423 = vld [vmem:[#allocation4 + $0x1f0] sm:$0xff]
        %v1424 = vld [vmem:[#allocation4 + $0x1f8] sm:$0xff]
        %v1425 = vld [vmem:[#allocation4 + $0x200] sm:$0xff]
        %v1426 = vld [vmem:[#allocation4 + $0x208] sm:$0xff]
        %v1427 = vld [vmem:[#allocation4 + $0x210] sm:$0xff]
        %v1428 = vld [vmem:[#allocation4 + $0x218] sm:$0xff]
        %v1429 = vld [vmem:[#allocation4 + $0x220] sm:$0xff]
        %v1430 = vld [vmem:[#allocation4 + $0x228] sm:$0xff]
        %v1431 = vld [vmem:[#allocation4 + $0x230] sm:$0xff]
        %v1432 = vld [vmem:[#allocation4 + $0x238] sm:$0xff]
        %v1433 = vld [vmem:[#allocation4 + $0x240] sm:$0xff]
        %v1434 = vld [vmem:[#allocation4 + $0x248] sm:$0xff]
        %v1435 = vld [vmem:[#allocation4 + $0x250] sm:$0xff]
        %v1436 = vld [vmem:[#allocation4 + $0x258] sm:$0xff]
        %v1437 = vld [vmem:[#allocation4 + $0x260] sm:$0xff]
        %v1438 = vld [vmem:[#allocation4 + $0x268] sm:$0xff]
        %v1439 = vld [vmem:[#allocation4 + $0x270] sm:$0xff]
        %v1440 = vld [vmem:[#allocation4 + $0x278] sm:$0xff]
        %v1441 = vld [vmem:[#allocation4 + $0x280] sm:$0xff]
        %v1442 = vld [vmem:[#allocation4 + $0x288] sm:$0xff]
        %v1443 = vld [vmem:[#allocation4 + $0x290] sm:$0xff]
        %v1444 = vld [vmem:[#allocation4 + $0x298] sm:$0xff]
        %v1445 = vld [vmem:[#allocation4 + $0x2a0] sm:$0xff]
        %v1446 = vld [vmem:[#allocation4 + $0x2a8] sm:$0xff]
        %v1447 = vld [vmem:[#allocation4 + $0x2b0] sm:$0xff]
        %v1448 = vld [vmem:[#allocation4 + $0x2b8] sm:$0xff]
        %v1449 = vld [vmem:[#allocation4 + $0x2c0] sm:$0xff]
        %v1450 = vld [vmem:[#allocation4 + $0x2c8] sm:$0xff]
        %v1451 = vld [vmem:[#allocation4 + $0x2d0] sm:$0xff]
        %v1452 = vld [vmem:[#allocation4 + $0x2d8] sm:$0xff]
        %v1453 = vld [vmem:[#allocation4 + $0x2e0] sm:$0xff]
        %v1454 = vld [vmem:[#allocation4 + $0x2e8] sm:$0xff]
        %v1455 = vld [vmem:[#allocation4 + $0x2f0] sm:$0xff]
        %v1456 = vld [vmem:[#allocation4 + $0x2f8] sm:$0xff]
        %v1457 = vld [vmem:[#allocation4 + $0x300] sm:$0xff]
        %v1458 = vld [vmem:[#allocation4 + $0x308] sm:$0xff]
        %v1459 = vld [vmem:[#allocation4 + $0x310] sm:$0xff]
        %v1460 = vld [vmem:[#allocation4 + $0x318] sm:$0xff]
        %v1461 = vld [vmem:[%s2] sm:$0xff]
        %1463 = vset.pattern.permute.xlu0 0
        %1464 = vperm.xlu0 %1463, %v1461
        %v1465 = vpop.permute.xlu0 %1464
        %vm1467 = vcmask 588800
        %v1469 = vsel %vm1467, %v1360, 0
        %1471 = vmatpush.msra.mxu0 %v1421
        %1472 = vmatpush.msra.mxu0 %v1417
        %1473 = vmatpush.msra.mxu0 %v1413
        %1474 = vmatpush.msra.mxu0 %v1409
        %1475 = vmatpush.msra.mxu0 %v1405
        %1476 = vmatpush.msra.mxu0 %v1401
        %1477 = vmatpush.msra.mxu0 %v1397
        %1478 = vmatpush.msra.mxu0 %v1393
        %1479 = vmatpush.msra.mxu0 %v1389
        %1480 = vmatpush.msra.mxu0 %v1385
        %1481 = vmatpush.msra.mxu0 %v1381
        %1482 = vmatpush.msra.mxu0 %v1377
        %1483 = vmatpush.msra.mxu0 %v1373
        %1484 = vmatpush.msra.mxu0 %v1369
        %1485 = vmatpush.msra.mxu0 %v1365
        %1486 = vmatpush.msra.mxu0 %v1361
        %1487 = vmatmul.f32.gmra.mxu0 %v1359
        %v1488 = vpop.f32.mrf.mxu0
        %v1489 = vadd.f32 %v1465, %v1488
        %1490 = vdwg.mxu0
        %1491 = vmatpush.msra.mxu0 0.0
        %1492 = vmatpush.msra.mxu0 0.0
        %1493 = vmatpush.msra.mxu0 0.0
        %1494 = vmatpush.msra.mxu0 0.0
        %1495 = vmatpush.msra.mxu0 0.0
        %1496 = vmatpush.msra.mxu0 0.0
        %1497 = vmatpush.msra.mxu0 0.0
        %1498 = vmatpush.msra.mxu0 %v1457
        %1499 = vmatpush.msra.mxu0 %v1453
        %1500 = vmatpush.msra.mxu0 %v1449
        %1501 = vmatpush.msra.mxu0 %v1445
        %1502 = vmatpush.msra.mxu0 %v1441
        %1503 = vmatpush.msra.mxu0 %v1437
        %1504 = vmatpush.msra.mxu0 %v1433
        %1505 = vmatpush.msra.mxu0 %v1429
        %1506 = vmatpush.msra.mxu0 %v1425
        %1507 = vmatmul.f32.gmra.mxu0 %v1469
        %v1508 = vpop.f32.mrf.mxu0
        %v1509 = vadd.f32 %v1489, %v1508
        %1510 = vdwg.mxu0
        %1511 = vmatpush.msra.mxu0 %v1422
        %1512 = vmatpush.msra.mxu0 %v1418
        %1513 = vmatpush.msra.mxu0 %v1414
        %1514 = vmatpush.msra.mxu0 %v1410
        %1515 = vmatpush.msra.mxu0 %v1406
        %1516 = vmatpush.msra.mxu0 %v1402
        %1517 = vmatpush.msra.mxu0 %v1398
        %1518 = vmatpush.msra.mxu0 %v1394
        %1519 = vmatpush.msra.mxu0 %v1390
        %1520 = vmatpush.msra.mxu0 %v1386
        %1521 = vmatpush.msra.mxu0 %v1382
        %1522 = vmatpush.msra.mxu0 %v1378
        %1523 = vmatpush.msra.mxu0 %v1374
        %1524 = vmatpush.msra.mxu0 %v1370
        %1525 = vmatpush.msra.mxu0 %v1366
        %1526 = vmatpush.msra.mxu0 %v1362
        %1527 = vmatmul.f32.gmra.mxu0 %v1359
        %v1528 = vpop.f32.mrf.mxu0
        %v1529 = vadd.f32 %v1465, %v1528
        %1530 = vdwg.mxu0
        %1531 = vmatpush.msra.mxu0 0.0
        %1532 = vmatpush.msra.mxu0 0.0
        %1533 = vmatpush.msra.mxu0 0.0
        %1534 = vmatpush.msra.mxu0 0.0
        %1535 = vmatpush.msra.mxu0 0.0
        %1536 = vmatpush.msra.mxu0 0.0
        %1537 = vmatpush.msra.mxu0 0.0
        %1538 = vmatpush.msra.mxu0 %v1458
        %1539 = vmatpush.msra.mxu0 %v1454
        %1540 = vmatpush.msra.mxu0 %v1450
        %1541 = vmatpush.msra.mxu0 %v1446
        %1542 = vmatpush.msra.mxu0 %v1442
        %1543 = vmatpush.msra.mxu0 %v1438
        %1544 = vmatpush.msra.mxu0 %v1434
        %1545 = vmatpush.msra.mxu0 %v1430
        %1546 = vmatpush.msra.mxu0 %v1426
        %1547 = vmatmul.f32.gmra.mxu0 %v1469
        %v1548 = vpop.f32.mrf.mxu0
        %v1549 = vadd.f32 %v1529, %v1548
        %1550 = vdwg.mxu0
        %1551 = vmatpush.msra.mxu0 %v1423
        %1552 = vmatpush.msra.mxu0 %v1419
        %1553 = vmatpush.msra.mxu0 %v1415
        %1554 = vmatpush.msra.mxu0 %v1411
        %1555 = vmatpush.msra.mxu0 %v1407
        %1556 = vmatpush.msra.mxu0 %v1403
        %1557 = vmatpush.msra.mxu0 %v1399
        %1558 = vmatpush.msra.mxu0 %v1395
        %1559 = vmatpush.msra.mxu0 %v1391
        %1560 = vmatpush.msra.mxu0 %v1387
        %1561 = vmatpush.msra.mxu0 %v1383
        %1562 = vmatpush.msra.mxu0 %v1379
        %1563 = vmatpush.msra.mxu0 %v1375
        %1564 = vmatpush.msra.mxu0 %v1371
        %1565 = vmatpush.msra.mxu0 %v1367
        %1566 = vmatpush.msra.mxu0 %v1363
        %1567 = vmatmul.f32.gmra.mxu0 %v1359
        %v1568 = vpop.f32.mrf.mxu0
        %v1569 = vadd.f32 %v1465, %v1568
        %1570 = vdwg.mxu0
        %1571 = vmatpush.msra.mxu0 0.0
        %1572 = vmatpush.msra.mxu0 0.0
        %1573 = vmatpush.msra.mxu0 0.0
        %1574 = vmatpush.msra.mxu0 0.0
        %1575 = vmatpush.msra.mxu0 0.0
        %1576 = vmatpush.msra.mxu0 0.0
        %1577 = vmatpush.msra.mxu0 0.0
        %1578 = vmatpush.msra.mxu0 %v1459
        %1579 = vmatpush.msra.mxu0 %v1455
        %1580 = vmatpush.msra.mxu0 %v1451
        %1581 = vmatpush.msra.mxu0 %v1447
        %1582 = vmatpush.msra.mxu0 %v1443
        %1583 = vmatpush.msra.mxu0 %v1439
        %1584 = vmatpush.msra.mxu0 %v1435
        %1585 = vmatpush.msra.mxu0 %v1431
        %1586 = vmatpush.msra.mxu0 %v1427
        %1587 = vmatmul.f32.gmra.mxu0 %v1469
        %v1588 = vpop.f32.mrf.mxu0
        %v1589 = vadd.f32 %v1569, %v1588
        %1590 = vdwg.mxu0
        %1591 = vmatpush.msra.mxu0 %v1424
        %1592 = vmatpush.msra.mxu0 %v1420
        %1593 = vmatpush.msra.mxu0 %v1416
        %1594 = vmatpush.msra.mxu0 %v1412
        %1595 = vmatpush.msra.mxu0 %v1408
        %1596 = vmatpush.msra.mxu0 %v1404
        %1597 = vmatpush.msra.mxu0 %v1400
        %1598 = vmatpush.msra.mxu0 %v1396
        %1599 = vmatpush.msra.mxu0 %v1392
        %1600 = vmatpush.msra.mxu0 %v1388
        %1601 = vmatpush.msra.mxu0 %v1384
        %1602 = vmatpush.msra.mxu0 %v1380
        %1603 = vmatpush.msra.mxu0 %v1376
        %1604 = vmatpush.msra.mxu0 %v1372
        %1605 = vmatpush.msra.mxu0 %v1368
        %1606 = vmatpush.msra.mxu0 %v1364
        %1607 = vmatmul.f32.gmra.mxu0 %v1359
        %v1608 = vpop.f32.mrf.mxu0
        %v1609 = vadd.f32 %v1465, %v1608
        %1610 = vdwg.mxu0
        %1611 = vmatpush.msra.mxu0 0.0
        %1612 = vmatpush.msra.mxu0 0.0
        %1613 = vmatpush.msra.mxu0 0.0
        %1614 = vmatpush.msra.mxu0 0.0
        %1615 = vmatpush.msra.mxu0 0.0
        %1616 = vmatpush.msra.mxu0 0.0
        %1617 = vmatpush.msra.mxu0 0.0
        %1618 = vmatpush.msra.mxu0 %v1460
        %1619 = vmatpush.msra.mxu0 %v1456
        %1620 = vmatpush.msra.mxu0 %v1452
        %1621 = vmatpush.msra.mxu0 %v1448
        %1622 = vmatpush.msra.mxu0 %v1444
        %1623 = vmatpush.msra.mxu0 %v1440
        %1624 = vmatpush.msra.mxu0 %v1436
        %1625 = vmatpush.msra.mxu0 %v1432
        %1626 = vmatpush.msra.mxu0 %v1428
        %1627 = vmatmul.f32.gmra.mxu0 %v1469
        %v1628 = vpop.f32.mrf.mxu0
        %v1629 = vadd.f32 %v1609, %v1628
        %1630 = vdwg.mxu0
        %v1631 = vmax.f32 %v1509, 0.0
        %v1632 = vmax.f32 %v1549, 0.0
        %v1633 = vmax.f32 %v1589, 0.0
        %v1634 = vmax.f32 %v1629, 0.0
        %vm1635 = vcmp.ge.s32.totalorder %v373, 3
        %vm1636 = vcmp.ge.s32.totalorder %v374, 3
        %vm1637 = vcmp.lt.s32.totalorder %v373, 13
        %vm1638 = vcmp.lt.s32.totalorder %v374, 13
        %v1639 = vld [vmem:[%s3] sm:$0xff]
        %v1640 = vld [vmem:[%s4] sm:$0xff]
        %v1641 = vld [vmem:[%s5] sm:$0xff]
        %v1642 = vld [vmem:[%s5 + $0x8] sm:$0xff]
        %v1643 = vld [vmem:[%s6] sm:$0xf]
        %v1644 = vld [vmem:[%s7] sm:$0xf]
        %v1645 = vadd.f32 %v1631, %v1632
        %1646 = vadd.xlane.f32.xlu0 %v1645
        %v1647 = vpop.xlane.xlu0 %1646
        %v1648 = vrcp.pop 256.0
        %v1649 = vmul.f32 256.0, %v1648
        %v1650 = vsub.f32 1.0, %v1649
        %v1651 = vmul.f32 %v1648, %v1650
        %v1652 = vadd.f32 %v1648, %v1651
        %vm1653 = vweird.f32 %v1648
        %v1654 = vsel %vm1653, %v1648, %v1652
        %v1655 = vmul.f32 %v1647, %v1654
        %v1656 = vmax.f32 %v1631, %v1632
        %1657 = vmax.xlane.f32.xlu0 %v1656
        %v1658 = vpop.xlane.xlu0 %1657
        %v1659 = vmul.f32 %v1639, %v1655
        %v1660 = vsel %vm850, %v1659, 0.0
        %v1661 = vrot.slane %v1660, 4
        %v1662 = vadd.f32 %v1660, %v1661
        %v1663 = vrot.slane %v1662, 2
        %v1664 = vadd.f32 %v1662, %v1663
        %v1665 = vrot.slane %v1664, 1
        %v1666 = vadd.f32 %v1664, %v1665
        %v1667 = vmax.f32 %v1666, 0.0
        %v1668 = vmul.f32 %v1640, %v1667
        %v1669 = vadd.f32 %v1668, 0.0
        %v1670 = vmul.f32 %v1639, %v1658
        %v1671 = vsel %vm850, %v1670, 0.0
        %v1672 = vrot.slane %v1671, 4
        %v1673 = vadd.f32 %v1671, %v1672
        %v1674 = vrot.slane %v1673, 2
        %v1675 = vadd.f32 %v1673, %v1674
        %v1676 = vrot.slane %v1675, 1
        %v1677 = vadd.f32 %v1675, %v1676
        %v1678 = vmax.f32 %v1677, 0.0
        %v1679 = vmul.f32 %v1640, %v1678
        %v1680 = vadd.f32 %v1679, 0.0
        %v1681 = vadd.f32 %v1669, %v1680
        %v1682 = vxor.u32 %v1681, 2147483648
        %v1683 = vmul.f32 %v1682, 1.442695
        %v1684 = vpow.pop %v1683
        %v1685 = vadd.f32 %v1684, 1.0
        %v1686 = vrcp.pop %v1685
        %v1687 = vmul.f32 %v1685, %v1686
        %v1688 = vsub.f32 1.0, %v1687
        %v1689 = vmul.f32 %v1686, %v1688
        %v1690 = vadd.f32 %v1686, %v1689
        %vm1691 = vweird.f32 %v1685
        %vm1692 = vweird.f32 %v1686
        %vm1693 = vmor %vm1691, %vm1692
        %v1694 = vsel %vm1693, %v1686, %v1690
        %v1695 = vand.u32 2147483647, %v1685
        %vm1696 = vcmp.eq.f32.partialorder %v1695, 8.507059e+37
        %v1697 = vand.u32 %v1685, 2147483648
        %v1698 = vor.u32 1.1754944e-38, %v1697
        %v1699 = vsel %vm1696, %v1698, %v1694
        %v1700 = vmul.f32 1.0, %v1699
        %1702 = vset.pattern.permute.xlu0 0
        %1703 = vperm.xlu0 %1702, %v1700
        %v1704 = vpop.permute.xlu0 %1703
        %v1706 = vmul.f32 %v1631, %v1704
        %v1707 = vmul.f32 %v1632, %v1704
        %v1708 = vrot.slane %v1706, 4
        %v1709 = vadd.f32 %v1706, %v1708
        %v1710 = vrot.slane %v1709, 2
        %v1711 = vadd.f32 %v1709, %v1710
        %v1712 = vrot.slane %v1711, 1
        %v1713 = vadd.f32 %v1711, %v1712
        %v1714 = vrot.slane %v1707, 4
        %v1715 = vadd.f32 %v1707, %v1714
        %v1716 = vrot.slane %v1715, 2
        %v1717 = vadd.f32 %v1715, %v1716
        %v1718 = vrot.slane %v1717, 1
        %v1719 = vadd.f32 %v1717, %v1718
        %v1720 = vrcp.pop 8.0
        %v1721 = vmul.f32 8.0, %v1720
        %v1722 = vsub.f32 1.0, %v1721
        %v1723 = vmul.f32 %v1720, %v1722
        %v1724 = vadd.f32 %v1720, %v1723
        %vm1725 = vweird.f32 %v1720
        %v1726 = vsel %vm1725, %v1720, %v1724
        %v1727 = vmul.f32 %v1713, %v1726
        %v1728 = vmul.f32 %v1719, %v1726
        %v1729 = vrot.slane %v1706, 4
        %v1730 = vmax.f32 %v1706, %v1729
        %v1731 = vrot.slane %v1730, 2
        %v1732 = vmax.f32 %v1730, %v1731
        %v1733 = vrot.slane %v1732, 1
        %v1734 = vmax.f32 %v1732, %v1733
        %v1735 = vrot.slane %v1707, 4
        %v1736 = vmax.f32 %v1707, %v1735
        %v1737 = vrot.slane %v1736, 2
        %v1738 = vmax.f32 %v1736, %v1737
        %v1739 = vrot.slane %v1738, 1
        %v1740 = vmax.f32 %v1738, %v1739
        %v1743 = vrot.slane %v1728, 7
        %vm1744 = vcmask 1040384
        %v1745 = vsel %vm1744, %v1727, %v1743
        %1746 = vrot.lane.b32.xlu0 %v1745, 48
        %v1747 = vpop.permute.xlu0 %1746
        %v1748 = vrot.slane %v1747, 7
        %vm1749 = vcmask 392192
        %v1750 = vsel %vm1749, %v1748, %v1747
        %v1752 = vlaneseq
        %vm1753 = vcmp.ge.s32.totalorder %v1752, 48
        %vm1754 = vcmp.lt.s32.totalorder %v1752, 304
        %vm1755 = vmand %vm1753, %vm1754
        %s1756 = scalar_lea.vmem [#allocation3], 8
        %1757 = vst.msk [vmem:[%s1756] ss:$8 sm:$0x7] %vm1755, %v1750
        %1758 = vst.msk [vmem:[%s1756] ss:$8 sm:$0x0] %vm1755, %v1750
        %v1761 = vrot.slane %v1740, 7
        %v1762 = vsel %vm1744, %v1734, %v1761
        %1763 = vrot.lane.b32.xlu0 %v1762, 48
        %v1764 = vpop.permute.xlu0 %1763
        %v1765 = vrot.slane %v1764, 7
        %v1766 = vsel %vm1749, %v1765, %v1764
        %s1768 = scalar_lea.vmem [#allocation3], 40
        %1769 = vst.msk [vmem:[%s1768] ss:$8 sm:$0x7] %vm1755, %v1766
        %1770 = vst.msk [vmem:[%s1768] ss:$8 sm:$0x0] %vm1755, %v1766
        %1771 = vrot.lane.b32.xlu0 %v1745, 32
        %v1772 = vpop.permute.xlu0 %1771
        %v1773 = vrot.slane %v1772, 7
        %v1774 = vsel %vm480, %v1773, %v1772
        %vm1776 = vcmp.ge.s32.totalorder %v1752, 32
        %vm1777 = vcmp.lt.s32.totalorder %v1752, 288
        %vm1778 = vmand %vm1776, %vm1777
        %s1779 = scalar_lea.vmem [#allocation3], 9
        %1780 = vst.msk [vmem:[%s1779] ss:$8 sm:$0x7] %vm1778, %v1774
        %1781 = vst.msk [vmem:[%s1779] ss:$8 sm:$0x0] %vm1778, %v1774
        %1782 = vrot.lane.b32.xlu0 %v1762, 32
        %v1783 = vpop.permute.xlu0 %1782
        %v1784 = vrot.slane %v1783, 7
        %v1785 = vsel %vm480, %v1784, %v1783
        %s1787 = scalar_lea.vmem [#allocation3], 41
        %1788 = vst.msk [vmem:[%s1787] ss:$8 sm:$0x7] %vm1778, %v1785
        %1789 = vst.msk [vmem:[%s1787] ss:$8 sm:$0x0] %vm1778, %v1785
        %1790 = vrot.lane.b32.xlu0 %v1745, 16
        %v1791 = vpop.permute.xlu0 %1790
        %v1792 = vrot.slane %v1791, 7
        %v1793 = vsel %vm681, %v1792, %v1791
        %vm1795 = vcmp.ge.s32.totalorder %v1752, 16
        %vm1796 = vcmp.lt.s32.totalorder %v1752, 272
        %vm1797 = vmand %vm1795, %vm1796
        %s1798 = scalar_lea.vmem [#allocation3], 10
        %1799 = vst.msk [vmem:[%s1798] ss:$8 sm:$0x7] %vm1797, %v1793
        %1800 = vst.msk [vmem:[%s1798] ss:$8 sm:$0x0] %vm1797, %v1793
        %1801 = vrot.lane.b32.xlu0 %v1762, 16
        %v1802 = vpop.permute.xlu0 %1801
        %v1803 = vrot.slane %v1802, 7
        %v1804 = vsel %vm681, %v1803, %v1802
        %s1806 = scalar_lea.vmem [#allocation3], 42
        %1807 = vst.msk [vmem:[%s1806] ss:$8 sm:$0x7] %vm1797, %v1804
        %1808 = vst.msk [vmem:[%s1806] ss:$8 sm:$0x0] %vm1797, %v1804
        %vm1810 = vcmp.ge.s32.totalorder %v1752, 0
        %vm1811 = vcmp.lt.s32.totalorder %v1752, 256
        %vm1812 = vmand %vm1810, %vm1811
        %s1813 = scalar_lea.vmem [#allocation3], 11
        %1814 = vst.msk [vmem:[%s1813] ss:$8 sm:$0x3] %vm1812, %v1745
        %1815 = vst.msk [vmem:[%s1813] ss:$8 sm:$0x0] %vm1812, %v1745
        %s1817 = scalar_lea.vmem [#allocation3], 43
        %1818 = vst.msk [vmem:[%s1817] ss:$8 sm:$0x3] %vm1812, %v1762
        %1819 = vst.msk [vmem:[%s1817] ss:$8 sm:$0x0] %vm1812, %v1762
        %1820 = vrot.lane.b32.xlu0 %v1745, 112
        %v1821 = vpop.permute.xlu0 %1820
        %v1822 = vrot.slane %v1821, 7
        %v1823 = vsel %vm1054, %v1822, %v1821
        %vm1825 = vcmp.ge.s32.totalorder %v1752, 112
        %vm1826 = vcmp.lt.s32.totalorder %v1752, 368
        %vm1827 = vmand %vm1825, %vm1826
        %s1828 = scalar_lea.vmem [#allocation3], 4
        %1829 = vst.msk [vmem:[%s1828] ss:$8 sm:$0x7] %vm1827, %v1823
        %1830 = vst.msk [vmem:[%s1828] ss:$8 sm:$0x0] %vm1827, %v1823
        %1831 = vrot.lane.b32.xlu0 %v1762, 112
        %v1832 = vpop.permute.xlu0 %1831
        %v1833 = vrot.slane %v1832, 7
        %v1834 = vsel %vm1054, %v1833, %v1832
        %s1836 = scalar_lea.vmem [#allocation3], 36
        %1837 = vst.msk [vmem:[%s1836] ss:$8 sm:$0x7] %vm1827, %v1834
        %1838 = vst.msk [vmem:[%s1836] ss:$8 sm:$0x0] %vm1827, %v1834
        %1839 = vrot.lane.b32.xlu0 %v1745, 96
        %v1840 = vpop.permute.xlu0 %1839
        %v1841 = vrot.slane %v1840, 7
        %v1842 = vsel %vm1255, %v1841, %v1840
        %vm1844 = vcmp.ge.s32.totalorder %v1752, 96
        %vm1845 = vcmp.lt.s32.totalorder %v1752, 352
        %vm1846 = vmand %vm1844, %vm1845
        %s1847 = scalar_lea.vmem [#allocation3], 5
        %1848 = vst.msk [vmem:[%s1847] ss:$8 sm:$0x7] %vm1846, %v1842
        %1849 = vst.msk [vmem:[%s1847] ss:$8 sm:$0x0] %vm1846, %v1842
        %1850 = vrot.lane.b32.xlu0 %v1762, 96
        %v1851 = vpop.permute.xlu0 %1850
        %v1852 = vrot.slane %v1851, 7
        %v1853 = vsel %vm1255, %v1852, %v1851
        %s1855 = scalar_lea.vmem [#allocation3], 37
        %1856 = vst.msk [vmem:[%s1855] ss:$8 sm:$0x7] %vm1846, %v1853
        %1857 = vst.msk [vmem:[%s1855] ss:$8 sm:$0x0] %vm1846, %v1853
        %1858 = vrot.lane.b32.xlu0 %v1745, 80
        %v1859 = vpop.permute.xlu0 %1858
        %v1860 = vrot.slane %v1859, 7
        %vm1861 = vcmask 654336
        %v1862 = vsel %vm1861, %v1860, %v1859
        %vm1864 = vcmp.ge.s32.totalorder %v1752, 80
        %vm1865 = vcmp.lt.s32.totalorder %v1752, 336
        %vm1866 = vmand %vm1864, %vm1865
        %s1867 = scalar_lea.vmem [#allocation3], 6
        %1868 = vst.msk [vmem:[%s1867] ss:$8 sm:$0x7] %vm1866, %v1862
        %1869 = vst.msk [vmem:[%s1867] ss:$8 sm:$0x0] %vm1866, %v1862
        %1870 = vrot.lane.b32.xlu0 %v1762, 80
        %v1871 = vpop.permute.xlu0 %1870
        %v1872 = vrot.slane %v1871, 7
        %v1873 = vsel %vm1861, %v1872, %v1871
        %s1875 = scalar_lea.vmem [#allocation3], 38
        %1876 = vst.msk [vmem:[%s1875] ss:$8 sm:$0x7] %vm1866, %v1873
        %1877 = vst.msk [vmem:[%s1875] ss:$8 sm:$0x0] %vm1866, %v1873
        %v1878 = vld [vmem:[#allocation3] sm:$0xff]
        %v1879 = vld [vmem:[#allocation3 + $0x8] sm:$0xff]
        %v1880 = vld [vmem:[#allocation3 + $0x10] sm:$0xff]
        %v1881 = vld [vmem:[#allocation3 + $0x20] sm:$0xff]
        %v1882 = vld [vmem:[#allocation3 + $0x28] sm:$0xff]
        %v1883 = vld [vmem:[#allocation3 + $0x30] sm:$0xff]
        %1890 = vrot.lane.b32.xlu0 %v1878, 3
        %v1891 = vpop.permute.xlu0 %1890
        %1892 = vrot.lane.b32.xlu0 %v1879, 3
        %v1893 = vpop.permute.xlu0 %1892
        %1894 = vrot.lane.b32.xlu0 %v1880, 3
        %v1895 = vpop.permute.xlu0 %1894
        %1896 = vrot.lane.b32.xlu0 %v1881, 3
        %v1897 = vpop.permute.xlu0 %1896
        %1898 = vrot.lane.b32.xlu0 %v1882, 3
        %v1899 = vpop.permute.xlu0 %1898
        %1900 = vrot.lane.b32.xlu0 %v1883, 3
        %v1901 = vpop.permute.xlu0 %1900
        %vm1902 = vcmask 23552
        %v1903 = vsel %vm1902, %v1891, %v1893
        %v1904 = vsel %vm1902, %v1893, %v1895
        %v1905 = vsel %vm1902, %v1897, %v1899
        %v1906 = vsel %vm1902, %v1899, %v1901
        %v1911 = vsel %vm1635, %v1903, 0.0
        %v1912 = vsel %vm1636, %v1904, 0.0
        %v1913 = vsel %vm1635, %v1905, 0.0
        %v1914 = vsel %vm1636, %v1906, 0.0
        %1916 = vset.pattern.permute.xlu0 0
        %1917 = vperm.xlu0 %1916, %v1641
        %v1918 = vpop.permute.xlu0 %1917
        %1921 = vset.pattern.permute.xlu0 0
        %1922 = vperm.xlu0 %1921, %v1642
        %v1923 = vpop.permute.xlu0 %1922
        %v1925 = vmul.f32 %v1911, %v1918
        %v1926 = vmul.f32 %v1912, %v1918
        %v1927 = vmul.f32 %v1913, %v1923
        %v1928 = vmul.f32 %v1914, %v1923
        %v1929 = vadd.f32 %v1925, 0.0
        %v1930 = vadd.f32 %v1926, 0.0
        %v1931 = vadd.f32 %v1927, 0.0
        %v1932 = vadd.f32 %v1928, 0.0
        %1933 = vrot.lane.b32.xlu0 %v1878, 2
        %v1934 = vpop.permute.xlu0 %1933
        %1935 = vrot.lane.b32.xlu0 %v1879, 2
        %v1936 = vpop.permute.xlu0 %1935
        %1937 = vrot.lane.b32.xlu0 %v1880, 2
        %v1938 = vpop.permute.xlu0 %1937
        %1939 = vrot.lane.b32.xlu0 %v1881, 2
        %v1940 = vpop.permute.xlu0 %1939
        %1941 = vrot.lane.b32.xlu0 %v1882, 2
        %v1942 = vpop.permute.xlu0 %1941
        %1943 = vrot.lane.b32.xlu0 %v1883, 2
        %v1944 = vpop.permute.xlu0 %1943
        %v1945 = vsel %vm809, %v1934, %v1936
        %v1946 = vsel %vm809, %v1936, %v1938
        %v1947 = vsel %vm809, %v1940, %v1942
        %v1948 = vsel %vm809, %v1942, %v1944
        %v1953 = vsel %vm375, %v1945, 0.0
        %v1954 = vsel %vm376, %v1946, 0.0
        %v1955 = vsel %vm375, %v1947, 0.0
        %v1956 = vsel %vm376, %v1948, 0.0
        %1957 = vset.pattern.permute.xlu0 1
        %1958 = vperm.xlu0 %1957, %v1641
        %v1959 = vpop.permute.xlu0 %1958
        %1961 = vset.pattern.permute.xlu0 1
        %1962 = vperm.xlu0 %1961, %v1642
        %v1963 = vpop.permute.xlu0 %1962
        %v1965 = vmul.f32 %v1953, %v1959
        %v1966 = vmul.f32 %v1954, %v1959
        %v1967 = vmul.f32 %v1955, %v1963
        %v1968 = vmul.f32 %v1956, %v1963
        %v1969 = vadd.f32 %v1929, %v1965
        %v1970 = vadd.f32 %v1930, %v1966
        %v1971 = vadd.f32 %v1931, %v1967
        %v1972 = vadd.f32 %v1932, %v1968
        %1973 = vrot.lane.b32.xlu0 %v1878, 1
        %v1974 = vpop.permute.xlu0 %1973
        %1975 = vrot.lane.b32.xlu0 %v1879, 1
        %v1976 = vpop.permute.xlu0 %1975
        %1977 = vrot.lane.b32.xlu0 %v1880, 1
        %v1978 = vpop.permute.xlu0 %1977
        %1979 = vrot.lane.b32.xlu0 %v1881, 1
        %v1980 = vpop.permute.xlu0 %1979
        %1981 = vrot.lane.b32.xlu0 %v1882, 1
        %v1982 = vpop.permute.xlu0 %1981
        %1983 = vrot.lane.b32.xlu0 %v1883, 1
        %v1984 = vpop.permute.xlu0 %1983
        %v1985 = vsel %vm850, %v1974, %v1976
        %v1986 = vsel %vm850, %v1976, %v1978
        %v1987 = vsel %vm850, %v1980, %v1982
        %v1988 = vsel %vm850, %v1982, %v1984
        %v1993 = vsel %vm377, %v1985, 0.0
        %v1994 = vsel %vm378, %v1986, 0.0
        %v1995 = vsel %vm377, %v1987, 0.0
        %v1996 = vsel %vm378, %v1988, 0.0
        %1997 = vset.pattern.permute.xlu0 2
        %1998 = vperm.xlu0 %1997, %v1641
        %v1999 = vpop.permute.xlu0 %1998
        %2001 = vset.pattern.permute.xlu0 2
        %2002 = vperm.xlu0 %2001, %v1642
        %v2003 = vpop.permute.xlu0 %2002
        %v2005 = vmul.f32 %v1993, %v1999
        %v2006 = vmul.f32 %v1994, %v1999
        %v2007 = vmul.f32 %v1995, %v2003
        %v2008 = vmul.f32 %v1996, %v2003
        %v2009 = vadd.f32 %v1969, %v2005
        %v2010 = vadd.f32 %v1970, %v2006
        %v2011 = vadd.f32 %v1971, %v2007
        %v2012 = vadd.f32 %v1972, %v2008
        %2013 = vset.pattern.permute.xlu0 3
        %2014 = vperm.xlu0 %2013, %v1641
        %v2015 = vpop.permute.xlu0 %2014
        %2017 = vset.pattern.permute.xlu0 3
        %2018 = vperm.xlu0 %2017, %v1642
        %v2019 = vpop.permute.xlu0 %2018
        %v2021 = vmul.f32 %v1879, %v2015
        %v2022 = vmul.f32 %v1880, %v2015
        %v2023 = vmul.f32 %v1882, %v2019
        %v2024 = vmul.f32 %v1883, %v2019
        %v2025 = vadd.f32 %v2009, %v2021
        %v2026 = vadd.f32 %v2010, %v2022
        %v2027 = vadd.f32 %v2011, %v2023
        %v2028 = vadd.f32 %v2012, %v2024
        %v2029 = vld [vmem:[#allocation3 + $0x8] sm:$0xff]
        %v2030 = vld [vmem:[#allocation3 + $0x10] sm:$0xff]
        %v2031 = vld [vmem:[#allocation3 + $0x18] sm:$0xff]
        %v2032 = vld [vmem:[#allocation3 + $0x28] sm:$0xff]
        %v2033 = vld [vmem:[#allocation3 + $0x30] sm:$0xff]
        %v2034 = vld [vmem:[#allocation3 + $0x38] sm:$0xff]
        %2041 = vrot.lane.b32.xlu0 %v2029, 127
        %v2042 = vpop.permute.xlu0 %2041
        %2043 = vrot.lane.b32.xlu0 %v2030, 127
        %v2044 = vpop.permute.xlu0 %2043
        %2045 = vrot.lane.b32.xlu0 %v2031, 127
        %v2046 = vpop.permute.xlu0 %2045
        %2047 = vrot.lane.b32.xlu0 %v2032, 127
        %v2048 = vpop.permute.xlu0 %2047
        %2049 = vrot.lane.b32.xlu0 %v2033, 127
        %v2050 = vpop.permute.xlu0 %2049
        %2051 = vrot.lane.b32.xlu0 %v2034, 127
        %v2052 = vpop.permute.xlu0 %2051
        %v2053 = vsel %vm899, %v2042, %v2044
        %v2054 = vsel %vm899, %v2044, %v2046
        %v2055 = vsel %vm899, %v2048, %v2050
        %v2056 = vsel %vm899, %v2050, %v2052
        %v2061 = vsel %vm379, %v2053, 0.0
        %v2062 = vsel %vm380, %v2054, 0.0
        %v2063 = vsel %vm379, %v2055, 0.0
        %v2064 = vsel %vm380, %v2056, 0.0
        %2065 = vset.pattern.permute.xlu0 4
        %2066 = vperm.xlu0 %2065, %v1641
        %v2067 = vpop.permute.xlu0 %2066
        %2069 = vset.pattern.permute.xlu0 4
        %2070 = vperm.xlu0 %2069, %v1642
        %v2071 = vpop.permute.xlu0 %2070
        %v2073 = vmul.f32 %v2061, %v2067
        %v2074 = vmul.f32 %v2062, %v2067
        %v2075 = vmul.f32 %v2063, %v2071
        %v2076 = vmul.f32 %v2064, %v2071
        %v2077 = vadd.f32 %v2025, %v2073
        %v2078 = vadd.f32 %v2026, %v2074
        %v2079 = vadd.f32 %v2027, %v2075
        %v2080 = vadd.f32 %v2028, %v2076
        %2081 = vrot.lane.b32.xlu0 %v2029, 126
        %v2082 = vpop.permute.xlu0 %2081
        %2083 = vrot.lane.b32.xlu0 %v2030, 126
        %v2084 = vpop.permute.xlu0 %2083
        %2085 = vrot.lane.b32.xlu0 %v2031, 126
        %v2086 = vpop.permute.xlu0 %2085
        %2087 = vrot.lane.b32.xlu0 %v2032, 126
        %v2088 = vpop.permute.xlu0 %2087
        %2089 = vrot.lane.b32.xlu0 %v2033, 126
        %v2090 = vpop.permute.xlu0 %2089
        %2091 = vrot.lane.b32.xlu0 %v2034, 126
        %v2092 = vpop.permute.xlu0 %2091
        %v2093 = vsel %vm940, %v2082, %v2084
        %v2094 = vsel %vm940, %v2084, %v2086
        %v2095 = vsel %vm940, %v2088, %v2090
        %v2096 = vsel %vm940, %v2090, %v2092
        %v2101 = vsel %vm381, %v2093, 0.0
        %v2102 = vsel %vm382, %v2094, 0.0
        %v2103 = vsel %vm381, %v2095, 0.0
        %v2104 = vsel %vm382, %v2096, 0.0
        %2105 = vset.pattern.permute.xlu0 5
        %2106 = vperm.xlu0 %2105, %v1641
        %v2107 = vpop.permute.xlu0 %2106
        %2109 = vset.pattern.permute.xlu0 5
        %2110 = vperm.xlu0 %2109, %v1642
        %v2111 = vpop.permute.xlu0 %2110
        %v2113 = vmul.f32 %v2101, %v2107
        %v2114 = vmul.f32 %v2102, %v2107
        %v2115 = vmul.f32 %v2103, %v2111
        %v2116 = vmul.f32 %v2104, %v2111
        %v2117 = vadd.f32 %v2077, %v2113
        %v2118 = vadd.f32 %v2078, %v2114
        %v2119 = vadd.f32 %v2079, %v2115
        %v2120 = vadd.f32 %v2080, %v2116
        %2121 = vrot.lane.b32.xlu0 %v2029, 125
        %v2122 = vpop.permute.xlu0 %2121
        %2123 = vrot.lane.b32.xlu0 %v2030, 125
        %v2124 = vpop.permute.xlu0 %2123
        %2125 = vrot.lane.b32.xlu0 %v2031, 125
        %v2126 = vpop.permute.xlu0 %2125
        %2127 = vrot.lane.b32.xlu0 %v2032, 125
        %v2128 = vpop.permute.xlu0 %2127
        %2129 = vrot.lane.b32.xlu0 %v2033, 125
        %v2130 = vpop.permute.xlu0 %2129
        %2131 = vrot.lane.b32.xlu0 %v2034, 125
        %v2132 = vpop.permute.xlu0 %2131
        %vm2133 = vcmask 1022976
        %v2134 = vsel %vm2133, %v2122, %v2124
        %v2135 = vsel %vm2133, %v2124, %v2126
        %v2136 = vsel %vm2133, %v2128, %v2130
        %v2137 = vsel %vm2133, %v2130, %v2132
        %v2142 = vsel %vm1637, %v2134, 0.0
        %v2143 = vsel %vm1638, %v2135, 0.0
        %v2144 = vsel %vm1637, %v2136, 0.0
        %v2145 = vsel %vm1638, %v2137, 0.0
        %2146 = vset.pattern.permute.xlu0 6
        %2147 = vperm.xlu0 %2146, %v1641
        %v2148 = vpop.permute.xlu0 %2147
        %2150 = vset.pattern.permute.xlu0 6
        %2151 = vperm.xlu0 %2150, %v1642
        %v2152 = vpop.permute.xlu0 %2151
        %v2154 = vmul.f32 %v2142, %v2148
        %v2155 = vmul.f32 %v2143, %v2148
        %v2156 = vmul.f32 %v2144, %v2152
        %v2157 = vmul.f32 %v2145, %v2152
        %v2158 = vadd.f32 %v2117, %v2154
        %v2159 = vadd.f32 %v2118, %v2155
        %v2160 = vadd.f32 %v2119, %v2156
        %v2161 = vadd.f32 %v2120, %v2157
        %v2162 = vadd.f32 %v2158, %v2160
        %v2163 = vrot.slane %v2162, 4
        %v2164 = vadd.f32 %v2162, %v2163
        %v2165 = vrot.slane %v2164, 2
        %v2166 = vadd.f32 %v2164, %v2165
        %v2167 = vrot.slane %v2166, 1
        %v2168 = vadd.f32 %v2166, %v2167
        %v2169 = vadd.f32 %v2159, %v2161
        %v2170 = vrot.slane %v2169, 4
        %v2171 = vadd.f32 %v2169, %v2170
        %v2172 = vrot.slane %v2171, 2
        %v2173 = vadd.f32 %v2171, %v2172
        %v2174 = vrot.slane %v2173, 1
        %v2175 = vadd.f32 %v2173, %v2174
        %v2176 = vxor.u32 %v2168, 2147483648
        %v2177 = vxor.u32 %v2175, 2147483648
        %v2178 = vmul.f32 %v2176, 1.442695
        %v2179 = vpow.pop %v2178
        %v2180 = vmul.f32 %v2177, 1.442695
        %v2181 = vpow.pop %v2180
        %v2182 = vadd.f32 %v2179, 1.0
        %v2183 = vadd.f32 %v2181, 1.0
        %v2184 = vrcp.pop %v2182
        %v2185 = vmul.f32 %v2182, %v2184
        %v2186 = vsub.f32 1.0, %v2185
        %v2187 = vmul.f32 %v2184, %v2186
        %v2188 = vadd.f32 %v2184, %v2187
        %vm2189 = vweird.f32 %v2182
        %vm2190 = vweird.f32 %v2184
        %vm2191 = vmor %vm2189, %vm2190
        %v2192 = vsel %vm2191, %v2184, %v2188
        %v2193 = vand.u32 2147483647, %v2182
        %vm2194 = vcmp.eq.f32.partialorder %v2193, 8.507059e+37
        %v2195 = vand.u32 %v2182, 2147483648
        %v2196 = vor.u32 1.1754944e-38, %v2195
        %v2197 = vsel %vm2194, %v2196, %v2192
        %v2198 = vmul.f32 1.0, %v2197
        %v2199 = vrcp.pop %v2183
        %v2200 = vmul.f32 %v2183, %v2199
        %v2201 = vsub.f32 1.0, %v2200
        %v2202 = vmul.f32 %v2199, %v2201
        %v2203 = vadd.f32 %v2199, %v2202
        %vm2204 = vweird.f32 %v2183
        %vm2205 = vweird.f32 %v2199
        %vm2206 = vmor %vm2204, %vm2205
        %v2207 = vsel %vm2206, %v2199, %v2203
        %v2208 = vand.u32 2147483647, %v2183
        %vm2209 = vcmp.eq.f32.partialorder %v2208, 8.507059e+37
        %v2210 = vand.u32 %v2183, 2147483648
        %v2211 = vor.u32 1.1754944e-38, %v2210
        %v2212 = vsel %vm2209, %v2211, %v2207
        %v2213 = vmul.f32 1.0, %v2212
        %v2214 = vmul.f32 %v1706, %v2198
        %v2215 = vmul.f32 %v1707, %v2213
        %2217 = vset.pattern.permute.xlu0 0
        %2218 = vperm.xlu0 %2217, %v1644
        %v2219 = vpop.permute.xlu0 %2218
        %vm2221 = vcmask 64512
        %v2223 = vsel %vm2221, %v1643, 0
        %2225 = vmatpush.msra.mxu0 0.0
        %2226 = vmatpush.msra.mxu0 0.0
        %2227 = vmatpush.msra.mxu0 0.0
        %2228 = vmatpush.msra.mxu0 0.0
        %2229 = vmatpush.msra.mxu0 0.0
        %2230 = vmatpush.msra.mxu0 0.0
        %2231 = vmatpush.msra.mxu0 0.0
        %2232 = vmatpush.msra.mxu0 0.0
        %2233 = vmatpush.msra.mxu0 0.0
        %2234 = vmatpush.msra.mxu0 0.0
        %2235 = vmatpush.msra.mxu0 0.0
        %2236 = vmatpush.msra.mxu0 0.0
        %2237 = vmatpush.msra.mxu0 0.0
        %2238 = vmatpush.msra.mxu0 0.0
        %2239 = vmatpush.msra.mxu0 0.0
        %2240 = vmatpush.msra.mxu0 %v2214
        %2241 = vmatmul.f32.gmra.mxu0 %v2223
        %v2242 = vpop.f32.mrf.mxu0
        %v2243 = vadd.f32 %v2219, %v2242
        %2244 = vdwg.mxu0
        %2245 = vmatpush.msra.mxu0 0.0
        %2246 = vmatpush.msra.mxu0 0.0
        %2247 = vmatpush.msra.mxu0 0.0
        %2248 = vmatpush.msra.mxu0 0.0
        %2249 = vmatpush.msra.mxu0 0.0
        %2250 = vmatpush.msra.mxu0 0.0
        %2251 = vmatpush.msra.mxu0 0.0
        %2252 = vmatpush.msra.mxu0 0.0
        %2253 = vmatpush.msra.mxu0 0.0
        %2254 = vmatpush.msra.mxu0 0.0
        %2255 = vmatpush.msra.mxu0 0.0
        %2256 = vmatpush.msra.mxu0 0.0
        %2257 = vmatpush.msra.mxu0 0.0
        %2258 = vmatpush.msra.mxu0 0.0
        %2259 = vmatpush.msra.mxu0 0.0
        %2260 = vmatpush.msra.mxu0 %v2215
        %2261 = vmatmul.f32.gmra.mxu0 %v2223
        %v2262 = vpop.f32.mrf.mxu0
        %v2263 = vadd.f32 %v2219, %v2262
        %2264 = vdwg.mxu0
        %v2265 = vld [vmem:[%s293] sm:$0xf]
        %v2266 = vld [vmem:[%s293 + $0x8] sm:$0xf]
        %v2267 = vadd.f32 %v2243, %v2265
        %v2268 = vadd.f32 %v2263, %v2266
        %v2269 = vadd.f32 %v1633, %v1634
        %2270 = vadd.xlane.f32.xlu0 %v2269
        %v2271 = vpop.xlane.xlu0 %2270
        %v2272 = vmul.f32 %v2271, %v1654
        %v2273 = vmax.f32 %v1633, %v1634
        %2274 = vmax.xlane.f32.xlu0 %v2273
        %v2275 = vpop.xlane.xlu0 %2274
        %v2276 = vmul.f32 %v1639, %v2272
        %v2277 = vsel %vm850, %v2276, 0.0
        %v2278 = vrot.slane %v2277, 4
        %v2279 = vadd.f32 %v2277, %v2278
        %v2280 = vrot.slane %v2279, 2
        %v2281 = vadd.f32 %v2279, %v2280
        %v2282 = vrot.slane %v2281, 1
        %v2283 = vadd.f32 %v2281, %v2282
        %v2284 = vmax.f32 %v2283, 0.0
        %v2285 = vmul.f32 %v1640, %v2284
        %v2286 = vadd.f32 %v2285, 0.0
        %v2287 = vmul.f32 %v1639, %v2275
        %v2288 = vsel %vm850, %v2287, 0.0
        %v2289 = vrot.slane %v2288, 4
        %v2290 = vadd.f32 %v2288, %v2289
        %v2291 = vrot.slane %v2290, 2
        %v2292 = vadd.f32 %v2290, %v2291
        %v2293 = vrot.slane %v2292, 1
        %v2294 = vadd.f32 %v2292, %v2293
        %v2295 = vmax.f32 %v2294, 0.0
        %v2296 = vmul.f32 %v1640, %v2295
        %v2297 = vadd.f32 %v2296, 0.0
        %v2298 = vadd.f32 %v2286, %v2297
        %v2299 = vxor.u32 %v2298, 2147483648
        %v2300 = vmul.f32 %v2299, 1.442695
        %v2301 = vpow.pop %v2300
        %v2302 = vadd.f32 %v2301, 1.0
        %v2303 = vrcp.pop %v2302
        %v2304 = vmul.f32 %v2302, %v2303
        %v2305 = vsub.f32 1.0, %v2304
        %v2306 = vmul.f32 %v2303, %v2305
        %v2307 = vadd.f32 %v2303, %v2306
        %vm2308 = vweird.f32 %v2302
        %vm2309 = vweird.f32 %v2303
        %vm2310 = vmor %vm2308, %vm2309
        %v2311 = vsel %vm2310, %v2303, %v2307
        %v2312 = vand.u32 2147483647, %v2302
        %vm2313 = vcmp.eq.f32.partialorder %v2312, 8.507059e+37
        %v2314 = vand.u32 %v2302, 2147483648
        %v2315 = vor.u32 1.1754944e-38, %v2314
        %v2316 = vsel %vm2313, %v2315, %v2311
        %v2317 = vmul.f32 1.0, %v2316
        %2319 = vset.pattern.permute.xlu0 0
        %2320 = vperm.xlu0 %2319, %v2317
        %v2321 = vpop.permute.xlu0 %2320
        %v2323 = vmul.f32 %v1633, %v2321
        %v2324 = vmul.f32 %v1634, %v2321
        %v2325 = vrot.slane %v2323, 4
        %v2326 = vadd.f32 %v2323, %v2325
        %v2327 = vrot.slane %v2326, 2
        %v2328 = vadd.f32 %v2326, %v2327
        %v2329 = vrot.slane %v2328, 1
        %v2330 = vadd.f32 %v2328, %v2329
        %v2331 = vrot.slane %v2324, 4
        %v2332 = vadd.f32 %v2324, %v2331
        %v2333 = vrot.slane %v2332, 2
        %v2334 = vadd.f32 %v2332, %v2333
        %v2335 = vrot.slane %v2334, 1
        %v2336 = vadd.f32 %v2334, %v2335
        %v2337 = vmul.f32 %v2330, %v1726
        %v2338 = vmul.f32 %v2336, %v1726
        %v2339 = vrot.slane %v2323, 4
        %v2340 = vmax.f32 %v2323, %v2339
        %v2341 = vrot.slane %v2340, 2
        %v2342 = vmax.f32 %v2340, %v2341
        %v2343 = vrot.slane %v2342, 1
        %v2344 = vmax.f32 %v2342, %v2343
        %v2345 = vrot.slane %v2324, 4
        %v2346 = vmax.f32 %v2324, %v2345
        %v2347 = vrot.slane %v2346, 2
        %v2348 = vmax.f32 %v2346, %v2347
        %v2349 = vrot.slane %v2348, 1
        %v2350 = vmax.f32 %v2348, %v2349
        %v2353 = vrot.slane %v2338, 7
        %v2354 = vsel %vm1744, %v2337, %v2353
        %2355 = vrot.lane.b32.xlu0 %v2354, 48
        %v2356 = vpop.permute.xlu0 %2355
        %v2357 = vrot.slane %v2356, 7
        %v2358 = vsel %vm1749, %v2357, %v2356
        %2360 = vst.msk [vmem:[%s1756] ss:$8 sm:$0x7] %vm1755, %v2358
        %2361 = vst.msk [vmem:[%s1756] ss:$8 sm:$0x0] %vm1755, %v2358
        %v2364 = vrot.slane %v2350, 7
        %v2365 = vsel %vm1744, %v2344, %v2364
        %2366 = vrot.lane.b32.xlu0 %v2365, 48
        %v2367 = vpop.permute.xlu0 %2366
        %v2368 = vrot.slane %v2367, 7
        %v2369 = vsel %vm1749, %v2368, %v2367
        %2371 = vst.msk [vmem:[%s1768] ss:$8 sm:$0x7] %vm1755, %v2369
        %2372 = vst.msk [vmem:[%s1768] ss:$8 sm:$0x0] %vm1755, %v2369
        %2373 = vrot.lane.b32.xlu0 %v2354, 32
        %v2374 = vpop.permute.xlu0 %2373
        %v2375 = vrot.slane %v2374, 7
        %v2376 = vsel %vm480, %v2375, %v2374
        %2378 = vst.msk [vmem:[%s1779] ss:$8 sm:$0x7] %vm1778, %v2376
        %2379 = vst.msk [vmem:[%s1779] ss:$8 sm:$0x0] %vm1778, %v2376
        %2380 = vrot.lane.b32.xlu0 %v2365, 32
        %v2381 = vpop.permute.xlu0 %2380
        %v2382 = vrot.slane %v2381, 7
        %v2383 = vsel %vm480, %v2382, %v2381
        %2385 = vst.msk [vmem:[%s1787] ss:$8 sm:$0x7] %vm1778, %v2383
        %2386 = vst.msk [vmem:[%s1787] ss:$8 sm:$0x0] %vm1778, %v2383
        %2387 = vrot.lane.b32.xlu0 %v2354, 16
        %v2388 = vpop.permute.xlu0 %2387
        %v2389 = vrot.slane %v2388, 7
        %v2390 = vsel %vm681, %v2389, %v2388
        %2392 = vst.msk [vmem:[%s1798] ss:$8 sm:$0x7] %vm1797, %v2390
        %2393 = vst.msk [vmem:[%s1798] ss:$8 sm:$0x0] %vm1797, %v2390
        %2394 = vrot.lane.b32.xlu0 %v2365, 16
        %v2395 = vpop.permute.xlu0 %2394
        %v2396 = vrot.slane %v2395, 7
        %v2397 = vsel %vm681, %v2396, %v2395
        %2399 = vst.msk [vmem:[%s1806] ss:$8 sm:$0x7] %vm1797, %v2397
        %2400 = vst.msk [vmem:[%s1806] ss:$8 sm:$0x0] %vm1797, %v2397
        %2402 = vst.msk [vmem:[%s1813] ss:$8 sm:$0x3] %vm1812, %v2354
        %2403 = vst.msk [vmem:[%s1813] ss:$8 sm:$0x0] %vm1812, %v2354
        %2405 = vst.msk [vmem:[%s1817] ss:$8 sm:$0x3] %vm1812, %v2365
        %2406 = vst.msk [vmem:[%s1817] ss:$8 sm:$0x0] %vm1812, %v2365
        %2407 = vrot.lane.b32.xlu0 %v2354, 112
        %v2408 = vpop.permute.xlu0 %2407
        %v2409 = vrot.slane %v2408, 7
        %v2410 = vsel %vm1054, %v2409, %v2408
        %2412 = vst.msk [vmem:[%s1828] ss:$8 sm:$0x7] %vm1827, %v2410
        %2413 = vst.msk [vmem:[%s1828] ss:$8 sm:$0x0] %vm1827, %v2410
        %2414 = vrot.lane.b32.xlu0 %v2365, 112
        %v2415 = vpop.permute.xlu0 %2414
        %v2416 = vrot.slane %v2415, 7
        %v2417 = vsel %vm1054, %v2416, %v2415
        %2419 = vst.msk [vmem:[%s1836] ss:$8 sm:$0x7] %vm1827, %v2417
        %2420 = vst.msk [vmem:[%s1836] ss:$8 sm:$0x0] %vm1827, %v2417
        %2421 = vrot.lane.b32.xlu0 %v2354, 96
        %v2422 = vpop.permute.xlu0 %2421
        %v2423 = vrot.slane %v2422, 7
        %v2424 = vsel %vm1255, %v2423, %v2422
        %2426 = vst.msk [vmem:[%s1847] ss:$8 sm:$0x7] %vm1846, %v2424
        %2427 = vst.msk [vmem:[%s1847] ss:$8 sm:$0x0] %vm1846, %v2424
        %2428 = vrot.lane.b32.xlu0 %v2365, 96
        %v2429 = vpop.permute.xlu0 %2428
        %v2430 = vrot.slane %v2429, 7
        %v2431 = vsel %vm1255, %v2430, %v2429
        %2433 = vst.msk [vmem:[%s1855] ss:$8 sm:$0x7] %vm1846, %v2431
        %2434 = vst.msk [vmem:[%s1855] ss:$8 sm:$0x0] %vm1846, %v2431
        %2435 = vrot.lane.b32.xlu0 %v2354, 80
        %v2436 = vpop.permute.xlu0 %2435
        %v2437 = vrot.slane %v2436, 7
        %v2438 = vsel %vm1861, %v2437, %v2436
        %2440 = vst.msk [vmem:[%s1867] ss:$8 sm:$0x7] %vm1866, %v2438
        %2441 = vst.msk [vmem:[%s1867] ss:$8 sm:$0x0] %vm1866, %v2438
        %2442 = vrot.lane.b32.xlu0 %v2365, 80
        %v2443 = vpop.permute.xlu0 %2442
        %v2444 = vrot.slane %v2443, 7
        %v2445 = vsel %vm1861, %v2444, %v2443
        %2447 = vst.msk [vmem:[%s1875] ss:$8 sm:$0x7] %vm1866, %v2445
        %2448 = vst.msk [vmem:[%s1875] ss:$8 sm:$0x0] %vm1866, %v2445
        %v2449 = vld [vmem:[#allocation3] sm:$0xff]
        %v2450 = vld [vmem:[#allocation3 + $0x8] sm:$0xff]
        %v2451 = vld [vmem:[#allocation3 + $0x10] sm:$0xff]
        %v2452 = vld [vmem:[#allocation3 + $0x20] sm:$0xff]
        %v2453 = vld [vmem:[#allocation3 + $0x28] sm:$0xff]
        %v2454 = vld [vmem:[#allocation3 + $0x30] sm:$0xff]
        %2461 = vrot.lane.b32.xlu0 %v2449, 3
        %v2462 = vpop.permute.xlu0 %2461
        %2463 = vrot.lane.b32.xlu0 %v2450, 3
        %v2464 = vpop.permute.xlu0 %2463
        %2465 = vrot.lane.b32.xlu0 %v2451, 3
        %v2466 = vpop.permute.xlu0 %2465
        %2467 = vrot.lane.b32.xlu0 %v2452, 3
        %v2468 = vpop.permute.xlu0 %2467
        %2469 = vrot.lane.b32.xlu0 %v2453, 3
        %v2470 = vpop.permute.xlu0 %2469
        %2471 = vrot.lane.b32.xlu0 %v2454, 3
        %v2472 = vpop.permute.xlu0 %2471
        %v2473 = vsel %vm1902, %v2462, %v2464
        %v2474 = vsel %vm1902, %v2464, %v2466
        %v2475 = vsel %vm1902, %v2468, %v2470
        %v2476 = vsel %vm1902, %v2470, %v2472
        %v2481 = vsel %vm1635, %v2473, 0.0
        %v2482 = vsel %vm1636, %v2474, 0.0
        %v2483 = vsel %vm1635, %v2475, 0.0
        %v2484 = vsel %vm1636, %v2476, 0.0
        %v2485 = vmul.f32 %v2481, %v1918
        %v2486 = vmul.f32 %v2482, %v1918
        %v2487 = vmul.f32 %v2483, %v1923
        %v2488 = vmul.f32 %v2484, %v1923
        %v2489 = vadd.f32 %v2485, 0.0
        %v2490 = vadd.f32 %v2486, 0.0
        %v2491 = vadd.f32 %v2487, 0.0
        %v2492 = vadd.f32 %v2488, 0.0
        %2493 = vrot.lane.b32.xlu0 %v2449, 2
        %v2494 = vpop.permute.xlu0 %2493
        %2495 = vrot.lane.b32.xlu0 %v2450, 2
        %v2496 = vpop.permute.xlu0 %2495
        %2497 = vrot.lane.b32.xlu0 %v2451, 2
        %v2498 = vpop.permute.xlu0 %2497
        %2499 = vrot.lane.b32.xlu0 %v2452, 2
        %v2500 = vpop.permute.xlu0 %2499
        %2501 = vrot.lane.b32.xlu0 %v2453, 2
        %v2502 = vpop.permute.xlu0 %2501
        %2503 = vrot.lane.b32.xlu0 %v2454, 2
        %v2504 = vpop.permute.xlu0 %2503
        %v2505 = vsel %vm809, %v2494, %v2496
        %v2506 = vsel %vm809, %v2496, %v2498
        %v2507 = vsel %vm809, %v2500, %v2502
        %v2508 = vsel %vm809, %v2502, %v2504
        %v2513 = vsel %vm375, %v2505, 0.0
        %v2514 = vsel %vm376, %v2506, 0.0
        %v2515 = vsel %vm375, %v2507, 0.0
        %v2516 = vsel %vm376, %v2508, 0.0
        %v2517 = vmul.f32 %v2513, %v1959
        %v2518 = vmul.f32 %v2514, %v1959
        %v2519 = vmul.f32 %v2515, %v1963
        %v2520 = vmul.f32 %v2516, %v1963
        %v2521 = vadd.f32 %v2489, %v2517
        %v2522 = vadd.f32 %v2490, %v2518
        %v2523 = vadd.f32 %v2491, %v2519
        %v2524 = vadd.f32 %v2492, %v2520
        %2525 = vrot.lane.b32.xlu0 %v2449, 1
        %v2526 = vpop.permute.xlu0 %2525
        %2527 = vrot.lane.b32.xlu0 %v2450, 1
        %v2528 = vpop.permute.xlu0 %2527
        %2529 = vrot.lane.b32.xlu0 %v2451, 1
        %v2530 = vpop.permute.xlu0 %2529
        %2531 = vrot.lane.b32.xlu0 %v2452, 1
        %v2532 = vpop.permute.xlu0 %2531
        %2533 = vrot.lane.b32.xlu0 %v2453, 1
        %v2534 = vpop.permute.xlu0 %2533
        %2535 = vrot.lane.b32.xlu0 %v2454, 1
        %v2536 = vpop.permute.xlu0 %2535
        %v2537 = vsel %vm850, %v2526, %v2528
        %v2538 = vsel %vm850, %v2528, %v2530
        %v2539 = vsel %vm850, %v2532, %v2534
        %v2540 = vsel %vm850, %v2534, %v2536
        %v2545 = vsel %vm377, %v2537, 0.0
        %v2546 = vsel %vm378, %v2538, 0.0
        %v2547 = vsel %vm377, %v2539, 0.0
        %v2548 = vsel %vm378, %v2540, 0.0
        %v2549 = vmul.f32 %v2545, %v1999
        %v2550 = vmul.f32 %v2546, %v1999
        %v2551 = vmul.f32 %v2547, %v2003
        %v2552 = vmul.f32 %v2548, %v2003
        %v2553 = vadd.f32 %v2521, %v2549
        %v2554 = vadd.f32 %v2522, %v2550
        %v2555 = vadd.f32 %v2523, %v2551
        %v2556 = vadd.f32 %v2524, %v2552
        %v2557 = vmul.f32 %v2450, %v2015
        %v2558 = vmul.f32 %v2451, %v2015
        %v2559 = vmul.f32 %v2453, %v2019
        %v2560 = vmul.f32 %v2454, %v2019
        %v2561 = vadd.f32 %v2553, %v2557
        %v2562 = vadd.f32 %v2554, %v2558
        %v2563 = vadd.f32 %v2555, %v2559
        %v2564 = vadd.f32 %v2556, %v2560
        %v2565 = vld [vmem:[#allocation3 + $0x8] sm:$0xff]
        %v2566 = vld [vmem:[#allocation3 + $0x10] sm:$0xff]
        %v2567 = vld [vmem:[#allocation3 + $0x18] sm:$0xff]
        %v2568 = vld [vmem:[#allocation3 + $0x28] sm:$0xff]
        %v2569 = vld [vmem:[#allocation3 + $0x30] sm:$0xff]
        %v2570 = vld [vmem:[#allocation3 + $0x38] sm:$0xff]
        %2577 = vrot.lane.b32.xlu0 %v2565, 127
        %v2578 = vpop.permute.xlu0 %2577
        %2579 = vrot.lane.b32.xlu0 %v2566, 127
        %v2580 = vpop.permute.xlu0 %2579
        %2581 = vrot.lane.b32.xlu0 %v2567, 127
        %v2582 = vpop.permute.xlu0 %2581
        %2583 = vrot.lane.b32.xlu0 %v2568, 127
        %v2584 = vpop.permute.xlu0 %2583
        %2585 = vrot.lane.b32.xlu0 %v2569, 127
        %v2586 = vpop.permute.xlu0 %2585
        %2587 = vrot.lane.b32.xlu0 %v2570, 127
        %v2588 = vpop.permute.xlu0 %2587
        %v2589 = vsel %vm899, %v2578, %v2580
        %v2590 = vsel %vm899, %v2580, %v2582
        %v2591 = vsel %vm899, %v2584, %v2586
        %v2592 = vsel %vm899, %v2586, %v2588
        %v2597 = vsel %vm379, %v2589, 0.0
        %v2598 = vsel %vm380, %v2590, 0.0
        %v2599 = vsel %vm379, %v2591, 0.0
        %v2600 = vsel %vm380, %v2592, 0.0
        %v2601 = vmul.f32 %v2597, %v2067
        %v2602 = vmul.f32 %v2598, %v2067
        %v2603 = vmul.f32 %v2599, %v2071
        %v2604 = vmul.f32 %v2600, %v2071
        %v2605 = vadd.f32 %v2561, %v2601
        %v2606 = vadd.f32 %v2562, %v2602
        %v2607 = vadd.f32 %v2563, %v2603
        %v2608 = vadd.f32 %v2564, %v2604
        %2609 = vrot.lane.b32.xlu0 %v2565, 126
        %v2610 = vpop.permute.xlu0 %2609
        %2611 = vrot.lane.b32.xlu0 %v2566, 126
        %v2612 = vpop.permute.xlu0 %2611
        %2613 = vrot.lane.b32.xlu0 %v2567, 126
        %v2614 = vpop.permute.xlu0 %2613
        %2615 = vrot.lane.b32.xlu0 %v2568, 126
        %v2616 = vpop.permute.xlu0 %2615
        %2617 = vrot.lane.b32.xlu0 %v2569, 126
        %v2618 = vpop.permute.xlu0 %2617
        %2619 = vrot.lane.b32.xlu0 %v2570, 126
        %v2620 = vpop.permute.xlu0 %2619
        %v2621 = vsel %vm940, %v2610, %v2612
        %v2622 = vsel %vm940, %v2612, %v2614
        %v2623 = vsel %vm940, %v2616, %v2618
        %v2624 = vsel %vm940, %v2618, %v2620
        %v2629 = vsel %vm381, %v2621, 0.0
        %v2630 = vsel %vm382, %v2622, 0.0
        %v2631 = vsel %vm381, %v2623, 0.0
        %v2632 = vsel %vm382, %v2624, 0.0
        %v2633 = vmul.f32 %v2629, %v2107
        %v2634 = vmul.f32 %v2630, %v2107
        %v2635 = vmul.f32 %v2631, %v2111
        %v2636 = vmul.f32 %v2632, %v2111
        %v2637 = vadd.f32 %v2605, %v2633
        %v2638 = vadd.f32 %v2606, %v2634
        %v2639 = vadd.f32 %v2607, %v2635
        %v2640 = vadd.f32 %v2608, %v2636
        %2641 = vrot.lane.b32.xlu0 %v2565, 125
        %v2642 = vpop.permute.xlu0 %2641
        %2643 = vrot.lane.b32.xlu0 %v2566, 125
        %v2644 = vpop.permute.xlu0 %2643
        %2645 = vrot.lane.b32.xlu0 %v2567, 125
        %v2646 = vpop.permute.xlu0 %2645
        %2647 = vrot.lane.b32.xlu0 %v2568, 125
        %v2648 = vpop.permute.xlu0 %2647
        %2649 = vrot.lane.b32.xlu0 %v2569, 125
        %v2650 = vpop.permute.xlu0 %2649
        %2651 = vrot.lane.b32.xlu0 %v2570, 125
        %v2652 = vpop.permute.xlu0 %2651
        %v2653 = vsel %vm2133, %v2642, %v2644
        %v2654 = vsel %vm2133, %v2644, %v2646
        %v2655 = vsel %vm2133, %v2648, %v2650
        %v2656 = vsel %vm2133, %v2650, %v2652
        %v2661 = vsel %vm1637, %v2653, 0.0
        %v2662 = vsel %vm1638, %v2654, 0.0
        %v2663 = vsel %vm1637, %v2655, 0.0
        %v2664 = vsel %vm1638, %v2656, 0.0
        %v2665 = vmul.f32 %v2661, %v2148
        %v2666 = vmul.f32 %v2662, %v2148
        %v2667 = vmul.f32 %v2663, %v2152
        %v2668 = vmul.f32 %v2664, %v2152
        %v2669 = vadd.f32 %v2637, %v2665
        %v2670 = vadd.f32 %v2638, %v2666
        %v2671 = vadd.f32 %v2639, %v2667
        %v2672 = vadd.f32 %v2640, %v2668
        %v2673 = vadd.f32 %v2669, %v2671
        %v2674 = vrot.slane %v2673, 4
        %v2675 = vadd.f32 %v2673, %v2674
        %v2676 = vrot.slane %v2675, 2
        %v2677 = vadd.f32 %v2675, %v2676
        %v2678 = vrot.slane %v2677, 1
        %v2679 = vadd.f32 %v2677, %v2678
        %v2680 = vadd.f32 %v2670, %v2672
        %v2681 = vrot.slane %v2680, 4
        %v2682 = vadd.f32 %v2680, %v2681
        %v2683 = vrot.slane %v2682, 2
        %v2684 = vadd.f32 %v2682, %v2683
        %v2685 = vrot.slane %v2684, 1
        %v2686 = vadd.f32 %v2684, %v2685
        %v2687 = vxor.u32 %v2679, 2147483648
        %v2688 = vxor.u32 %v2686, 2147483648
        %v2689 = vmul.f32 %v2687, 1.442695
        %v2690 = vpow.pop %v2689
        %v2691 = vmul.f32 %v2688, 1.442695
        %v2692 = vpow.pop %v2691
        %v2693 = vadd.f32 %v2690, 1.0
        %v2694 = vadd.f32 %v2692, 1.0
        %v2695 = vrcp.pop %v2693
        %v2696 = vmul.f32 %v2693, %v2695
        %v2697 = vsub.f32 1.0, %v2696
        %v2698 = vmul.f32 %v2695, %v2697
        %v2699 = vadd.f32 %v2695, %v2698
        %vm2700 = vweird.f32 %v2693
        %vm2701 = vweird.f32 %v2695
        %vm2702 = vmor %vm2700, %vm2701
        %v2703 = vsel %vm2702, %v2695, %v2699
        %v2704 = vand.u32 2147483647, %v2693
        %vm2705 = vcmp.eq.f32.partialorder %v2704, 8.507059e+37
        %v2706 = vand.u32 %v2693, 2147483648
        %v2707 = vor.u32 1.1754944e-38, %v2706
        %v2708 = vsel %vm2705, %v2707, %v2703
        %v2709 = vmul.f32 1.0, %v2708
        %v2710 = vrcp.pop %v2694
        %v2711 = vmul.f32 %v2694, %v2710
        %v2712 = vsub.f32 1.0, %v2711
        %v2713 = vmul.f32 %v2710, %v2712
        %v2714 = vadd.f32 %v2710, %v2713
        %vm2715 = vweird.f32 %v2694
        %vm2716 = vweird.f32 %v2710
        %vm2717 = vmor %vm2715, %vm2716
        %v2718 = vsel %vm2717, %v2710, %v2714
        %v2719 = vand.u32 2147483647, %v2694
        %vm2720 = vcmp.eq.f32.partialorder %v2719, 8.507059e+37
        %v2721 = vand.u32 %v2694, 2147483648
        %v2722 = vor.u32 1.1754944e-38, %v2721
        %v2723 = vsel %vm2720, %v2722, %v2718
        %v2724 = vmul.f32 1.0, %v2723
        %v2725 = vmul.f32 %v2323, %v2709
        %v2726 = vmul.f32 %v2324, %v2724
        %2727 = vmatpush.msra.mxu0 0.0
        %2728 = vmatpush.msra.mxu0 0.0
        %2729 = vmatpush.msra.mxu0 0.0
        %2730 = vmatpush.msra.mxu0 0.0
        %2731 = vmatpush.msra.mxu0 0.0
        %2732 = vmatpush.msra.mxu0 0.0
        %2733 = vmatpush.msra.mxu0 0.0
        %2734 = vmatpush.msra.mxu0 0.0
        %2735 = vmatpush.msra.mxu0 0.0
        %2736 = vmatpush.msra.mxu0 0.0
        %2737 = vmatpush.msra.mxu0 0.0
        %2738 = vmatpush.msra.mxu0 0.0
        %2739 = vmatpush.msra.mxu0 0.0
        %2740 = vmatpush.msra.mxu0 0.0
        %2741 = vmatpush.msra.mxu0 0.0
        %2742 = vmatpush.msra.mxu0 %v2725
        %2743 = vmatmul.f32.gmra.mxu0 %v2223
        %v2744 = vpop.f32.mrf.mxu0
        %v2745 = vadd.f32 %v2219, %v2744
        %2746 = vdwg.mxu0
        %2747 = vmatpush.msra.mxu0 0.0
        %2748 = vmatpush.msra.mxu0 0.0
        %2749 = vmatpush.msra.mxu0 0.0
        %2750 = vmatpush.msra.mxu0 0.0
        %2751 = vmatpush.msra.mxu0 0.0
        %2752 = vmatpush.msra.mxu0 0.0
        %2753 = vmatpush.msra.mxu0 0.0
        %2754 = vmatpush.msra.mxu0 0.0
        %2755 = vmatpush.msra.mxu0 0.0
        %2756 = vmatpush.msra.mxu0 0.0
        %2757 = vmatpush.msra.mxu0 0.0
        %2758 = vmatpush.msra.mxu0 0.0
        %2759 = vmatpush.msra.mxu0 0.0
        %2760 = vmatpush.msra.mxu0 0.0
        %2761 = vmatpush.msra.mxu0 0.0
        %2762 = vmatpush.msra.mxu0 %v2726
        %2763 = vmatmul.f32.gmra.mxu0 %v2223
        %v2764 = vpop.f32.mrf.mxu0
        %v2765 = vadd.f32 %v2219, %v2764
        %2766 = vdwg.mxu0
        %v2767 = vld [vmem:[%s293 + $0x10] sm:$0xf]
        %v2768 = vld [vmem:[%s293 + $0x18] sm:$0xf]
        %v2769 = vadd.f32 %v2745, %v2767
        %v2770 = vadd.f32 %v2765, %v2768
        %v2773 = vrot.slane %v2769, 4
        %v2774 = vrot.slane %v2770, 4
        %vm2777 = vcmask 1043456
        %v2778 = vsel %vm2777, %v2267, %v2773
        %v2779 = vsel %vm2777, %v2268, %v2774
        %2780 = vst [vmem:[%s326] sm:$0xff] %v2778
        %2781 = vst [vmem:[%s326 + $0x8] sm:$0xff] %v2779
        %s2782 = sand.u32 %s206, 1
        %s2783 = scalar_lea.sflag [#allocation7], %s2782
        %s2784 = sand.u32 %s206, 1
        %s2785 = smul.addr %s2784, 16
        %s2786 = scalar_lea.vmem [#allocation8], %s2785
        // Predicated region
        $region57: #{tpu_custom_call.1} parent=51 // pred_check
          %p2787 = pneg %p216
        $region58: #{tpu_custom_call.1} parent=51 // pred_check_branch
          %2789 = sbr.rel (%p2787) target = $region60
        $region59: #{tpu_custom_call.1} parent=51 // pred_region
          %2791 = vsyncadd %s2783, 0
          %s2792 = smul.addr %s25, 2
          %s2793 = smul.addr %s2792, 8
          %s2794 = scalar_lea.hbm %s8, %s2793
          %s2796 = sshll.u32 %s2786, 4
          %s2797 = int_to_ptr.vmem [resolvable:$true] %s2796
          %s2798 = sshll.u32 %s2794, 4
          %s2799 = int_to_ptr.hbm [resolvable:$true] %s2798
          %2801 = dma.vmem_to_hbm [thread:$0]  %s2797, 256, %s2799, %s2783
        $region60: #{tpu_custom_call.1} parent=51 // pred_fallthru
          _
      $region52: #{tpu_custom_call.1} parent=5 // pred_fallthru
        _
      %p2802 = scmp.le.s32.totalorder 2, %s20
      // Predicated region
      $region61: #{tpu_custom_call.1} parent=5 // pred_check
        %p2803 = pneg %p2802
      $region62: #{tpu_custom_call.1} parent=5 // pred_check_branch
        %2805 = sbr.rel (%p2803) target = $region64
      $region63: #{tpu_custom_call.1} parent=5 // pred_region
        %s2806 = ssub.s32 %s20, 2
        // Predicated region
        $region65: #{tpu_custom_call.1} parent=63 // pred_check
          %p2807 = pneg %p222
        $region66: #{tpu_custom_call.1} parent=63 // pred_check_branch
          %2809 = sbr.rel (%p2807) target = $region68
        $region67: #{tpu_custom_call.1} parent=63 // pred_region
          %s2810 = sand.u32 %s207, 1
          %s2811 = scalar_lea.sflag [#allocation7], %s2810
          %s2812 = sand.u32 %s207, 1
          %s2813 = smul.addr %s2812, 16
          %s2814 = scalar_lea.vmem [#allocation8], %s2813
          %2816 = dma.done %s2811, 256
        $region68: #{tpu_custom_call.1} parent=63 // pred_fallthru
          _
      $region64: #{tpu_custom_call.1} parent=5 // pred_fallthru
        _
    $region6: #{tpu_custom_call.1} parent=1 // loop_footer
      %s24 = sadd.s32 1, %s20
    $region7: #{tpu_custom_call.1} parent=1 // loop_footer_branch
      %19 = sbr.rel target = $region3
    $region8: #{tpu_custom_call.1} parent=1 // loop_exit
      _
    %2817 = vsyncpa [#allocation6], 1
    %s2818 = scalar_lea.sflag [#allocation6], 1
    %2819 = vsyncpa %s2818, 1
    %2820 = vsyncpa [#allocation7], 1
    %s2821 = scalar_lea.sflag [#allocation7], 1
    %2822 = vsyncpa %s2821, 1

</llo_original>
